<compile_context>
chip_gen: v5e
topology: v5e:2x2
jax: 0.10.0
libtpu: 0.0.40
codegen_flags: <defaults>
</compile_context>

<pallas_src>
import functools

import numpy as np
import jax
import jax.numpy as jnp
from jax.experimental import pallas as pl
from jax.experimental.pallas import tpu as pltpu

_LEAKY_SLOPE = 0.2
_BN_EPS = 0.8


# ----------------------------------------------------------------------------
# In-kernel im2col: assemble the 9 stride-2 taps from a phase-packed input tile
# (no strided slices, no HBM patch matrix).
# ----------------------------------------------------------------------------
def _im2col_from_phases(x, Ho, Wo, C):
    """x: [1, Ho+1, Wo+1, 4*C] (phase-packed, zero-padded) -> [Ho*Wo, 9*C]."""
    taps = []
    for kh in range(3):
        for kw in range(3):
            ph = ((kh & 1) * 2 + (kw & 1)) * C
            taps.append(x[:, kh // 2:kh // 2 + Ho, kw // 2:kw // 2 + Wo, ph:ph + C])
    cols = jnp.concatenate(taps, axis=-1)            # [1, Ho, Wo, 9C]
    return cols.reshape(Ho * Wo, 9 * C)              # collapse major dims only


def _conv_bn_kernel(x_ref, w_ref, p_ref, o_ref, *, Ho, Wo, C, Cout):
    """Conv2d(3x3,s2,p1) + bias + LeakyReLU(0.2) + eval BatchNorm (scale/shift)."""
    cols = _im2col_from_phases(x_ref[...], Ho, Wo, C)
    y = jnp.dot(cols, w_ref[...], preferred_element_type=jnp.float32)
    p = p_ref[...]                                   # [3, Cout]: bias, bn_scale, bn_shift
    y = y + p[0:1, :]
    y = jnp.where(y >= 0.0, y, _LEAKY_SLOPE * y)
    y = y * p[1:2, :] + p[2:3, :]
    o_ref[...] = y.reshape(1, Ho, Wo, Cout).astype(o_ref.dtype)   # bf16 store


def _conv_adv_kernel(x_ref, w_ref, b_ref, wa_ref, o_ref, *, Ho, Wo, C):
    """Final conv block (no BN) fused with the adversarial linear reduction."""
    cols = _im2col_from_phases(x_ref[...], Ho, Wo, C)
    y = jnp.dot(cols, w_ref[...], preferred_element_type=jnp.float32)
    y = y + b_ref[...]                               # [1, Cout] bias
    y = jnp.where(y >= 0.0, y, _LEAKY_SLOPE * y)
    # wa_ref: [2, Ho*Wo, Cout] f32, permuted at prep time to match (h, w, c) order.
    a0 = jnp.sum(jnp.sum(y * wa_ref[0], axis=1, keepdims=True), axis=0, keepdims=True)
    a1 = jnp.sum(jnp.sum(y * wa_ref[1], axis=1, keepdims=True), axis=0, keepdims=True)
    o_ref[...] = jnp.concatenate([a0, a1], axis=1).reshape(1, 1, 2)


# ----------------------------------------------------------------------------
# Wrappers (XLA glue kept to a single 1x bf16 phase-packing pass per conv)
# ----------------------------------------------------------------------------
def _space_to_depth(x_nhwc, Ho, Wo):
    """[B, H, W, C] f32/bf16 -> [B, Ho+1, Wo+1, 4*C] bf16, zero-padded for 3x3/s2/p1."""
    B, H, W, C = x_nhwc.shape
    x = x_nhwc.astype(jnp.bfloat16)
    x = jnp.pad(x, ((0, 0), (1, 2 * Ho + 1 - H), (1, 2 * Wo + 1 - W), (0, 0)))
    x = x.reshape(B, Ho + 1, 2, Wo + 1, 2, C)
    x = x.transpose(0, 1, 3, 2, 4, 5).reshape(B, Ho + 1, Wo + 1, 4 * C)
    return x


def _vmem_limit(bytes_needed):
    # Raise the scoped VMEM budget above the 16/32 MiB defaults; cap at v7x physical.
    return int(min(64 * 1024 * 1024, max(32 * 1024 * 1024, 4 * bytes_needed)))


def conv_block(x_nhwc, blk):
    """Conv2d -> LeakyReLU(0.2) -> Dropout2d(eval=id) -> eval BatchNorm (or identity)."""
    B, H, W, C = x_nhwc.shape
    Ho, Wo = (H + 1) // 2, (W + 1) // 2
    Cout = blk["w"].shape[1]
    xph = _space_to_depth(x_nhwc, Ho, Wo)
    need = (2 * (Ho + 1) * (Wo + 1) * 4 * C * 2        # double-buffered input blocks
            + 2 * Ho * Wo * Cout * 2                   # double-buffered bf16 outputs
            + 9 * C * Cout * 2 + 3 * Cout * 4          # weights + pack
            + Ho * Wo * 9 * C * 2 + Ho * Wo * Cout * 4)  # in-kernel cols + f32 acc
    # TODO(synk): for very large T/F add an Ho-row grid axis (overlapping input rows).
    out = pl.pallas_call(
        functools.partial(_conv_bn_kernel, Ho=Ho, Wo=Wo, C=C, Cout=Cout),
        out_shape=jax.ShapeDtypeStruct((B, Ho, Wo, Cout), jnp.bfloat16),
        grid_spec=pltpu.PrefetchScalarGridSpec(
            num_scalar_prefetch=0,
            grid=(B,),
            in_specs=[
                pl.BlockSpec((1, Ho + 1, Wo + 1, 4 * C), lambda b: (b, 0, 0, 0)),
                pl.BlockSpec((9 * C, Cout), lambda b: (0, 0)),
                pl.BlockSpec((3, Cout), lambda b: (0, 0)),
            ],
            out_specs=pl.BlockSpec((1, Ho, Wo, Cout), lambda b: (b, 0, 0, 0)),
        ),
        compiler_params=pltpu.CompilerParams(
            dimension_semantics=("parallel",),
            vmem_limit_bytes=_vmem_limit(need)),
    )(xph, blk["w"], blk["pack"])
    return out                                         # [B, Ho, Wo, Cout] bf16


def conv_adv_block(x_nhwc, blk, wa):
    """Final conv block fused with the adv-layer dot.  Returns [B, 2] f32 partials."""
    B, H, W, C = x_nhwc.shape
    Ho, Wo = (H + 1) // 2, (W + 1) // 2
    Cout = blk["w"].shape[1]
    xph = _space_to_depth(x_nhwc, Ho, Wo)
    need = (2 * (Ho + 1) * (Wo + 1) * 4 * C * 2
            + 9 * C * Cout * 2 + Cout * 4
            + 2 * Ho * Wo * Cout * 4                   # adv weights (f32, resident)
            + Ho * Wo * 9 * C * 2 + Ho * Wo * Cout * 4)
    out = pl.pallas_call(
        functools.partial(_conv_adv_kernel, Ho=Ho, Wo=Wo, C=C),
        out_shape=jax.ShapeDtypeStruct((B, 1, 2), jnp.float32),
        grid_spec=pltpu.PrefetchScalarGridSpec(
            num_scalar_prefetch=0,
            grid=(B,),
            in_specs=[
                pl.BlockSpec((1, Ho + 1, Wo + 1, 4 * C), lambda b: (b, 0, 0, 0)),
                pl.BlockSpec((9 * C, Cout), lambda b: (0, 0)),
                pl.BlockSpec((1, Cout), lambda b: (0, 0)),
                pl.BlockSpec((2, Ho * Wo, Cout), lambda b: (0, 0, 0)),
            ],
            out_specs=pl.BlockSpec((1, 1, 2), lambda b: (b, 0, 0)),
        ),
        compiler_params=pltpu.CompilerParams(
            dimension_semantics=("parallel",),
            vmem_limit_bytes=_vmem_limit(need)),
    )(xph, blk["w"], blk["bias"], wa)
    return out.reshape(B, 2)


# ----------------------------------------------------------------------------
# Parameter init (deterministic, synthetic; PyTorch layouts)
# ----------------------------------------------------------------------------
def _init_conv_block(key, cin, cout, with_bn):
    kw, kb = jax.random.split(key)
    blk = {"w": 0.05 * jax.random.normal(kw, (cout, cin, 3, 3), jnp.float32),
           "b": 0.01 * jax.random.normal(kb, (cout,), jnp.float32)}
    if with_bn:
        blk["bn_gamma"] = jnp.ones((cout,), jnp.float32)
        blk["bn_beta"] = jnp.zeros((cout,), jnp.float32)
        blk["bn_mean"] = jnp.zeros((cout,), jnp.float32)
        blk["bn_var"] = jnp.ones((cout,), jnp.float32)
    return blk


def _init_linear(key, din, dout):
    kw, kb = jax.random.split(key)
    return {"w": 0.05 * jax.random.normal(kw, (dout, din), jnp.float32),
            "b": 0.01 * jax.random.normal(kb, (dout,), jnp.float32)}


def init_single_window_disc(key, time_length, freq_length, c_in, hidden):
    keys = jax.random.split(key, 13)

    def branch(ks):
        return [_init_conv_block(ks[0], c_in, hidden, True),
                _init_conv_block(ks[1], hidden, hidden, True),
                _init_conv_block(ks[2], hidden, hidden, False)]

    p = {"uncond_model": branch(keys[0:3]),
         "emo_cond_model": branch(keys[3:6]),
         # spk_cond_model exists in __init__ but the original forward never uses it
         # (it runs x_spk_cond through emo_cond_model).
         "spk_cond_model": branch(keys[6:9])}
    ds0 = time_length // 2 ** 3
    ds1 = (freq_length + 7) // 2 ** 3 + (freq_length + 128 + 7) // 2 ** 3
    d = hidden * ds0 * ds1
    p["emo_adv_layer"] = _init_linear(keys[9], d, 1)
    p["spk_adv_layer"] = _init_linear(keys[10], d, 1)
    p["emo_layer"] = _init_linear(keys[11], 128, 128)
    p["spk_layer"] = _init_linear(keys[12], 128, 128)
    return p


def init_discriminator(key, time_lengths, freq_length, c_in, hidden):
    keys = jax.random.split(key, len(time_lengths))
    return {"time_lengths": list(time_lengths),
            "freq_length": freq_length,
            "discs": [init_single_window_disc(k, tl, freq_length, c_in, hidden)
                      for k, tl in zip(keys, time_lengths)]}


# ----------------------------------------------------------------------------
# Kernel-ready weight prep (hoisted out of the per-call path)
# ----------------------------------------------------------------------------
def _prep_conv(blk, eps=_BN_EPS):
    w = blk["w"]                                       # [Cout, Cin, 3, 3] PyTorch layout
    cout, cin = w.shape[0], w.shape[1]
    # (kh, kw, cin) row order matches the in-kernel tap concatenation order.
    wm = w.transpose(2, 3, 1, 0).reshape(9 * cin, cout).astype(jnp.bfloat16)
    if "bn_gamma" in blk:
        scale = blk["bn_gamma"] / jnp.sqrt(blk["bn_var"] + eps)
        shift = blk["bn_beta"] - blk["bn_mean"] * scale
    else:
        scale = jnp.ones((cout,), jnp.float32)
        shift = jnp.zeros((cout,), jnp.float32)
    pack = jnp.stack([blk["b"].astype(jnp.float32), scale, shift], axis=0)
    return {"w": wm, "pack": pack,
            "bias": blk["b"].astype(jnp.float32).reshape(1, cout)}


def _prep_adv(emo_adv, spk_adv, hidden, ho, wo_u, wo_c):
    """Split adv weights into uncond/cond halves and permute rows from the PyTorch
    NCHW flatten order (c, h, w) to our (h, w, c) order, so no transposes/concats
    are needed at runtime."""
    d_u = hidden * ho * wo_u

    def split(wrow):
        wu = wrow[:d_u].reshape(hidden, ho, wo_u).transpose(1, 2, 0)
        wc = wrow[d_u:].reshape(hidden, ho, wo_c).transpose(1, 2, 0)
        return wu.reshape(ho * wo_u, hidden), wc.reshape(ho * wo_c, hidden)

    we_u, we_c = split(emo_adv["w"][0])
    ws_u, ws_c = split(spk_adv["w"][0])
    return {"wa_u": jnp.stack([we_u, ws_u], axis=0).astype(jnp.float32),
            "wa_c": jnp.stack([we_c, ws_c], axis=0).astype(jnp.float32),
            "bias": jnp.stack([emo_adv["b"][0], spk_adv["b"][0]]).astype(jnp.float32)}


def prepare_single_window(p, time_length, freq_length):
    hidden = p["uncond_model"][0]["w"].shape[0]
    ho = time_length // 8
    wo_u = (freq_length + 7) // 8
    wo_c = (freq_length + 128 + 7) // 8
    return {
        "uncond": [_prep_conv(b) for b in p["uncond_model"]],
        # spk-cond branch reuses emo_cond_model weights (original model bug).
        "cond": [_prep_conv(b) for b in p["emo_cond_model"]],
        "cond_w": jnp.stack([p["emo_layer"]["w"].T, p["spk_layer"]["w"].T], axis=0),
        "cond_b": jnp.stack([p["emo_layer"]["b"], p["spk_layer"]["b"]], axis=0)[:, None, :],
        "adv": _prep_adv(p["emo_adv_layer"], p["spk_adv_layer"], hidden, ho, wo_u, wo_c),
    }


def prepare_discriminator(params):
    return {"time_lengths": params["time_lengths"],
            "discs": [prepare_single_window(p, tl, params["freq_length"])
                      for p, tl in zip(params["discs"], params["time_lengths"])]}


# ----------------------------------------------------------------------------
# Forward passes
# ----------------------------------------------------------------------------
@jax.jit
def single_window_forward(pp, x_clip, emo_cond_embed, spk_cond_embed):
    """x_clip: [B, C, T, n_bins] (NCHW); cond embeds: [B, 1, 128]."""
    B, _, T, _ = x_clip.shape

    # 128->128 conditioning linears (M = B): one batched XLA dot; a Pallas launch
    # here would be pure pipeline-prologue overhead (per perf review).
    cond_in = jnp.stack([emo_cond_embed[:, 0, :], spk_cond_embed[:, 0, :]], axis=0)
    cond = jnp.einsum("kbi,kij->kbj", cond_in, pp["cond_w"]) + pp["cond_b"]
    emo, spk = cond[0], cond[1]                                        # [B, 128]

    x_nhwc = x_clip.transpose(0, 2, 3, 1).astype(jnp.bfloat16)         # [B, T, F, 1]
    emo_exp = jnp.broadcast_to(emo.astype(jnp.bfloat16)[:, None, :, None], (B, T, 128, 1))
    spk_exp = jnp.broadcast_to(spk.astype(jnp.bfloat16)[:, None, :, None], (B, T, 128, 1))
    # emo- and spk-conditioned branches share emo_cond_model weights (original bug),
    # so run them as a single conv stack batched along B.
    x_cond = jnp.concatenate(
        [jnp.concatenate([x_nhwc, emo_exp], axis=2),
         jnp.concatenate([x_nhwc, spk_exp], axis=2)], axis=0)          # [2B, T, F+128, 1]

    h = x_nhwc
    for blk in pp["uncond"][:2]:
        h = conv_block(h, blk)
    hc = x_cond
    for blk in pp["cond"][:2]:
        hc = conv_block(hc, blk)

    # Third conv of each branch fused with the adv-layer reduction: no flattened
    # features, transposes, or x_emo/x_spk concats ever hit HBM.
    adv_u = conv_adv_block(h, pp["uncond"][2], pp["adv"]["wa_u"])      # [B, 2]
    adv_c = conv_adv_block(hc, pp["cond"][2], pp["adv"]["wa_c"])       # [2B, 2]

    bias = pp["adv"]["bias"]
    emo_validity = adv_u[:, 0:1] + adv_c[:B, 0:1] + bias[0]            # [B, 1]
    spk_validity = adv_u[:, 1:2] + adv_c[B:, 1:2] + bias[1]            # [B, 1]
    return emo_validity, spk_validity


def multi_window_forward(prepared, x, x_len, emo, spk, start_frames_wins=None):
    discs, wins = prepared["discs"], prepared["time_lengths"]
    e_vals, s_vals = [], []
    if start_frames_wins is None:
        start_frames_wins = [None] * len(discs)
    # TODO(synk): int(jnp.max(...)) + np.random.randint force a host sync for the random
    # window clipping (mirrors the PyTorch clip()); keeps the outer loop un-jittable.
    t_max = int(jnp.max(x_len))
    for i, (pp, win) in enumerate(zip(discs, wins)):
        t_end = t_max - win
        if t_end < 0:
            continue
        sf = start_frames_wins[i]
        if sf is None:
            start_frame = int(np.random.randint(low=0, high=t_end + 1))
            sf = [start_frame] * x.shape[0]
        else:
            start_frame = sf[0]
        start_frames_wins[i] = sf
        x_clip = x[:, :, start_frame:start_frame + win]
        e, s = single_window_forward(pp, x_clip, emo, spk)
        e_vals.append(e)
        s_vals.append(s)
    if len(e_vals) != len(discs):
        return None, None, start_frames_wins
    return sum(e_vals), sum(s_vals), start_frames_wins


def discriminator_forward(prepared, x, emo_cond_embed, spk_cond_embed,
                          start_frames_wins=None):
    if x.ndim == 3:
        x = x[:, None, :, :]                                   # [B, 1, T, n_bins]
    x_len = jnp.sum((jnp.sum(x, axis=(1, -1)) != 0).astype(jnp.int32), axis=-1)
    # TODO(synk): training-mode Dropout2d / batch-stat BatchNorm are not modeled
    # (eval-mode forward only).
    e, s, _ = multi_window_forward(prepared, x, x_len, emo_cond_embed,
                                   spk_cond_embed, start_frames_wins)
    return {"e_y_cond": e, "s_y_cond": s}


# ----------------------------------------------------------------------------
if __name__ == "__main__":
    np.random.seed(0)  # deterministic window clipping (mirrors np.random.randint)
    key = jax.random.PRNGKey(0)
    k_x, k_e, k_s, k_p = jax.random.split(key, 4)

    # small shapes: B=2, T=24 frames, freq=16 bins, hidden=32, windows [8, 16]
    B, T, FREQ = 2, 24, 16
    TIME_LENGTHS = [8, 16]
    HIDDEN = 32

    x = jax.random.normal(k_x, (B, T, FREQ), jnp.float32)            # [B, T, n_bins]
    emo_cond_embed = jax.random.normal(k_e, (B, 1, 128), jnp.float32)
    spk_cond_embed = jax.random.normal(k_s, (B, 1, 128), jnp.float32)

    raw_params = init_discriminator(k_p, TIME_LENGTHS, FREQ, c_in=1, hidden=HIDDEN)
    prepared = prepare_discriminator(raw_params)     # weight prep hoisted out of forward

    ret = discriminator_forward(prepared, x, emo_cond_embed, spk_cond_embed)
    assert ret["e_y_cond"] is not None and ret["s_y_cond"] is not None
    jax.block_until_ready(ret["e_y_cond"])
    jax.block_until_ready(ret["s_y_cond"])
    assert ret["e_y_cond"].shape == (B, 1) and ret["s_y_cond"].shape == (B, 1)
    assert bool(jnp.all(jnp.isfinite(ret["e_y_cond"])))
    assert bool(jnp.all(jnp.isfinite(ret["s_y_cond"])))
    print("KERNEL_OK")
</pallas_src>

<mosaic_0001>
module attributes {stable_mosaic.version = 11 : i64} {
  func.func @_conv_bn_kernel(%arg0: i32, %arg1: memref<1x5x73x4xbf16, #tpu.memory_space<vmem>>, %arg2: memref<9x32xbf16, #tpu.memory_space<vmem>>, %arg3: memref<3x32xf32, #tpu.memory_space<vmem>>, %arg4: memref<1x4x72x32xbf16, #tpu.memory_space<vmem>>) attributes {dimension_semantics = [#tpu.dimension_semantics<parallel>], iteration_bounds = array<i64: 4>, scalar_prefetch = 0 : i64, scratch_operands = 0 : i64, tpu.core_type = #tpu.core_type<tc>, window_params = [{transform_indices = @transform_0, window_bounds = array<i64: 1, 5, 73, 4>}, {pipeline_mode = #tpu.pipeline_mode<synchronous>, transform_indices = @transform_1, window_bounds = array<i64: 9, 32>}, {pipeline_mode = #tpu.pipeline_mode<synchronous>, transform_indices = @transform_2, window_bounds = array<i64: 3, 32>}, {transform_indices = @transform_3, window_bounds = array<i64: 1, 4, 72, 32>}]} {
    %c0 = arith.constant 0 : index
    %c0_0 = arith.constant 0 : index
    %c0_1 = arith.constant 0 : index
    %c0_2 = arith.constant 0 : index
    %0 = vector.load %arg1[%c0, %c0_0, %c0_1, %c0_2] : memref<1x5x73x4xbf16, #tpu.memory_space<vmem>>, vector<1x5x73x4xbf16>
    %1 = vector.extract_strided_slice %0 {offsets = [0, 0, 0, 0], sizes = [1, 4, 72, 1], strides = [1, 1, 1, 1]} : vector<1x5x73x4xbf16> to vector<1x4x72x1xbf16>
    %2 = vector.extract_strided_slice %0 {offsets = [0, 0, 0, 1], sizes = [1, 4, 72, 1], strides = [1, 1, 1, 1]} : vector<1x5x73x4xbf16> to vector<1x4x72x1xbf16>
    %3 = vector.extract_strided_slice %0 {offsets = [0, 0, 1, 0], sizes = [1, 4, 72, 1], strides = [1, 1, 1, 1]} : vector<1x5x73x4xbf16> to vector<1x4x72x1xbf16>
    %4 = vector.extract_strided_slice %0 {offsets = [0, 0, 0, 2], sizes = [1, 4, 72, 1], strides = [1, 1, 1, 1]} : vector<1x5x73x4xbf16> to vector<1x4x72x1xbf16>
    %5 = vector.extract_strided_slice %0 {offsets = [0, 0, 0, 3], sizes = [1, 4, 72, 1], strides = [1, 1, 1, 1]} : vector<1x5x73x4xbf16> to vector<1x4x72x1xbf16>
    %6 = vector.extract_strided_slice %0 {offsets = [0, 0, 1, 2], sizes = [1, 4, 72, 1], strides = [1, 1, 1, 1]} : vector<1x5x73x4xbf16> to vector<1x4x72x1xbf16>
    %7 = vector.extract_strided_slice %0 {offsets = [0, 1, 0, 0], sizes = [1, 4, 72, 1], strides = [1, 1, 1, 1]} : vector<1x5x73x4xbf16> to vector<1x4x72x1xbf16>
    %8 = vector.extract_strided_slice %0 {offsets = [0, 1, 0, 1], sizes = [1, 4, 72, 1], strides = [1, 1, 1, 1]} : vector<1x5x73x4xbf16> to vector<1x4x72x1xbf16>
    %9 = vector.extract_strided_slice %0 {offsets = [0, 1, 1, 0], sizes = [1, 4, 72, 1], strides = [1, 1, 1, 1]} : vector<1x5x73x4xbf16> to vector<1x4x72x1xbf16>
    %10 = tpu.concatenate %1, %2, %3, %4, %5, %6, %7, %8, %9 in 3 : vector<1x4x72x1xbf16>, vector<1x4x72x1xbf16>, vector<1x4x72x1xbf16>, vector<1x4x72x1xbf16>, vector<1x4x72x1xbf16>, vector<1x4x72x1xbf16>, vector<1x4x72x1xbf16>, vector<1x4x72x1xbf16>, vector<1x4x72x1xbf16> -> vector<1x4x72x9xbf16>
    %11 = vector.shape_cast %10 : vector<1x4x72x9xbf16> to vector<288x9xbf16>
    %c0_3 = arith.constant 0 : index
    %c0_4 = arith.constant 0 : index
    %12 = vector.load %arg2[%c0_3, %c0_4] : memref<9x32xbf16, #tpu.memory_space<vmem>>, vector<9x32xbf16>
    %cst = arith.constant dense<0.000000e+00> : vector<288x32xf32>
    %13 = tpu.matmul %11, %12, %cst {dimension_numbers = #tpu.dot_dimension_numbers<[1], [0], [0], [1], [0, 0, 1, 1], [], []>} : vector<288x9xbf16>, vector<9x32xbf16>, vector<288x32xf32> -> vector<288x32xf32>
    %c0_5 = arith.constant 0 : index
    %c0_6 = arith.constant 0 : index
    %14 = vector.load %arg3[%c0_5, %c0_6] : memref<3x32xf32, #tpu.memory_space<vmem>>, vector<3x32xf32>
    %15 = vector.extract_strided_slice %14 {offsets = [0, 0], sizes = [1, 32], strides = [1, 1]} : vector<3x32xf32> to vector<1x32xf32>
    %16 = vector.broadcast %15 : vector<1x32xf32> to vector<288x32xf32>
    %17 = arith.addf %13, %16 : vector<288x32xf32>
    %cst_7 = arith.constant 0.000000e+00 : f32
    %18 = vector.broadcast %cst_7 : f32 to vector<288x32xf32>
    %19 = arith.cmpf oge, %17, %18 : vector<288x32xf32>
    %cst_8 = arith.constant 2.000000e-01 : f32
    %20 = vector.broadcast %cst_8 : f32 to vector<288x32xf32>
    %21 = arith.mulf %20, %17 : vector<288x32xf32>
    %22 = arith.select %19, %17, %21 : vector<288x32xi1>, vector<288x32xf32>
    %23 = vector.extract_strided_slice %14 {offsets = [1, 0], sizes = [1, 32], strides = [1, 1]} : vector<3x32xf32> to vector<1x32xf32>
    %24 = vector.broadcast %23 : vector<1x32xf32> to vector<288x32xf32>
    %25 = arith.mulf %22, %24 : vector<288x32xf32>
    %26 = vector.extract_strided_slice %14 {offsets = [2, 0], sizes = [1, 32], strides = [1, 1]} : vector<3x32xf32> to vector<1x32xf32>
    %27 = vector.broadcast %26 : vector<1x32xf32> to vector<288x32xf32>
    %28 = arith.addf %25, %27 : vector<288x32xf32>
    %29 = vector.shape_cast %28 : vector<288x32xf32> to vector<1x4x72x32xf32>
    %30 = arith.truncf %29 : vector<1x4x72x32xf32> to vector<1x4x72x32xbf16>
    %c0_9 = arith.constant 0 : index
    %c0_10 = arith.constant 0 : index
    %c0_11 = arith.constant 0 : index
    %c0_12 = arith.constant 0 : index
    %31 = vector.load %arg4[%c0_9, %c0_10, %c0_11, %c0_12] : memref<1x4x72x32xbf16, #tpu.memory_space<vmem>>, vector<1x4x72x32xbf16>
    tpu.vector_store %arg4[%c0_9, %c0_10, %c0_11, %c0_12], %30 {strides = array<i32>} : memref<1x4x72x32xbf16, #tpu.memory_space<vmem>>, vector<1x4x72x32xbf16>,
    return
  }
  func.func @transform_0(%arg0: i32) -> (i32, i32, i32, i32) {
    %c0_i32 = arith.constant 0 : i32
    %c0_i32_0 = arith.constant 0 : i32
    %c0_i32_1 = arith.constant 0 : i32
    %c0_i32_2 = arith.constant 0 : i32
    return %arg0, %c0_i32, %c0_i32_0, %c0_i32_1 : i32, i32, i32, i32
  }
  func.func @transform_1(%arg0: i32) -> (i32, i32) {
    %c0_i32 = arith.constant 0 : i32
    %c0_i32_0 = arith.constant 0 : i32
    %c0_i32_1 = arith.constant 0 : i32
    return %c0_i32, %c0_i32_0 : i32, i32
  }
  func.func @transform_2(%arg0: i32) -> (i32, i32) {
    %c0_i32 = arith.constant 0 : i32
    %c0_i32_0 = arith.constant 0 : i32
    %c0_i32_1 = arith.constant 0 : i32
    return %c0_i32, %c0_i32_0 : i32, i32
  }
  func.func @transform_3(%arg0: i32) -> (i32, i32, i32, i32) {
    %c0_i32 = arith.constant 0 : i32
    %c0_i32_0 = arith.constant 0 : i32
    %c0_i32_1 = arith.constant 0 : i32
    %c0_i32_2 = arith.constant 0 : i32
    return %arg0, %c0_i32, %c0_i32_0, %c0_i32_1 : i32, i32, i32, i32
  }
}

module attributes {stable_mosaic.version = 11 : i64} {
  func.func @_conv_bn_kernel(%arg0: i32, %arg1: memref<1x3x37x128xbf16, #tpu.memory_space<vmem>>, %arg2: memref<288x32xbf16, #tpu.memory_space<vmem>>, %arg3: memref<3x32xf32, #tpu.memory_space<vmem>>, %arg4: memref<1x2x36x32xbf16, #tpu.memory_space<vmem>>) attributes {dimension_semantics = [#tpu.dimension_semantics<parallel>], iteration_bounds = array<i64: 4>, scalar_prefetch = 0 : i64, scratch_operands = 0 : i64, tpu.core_type = #tpu.core_type<tc>, window_params = [{transform_indices = @transform_0, window_bounds = array<i64: 1, 3, 37, 128>}, {pipeline_mode = #tpu.pipeline_mode<synchronous>, transform_indices = @transform_1, window_bounds = array<i64: 288, 32>}, {pipeline_mode = #tpu.pipeline_mode<synchronous>, transform_indices = @transform_2, window_bounds = array<i64: 3, 32>}, {transform_indices = @transform_3, window_bounds = array<i64: 1, 2, 36, 32>}]} {
    %c0 = arith.constant 0 : index
    %c0_0 = arith.constant 0 : index
    %c0_1 = arith.constant 0 : index
    %c0_2 = arith.constant 0 : index
    %0 = vector.load %arg1[%c0, %c0_0, %c0_1, %c0_2] : memref<1x3x37x128xbf16, #tpu.memory_space<vmem>>, vector<1x3x37x128xbf16>
    %1 = vector.extract_strided_slice %0 {offsets = [0, 0, 0, 0], sizes = [1, 2, 36, 32], strides = [1, 1, 1, 1]} : vector<1x3x37x128xbf16> to vector<1x2x36x32xbf16>
    %2 = vector.extract_strided_slice %0 {offsets = [0, 0, 0, 32], sizes = [1, 2, 36, 32], strides = [1, 1, 1, 1]} : vector<1x3x37x128xbf16> to vector<1x2x36x32xbf16>
    %3 = vector.extract_strided_slice %0 {offsets = [0, 0, 1, 0], sizes = [1, 2, 36, 32], strides = [1, 1, 1, 1]} : vector<1x3x37x128xbf16> to vector<1x2x36x32xbf16>
    %4 = vector.extract_strided_slice %0 {offsets = [0, 0, 0, 64], sizes = [1, 2, 36, 32], strides = [1, 1, 1, 1]} : vector<1x3x37x128xbf16> to vector<1x2x36x32xbf16>
    %5 = vector.extract_strided_slice %0 {offsets = [0, 0, 0, 96], sizes = [1, 2, 36, 32], strides = [1, 1, 1, 1]} : vector<1x3x37x128xbf16> to vector<1x2x36x32xbf16>
    %6 = vector.extract_strided_slice %0 {offsets = [0, 0, 1, 64], sizes = [1, 2, 36, 32], strides = [1, 1, 1, 1]} : vector<1x3x37x128xbf16> to vector<1x2x36x32xbf16>
    %7 = vector.extract_strided_slice %0 {offsets = [0, 1, 0, 0], sizes = [1, 2, 36, 32], strides = [1, 1, 1, 1]} : vector<1x3x37x128xbf16> to vector<1x2x36x32xbf16>
    %8 = vector.extract_strided_slice %0 {offsets = [0, 1, 0, 32], sizes = [1, 2, 36, 32], strides = [1, 1, 1, 1]} : vector<1x3x37x128xbf16> to vector<1x2x36x32xbf16>
    %9 = vector.extract_strided_slice %0 {offsets = [0, 1, 1, 0], sizes = [1, 2, 36, 32], strides = [1, 1, 1, 1]} : vector<1x3x37x128xbf16> to vector<1x2x36x32xbf16>
    %10 = tpu.concatenate %1, %2, %3, %4, %5, %6, %7, %8, %9 in 3 : vector<1x2x36x32xbf16>, vector<1x2x36x32xbf16>, vector<1x2x36x32xbf16>, vector<1x2x36x32xbf16>, vector<1x2x36x32xbf16>, vector<1x2x36x32xbf16>, vector<1x2x36x32xbf16>, vector<1x2x36x32xbf16>, vector<1x2x36x32xbf16> -> vector<1x2x36x288xbf16>
    %11 = vector.shape_cast %10 : vector<1x2x36x288xbf16> to vector<72x288xbf16>
    %c0_3 = arith.constant 0 : index
    %c0_4 = arith.constant 0 : index
    %12 = vector.load %arg2[%c0_3, %c0_4] : memref<288x32xbf16, #tpu.memory_space<vmem>>, vector<288x32xbf16>
    %cst = arith.constant dense<0.000000e+00> : vector<72x32xf32>
    %13 = tpu.matmul %11, %12, %cst {dimension_numbers = #tpu.dot_dimension_numbers<[1], [0], [0], [1], [0, 0, 1, 1], [], []>} : vector<72x288xbf16>, vector<288x32xbf16>, vector<72x32xf32> -> vector<72x32xf32>
    %c0_5 = arith.constant 0 : index
    %c0_6 = arith.constant 0 : index
    %14 = vector.load %arg3[%c0_5, %c0_6] : memref<3x32xf32, #tpu.memory_space<vmem>>, vector<3x32xf32>
    %15 = vector.extract_strided_slice %14 {offsets = [0, 0], sizes = [1, 32], strides = [1, 1]} : vector<3x32xf32> to vector<1x32xf32>
    %16 = vector.broadcast %15 : vector<1x32xf32> to vector<72x32xf32>
    %17 = arith.addf %13, %16 : vector<72x32xf32>
    %cst_7 = arith.constant 0.000000e+00 : f32
    %18 = vector.broadcast %cst_7 : f32 to vector<72x32xf32>
    %19 = arith.cmpf oge, %17, %18 : vector<72x32xf32>
    %cst_8 = arith.constant 2.000000e-01 : f32
    %20 = vector.broadcast %cst_8 : f32 to vector<72x32xf32>
    %21 = arith.mulf %20, %17 : vector<72x32xf32>
    %22 = arith.select %19, %17, %21 : vector<72x32xi1>, vector<72x32xf32>
    %23 = vector.extract_strided_slice %14 {offsets = [1, 0], sizes = [1, 32], strides = [1, 1]} : vector<3x32xf32> to vector<1x32xf32>
    %24 = vector.broadcast %23 : vector<1x32xf32> to vector<72x32xf32>
    %25 = arith.mulf %22, %24 : vector<72x32xf32>
    %26 = vector.extract_strided_slice %14 {offsets = [2, 0], sizes = [1, 32], strides = [1, 1]} : vector<3x32xf32> to vector<1x32xf32>
    %27 = vector.broadcast %26 : vector<1x32xf32> to vector<72x32xf32>
    %28 = arith.addf %25, %27 : vector<72x32xf32>
    %29 = vector.shape_cast %28 : vector<72x32xf32> to vector<1x2x36x32xf32>
    %30 = arith.truncf %29 : vector<1x2x36x32xf32> to vector<1x2x36x32xbf16>
    %c0_9 = arith.constant 0 : index
    %c0_10 = arith.constant 0 : index
    %c0_11 = arith.constant 0 : index
    %c0_12 = arith.constant 0 : index
    %31 = vector.load %arg4[%c0_9, %c0_10, %c0_11, %c0_12] : memref<1x2x36x32xbf16, #tpu.memory_space<vmem>>, vector<1x2x36x32xbf16>
    tpu.vector_store %arg4[%c0_9, %c0_10, %c0_11, %c0_12], %30 {strides = array<i32>} : memref<1x2x36x32xbf16, #tpu.memory_space<vmem>>, vector<1x2x36x32xbf16>,
    return
  }
  func.func @transform_0(%arg0: i32) -> (i32, i32, i32, i32) {
    %c0_i32 = arith.constant 0 : i32
    %c0_i32_0 = arith.constant 0 : i32
    %c0_i32_1 = arith.constant 0 : i32
    %c0_i32_2 = arith.constant 0 : i32
    return %arg0, %c0_i32, %c0_i32_0, %c0_i32_1 : i32, i32, i32, i32
  }
  func.func @transform_1(%arg0: i32) -> (i32, i32) {
    %c0_i32 = arith.constant 0 : i32
    %c0_i32_0 = arith.constant 0 : i32
    %c0_i32_1 = arith.constant 0 : i32
    return %c0_i32, %c0_i32_0 : i32, i32
  }
  func.func @transform_2(%arg0: i32) -> (i32, i32) {
    %c0_i32 = arith.constant 0 : i32
    %c0_i32_0 = arith.constant 0 : i32
    %c0_i32_1 = arith.constant 0 : i32
    return %c0_i32, %c0_i32_0 : i32, i32
  }
  func.func @transform_3(%arg0: i32) -> (i32, i32, i32, i32) {
    %c0_i32 = arith.constant 0 : i32
    %c0_i32_0 = arith.constant 0 : i32
    %c0_i32_1 = arith.constant 0 : i32
    %c0_i32_2 = arith.constant 0 : i32
    return %arg0, %c0_i32, %c0_i32_0, %c0_i32_1 : i32, i32, i32, i32
  }
}

module attributes {stable_mosaic.version = 11 : i64} {
  func.func @_conv_adv_kernel(%arg0: i32, %arg1: memref<1x2x19x128xbf16, #tpu.memory_space<vmem>>, %arg2: memref<288x32xbf16, #tpu.memory_space<vmem>>, %arg3: memref<1x32xf32, #tpu.memory_space<vmem>>, %arg4: memref<2x18x32xf32, #tpu.memory_space<vmem>>, %arg5: memref<1x1x2xf32, #tpu.memory_space<vmem>>) attributes {dimension_semantics = [#tpu.dimension_semantics<parallel>], iteration_bounds = array<i64: 4>, scalar_prefetch = 0 : i64, scratch_operands = 0 : i64, tpu.core_type = #tpu.core_type<tc>, window_params = [{transform_indices = @transform_0, window_bounds = array<i64: 1, 2, 19, 128>}, {pipeline_mode = #tpu.pipeline_mode<synchronous>, transform_indices = @transform_1, window_bounds = array<i64: 288, 32>}, {pipeline_mode = #tpu.pipeline_mode<synchronous>, transform_indices = @transform_2, window_bounds = array<i64: 1, 32>}, {pipeline_mode = #tpu.pipeline_mode<synchronous>, transform_indices = @transform_3, window_bounds = array<i64: 2, 18, 32>}, {transform_indices = @transform_4, window_bounds = array<i64: 1, 1, 2>}]} {
    %c0 = arith.constant 0 : index
    %c0_0 = arith.constant 0 : index
    %c0_1 = arith.constant 0 : index
    %c0_2 = arith.constant 0 : index
    %0 = vector.load %arg1[%c0, %c0_0, %c0_1, %c0_2] : memref<1x2x19x128xbf16, #tpu.memory_space<vmem>>, vector<1x2x19x128xbf16>
    %1 = vector.extract_strided_slice %0 {offsets = [0, 0, 0, 0], sizes = [1, 1, 18, 32], strides = [1, 1, 1, 1]} : vector<1x2x19x128xbf16> to vector<1x1x18x32xbf16>
    %2 = vector.extract_strided_slice %0 {offsets = [0, 0, 0, 32], sizes = [1, 1, 18, 32], strides = [1, 1, 1, 1]} : vector<1x2x19x128xbf16> to vector<1x1x18x32xbf16>
    %3 = vector.extract_strided_slice %0 {offsets = [0, 0, 1, 0], sizes = [1, 1, 18, 32], strides = [1, 1, 1, 1]} : vector<1x2x19x128xbf16> to vector<1x1x18x32xbf16>
    %4 = vector.extract_strided_slice %0 {offsets = [0, 0, 0, 64], sizes = [1, 1, 18, 32], strides = [1, 1, 1, 1]} : vector<1x2x19x128xbf16> to vector<1x1x18x32xbf16>
    %5 = vector.extract_strided_slice %0 {offsets = [0, 0, 0, 96], sizes = [1, 1, 18, 32], strides = [1, 1, 1, 1]} : vector<1x2x19x128xbf16> to vector<1x1x18x32xbf16>
    %6 = vector.extract_strided_slice %0 {offsets = [0, 0, 1, 64], sizes = [1, 1, 18, 32], strides = [1, 1, 1, 1]} : vector<1x2x19x128xbf16> to vector<1x1x18x32xbf16>
    %7 = vector.extract_strided_slice %0 {offsets = [0, 1, 0, 0], sizes = [1, 1, 18, 32], strides = [1, 1, 1, 1]} : vector<1x2x19x128xbf16> to vector<1x1x18x32xbf16>
    %8 = vector.extract_strided_slice %0 {offsets = [0, 1, 0, 32], sizes = [1, 1, 18, 32], strides = [1, 1, 1, 1]} : vector<1x2x19x128xbf16> to vector<1x1x18x32xbf16>
    %9 = vector.extract_strided_slice %0 {offsets = [0, 1, 1, 0], sizes = [1, 1, 18, 32], strides = [1, 1, 1, 1]} : vector<1x2x19x128xbf16> to vector<1x1x18x32xbf16>
    %10 = tpu.concatenate %1, %2, %3, %4, %5, %6, %7, %8, %9 in 3 : vector<1x1x18x32xbf16>, vector<1x1x18x32xbf16>, vector<1x1x18x32xbf16>, vector<1x1x18x32xbf16>, vector<1x1x18x32xbf16>, vector<1x1x18x32xbf16>, vector<1x1x18x32xbf16>, vector<1x1x18x32xbf16>, vector<1x1x18x32xbf16> -> vector<1x1x18x288xbf16>
    %11 = vector.shape_cast %10 : vector<1x1x18x288xbf16> to vector<18x288xbf16>
    %c0_3 = arith.constant 0 : index
    %c0_4 = arith.constant 0 : index
    %12 = vector.load %arg2[%c0_3, %c0_4] : memref<288x32xbf16, #tpu.memory_space<vmem>>, vector<288x32xbf16>
    %cst = arith.constant dense<0.000000e+00> : vector<18x32xf32>
    %13 = tpu.matmul %11, %12, %cst {dimension_numbers = #tpu.dot_dimension_numbers<[1], [0], [0], [1], [0, 0, 1, 1], [], []>} : vector<18x288xbf16>, vector<288x32xbf16>, vector<18x32xf32> -> vector<18x32xf32>
    %c0_5 = arith.constant 0 : index
    %c0_6 = arith.constant 0 : index
    %14 = vector.load %arg3[%c0_5, %c0_6] : memref<1x32xf32, #tpu.memory_space<vmem>>, vector<1x32xf32>
    %15 = vector.broadcast %14 : vector<1x32xf32> to vector<18x32xf32>
    %16 = arith.addf %13, %15 : vector<18x32xf32>
    %cst_7 = arith.constant 0.000000e+00 : f32
    %17 = vector.broadcast %cst_7 : f32 to vector<18x32xf32>
    %18 = arith.cmpf oge, %16, %17 : vector<18x32xf32>
    %cst_8 = arith.constant 2.000000e-01 : f32
    %19 = vector.broadcast %cst_8 : f32 to vector<18x32xf32>
    %20 = arith.mulf %19, %16 : vector<18x32xf32>
    %21 = arith.select %18, %16, %20 : vector<18x32xi1>, vector<18x32xf32>
    %c0_9 = arith.constant 0 : index
    %c0_10 = arith.constant 0 : index
    %c0_11 = arith.constant 0 : index
    %22 = vector.load %arg4[%c0_9, %c0_10, %c0_11] : memref<2x18x32xf32, #tpu.memory_space<vmem>>, vector<1x18x32xf32>
    %23 = vector.shape_cast %22 : vector<1x18x32xf32> to vector<18x32xf32>
    %24 = arith.mulf %21, %23 : vector<18x32xf32>
    %cst_12 = arith.constant dense<0.000000e+00> : vector<18xf32>
    %25 = vector.multi_reduction <add>, %24, %cst_12 [1] : vector<18x32xf32> to vector<18xf32>
    %26 = vector.shape_cast %25 : vector<18xf32> to vector<18x1xf32>
    %cst_13 = arith.constant dense<0.000000e+00> : vector<1xf32>
    %27 = vector.multi_reduction <add>, %26, %cst_13 [0] : vector<18x1xf32> to vector<1xf32>
    %28 = vector.shape_cast %27 : vector<1xf32> to vector<1x1xf32>
    %c1 = arith.constant 1 : index
    %c0_14 = arith.constant 0 : index
    %c0_15 = arith.constant 0 : index
    %29 = vector.load %arg4[%c1, %c0_14, %c0_15] : memref<2x18x32xf32, #tpu.memory_space<vmem>>, vector<1x18x32xf32>
    %30 = vector.shape_cast %29 : vector<1x18x32xf32> to vector<18x32xf32>
    %31 = arith.mulf %21, %30 : vector<18x32xf32>
    %cst_16 = arith.constant dense<0.000000e+00> : vector<18xf32>
    %32 = vector.multi_reduction <add>, %31, %cst_16 [1] : vector<18x32xf32> to vector<18xf32>
    %33 = vector.shape_cast %32 : vector<18xf32> to vector<18x1xf32>
    %cst_17 = arith.constant dense<0.000000e+00> : vector<1xf32>
    %34 = vector.multi_reduction <add>, %33, %cst_17 [0] : vector<18x1xf32> to vector<1xf32>
    %35 = vector.shape_cast %34 : vector<1xf32> to vector<1x1xf32>
    %36 = tpu.concatenate %28, %35 in 1 : vector<1x1xf32>, vector<1x1xf32> -> vector<1x2xf32>
    %37 = vector.shape_cast %36 : vector<1x2xf32> to vector<1x1x2xf32>
    %c0_18 = arith.constant 0 : index
    %c0_19 = arith.constant 0 : index
    %c0_20 = arith.constant 0 : index
    %38 = vector.load %arg5[%c0_18, %c0_19, %c0_20] : memref<1x1x2xf32, #tpu.memory_space<vmem>>, vector<1x1x2xf32>
    tpu.vector_store %arg5[%c0_18, %c0_19, %c0_20], %37 {strides = array<i32>} : memref<1x1x2xf32, #tpu.memory_space<vmem>>, vector<1x1x2xf32>,
    return
  }
  func.func @transform_0(%arg0: i32) -> (i32, i32, i32, i32) {
    %c0_i32 = arith.constant 0 : i32
    %c0_i32_0 = arith.constant 0 : i32
    %c0_i32_1 = arith.constant 0 : i32
    %c0_i32_2 = arith.constant 0 : i32
    return %arg0, %c0_i32, %c0_i32_0, %c0_i32_1 : i32, i32, i32, i32
  }
  func.func @transform_1(%arg0: i32) -> (i32, i32) {
    %c0_i32 = arith.constant 0 : i32
    %c0_i32_0 = arith.constant 0 : i32
    %c0_i32_1 = arith.constant 0 : i32
    return %c0_i32, %c0_i32_0 : i32, i32
  }
  func.func @transform_2(%arg0: i32) -> (i32, i32) {
    %c0_i32 = arith.constant 0 : i32
    %c0_i32_0 = arith.constant 0 : i32
    %c0_i32_1 = arith.constant 0 : i32
    return %c0_i32, %c0_i32_0 : i32, i32
  }
  func.func @transform_3(%arg0: i32) -> (i32, i32, i32) {
    %c0_i32 = arith.constant 0 : i32
    %c0_i32_0 = arith.constant 0 : i32
    %c0_i32_1 = arith.constant 0 : i32
    %c0_i32_2 = arith.constant 0 : i32
    return %c0_i32, %c0_i32_0, %c0_i32_1 : i32, i32, i32
  }
  func.func @transform_4(%arg0: i32) -> (i32, i32, i32) {
    %c0_i32 = arith.constant 0 : i32
    %c0_i32_0 = arith.constant 0 : i32
    %c0_i32_1 = arith.constant 0 : i32
    return %arg0, %c0_i32, %c0_i32_0 : i32, i32, i32
  }
}

module attributes {stable_mosaic.version = 11 : i64} {
  func.func @_conv_bn_kernel(%arg0: i32, %arg1: memref<1x5x9x4xbf16, #tpu.memory_space<vmem>>, %arg2: memref<9x32xbf16, #tpu.memory_space<vmem>>, %arg3: memref<3x32xf32, #tpu.memory_space<vmem>>, %arg4: memref<1x4x8x32xbf16, #tpu.memory_space<vmem>>) attributes {dimension_semantics = [#tpu.dimension_semantics<parallel>], iteration_bounds = array<i64: 2>, scalar_prefetch = 0 : i64, scratch_operands = 0 : i64, tpu.core_type = #tpu.core_type<tc>, window_params = [{transform_indices = @transform_0, window_bounds = array<i64: 1, 5, 9, 4>}, {pipeline_mode = #tpu.pipeline_mode<synchronous>, transform_indices = @transform_1, window_bounds = array<i64: 9, 32>}, {pipeline_mode = #tpu.pipeline_mode<synchronous>, transform_indices = @transform_2, window_bounds = array<i64: 3, 32>}, {transform_indices = @transform_3, window_bounds = array<i64: 1, 4, 8, 32>}]} {
    %c0 = arith.constant 0 : index
    %c0_0 = arith.constant 0 : index
    %c0_1 = arith.constant 0 : index
    %c0_2 = arith.constant 0 : index
    %0 = vector.load %arg1[%c0, %c0_0, %c0_1, %c0_2] : memref<1x5x9x4xbf16, #tpu.memory_space<vmem>>, vector<1x5x9x4xbf16>
    %1 = vector.extract_strided_slice %0 {offsets = [0, 0, 0, 0], sizes = [1, 4, 8, 1], strides = [1, 1, 1, 1]} : vector<1x5x9x4xbf16> to vector<1x4x8x1xbf16>
    %2 = vector.extract_strided_slice %0 {offsets = [0, 0, 0, 1], sizes = [1, 4, 8, 1], strides = [1, 1, 1, 1]} : vector<1x5x9x4xbf16> to vector<1x4x8x1xbf16>
    %3 = vector.extract_strided_slice %0 {offsets = [0, 0, 1, 0], sizes = [1, 4, 8, 1], strides = [1, 1, 1, 1]} : vector<1x5x9x4xbf16> to vector<1x4x8x1xbf16>
    %4 = vector.extract_strided_slice %0 {offsets = [0, 0, 0, 2], sizes = [1, 4, 8, 1], strides = [1, 1, 1, 1]} : vector<1x5x9x4xbf16> to vector<1x4x8x1xbf16>
    %5 = vector.extract_strided_slice %0 {offsets = [0, 0, 0, 3], sizes = [1, 4, 8, 1], strides = [1, 1, 1, 1]} : vector<1x5x9x4xbf16> to vector<1x4x8x1xbf16>
    %6 = vector.extract_strided_slice %0 {offsets = [0, 0, 1, 2], sizes = [1, 4, 8, 1], strides = [1, 1, 1, 1]} : vector<1x5x9x4xbf16> to vector<1x4x8x1xbf16>
    %7 = vector.extract_strided_slice %0 {offsets = [0, 1, 0, 0], sizes = [1, 4, 8, 1], strides = [1, 1, 1, 1]} : vector<1x5x9x4xbf16> to vector<1x4x8x1xbf16>
    %8 = vector.extract_strided_slice %0 {offsets = [0, 1, 0, 1], sizes = [1, 4, 8, 1], strides = [1, 1, 1, 1]} : vector<1x5x9x4xbf16> to vector<1x4x8x1xbf16>
    %9 = vector.extract_strided_slice %0 {offsets = [0, 1, 1, 0], sizes = [1, 4, 8, 1], strides = [1, 1, 1, 1]} : vector<1x5x9x4xbf16> to vector<1x4x8x1xbf16>
    %10 = tpu.concatenate %1, %2, %3, %4, %5, %6, %7, %8, %9 in 3 : vector<1x4x8x1xbf16>, vector<1x4x8x1xbf16>, vector<1x4x8x1xbf16>, vector<1x4x8x1xbf16>, vector<1x4x8x1xbf16>, vector<1x4x8x1xbf16>, vector<1x4x8x1xbf16>, vector<1x4x8x1xbf16>, vector<1x4x8x1xbf16> -> vector<1x4x8x9xbf16>
    %11 = vector.shape_cast %10 : vector<1x4x8x9xbf16> to vector<32x9xbf16>
    %c0_3 = arith.constant 0 : index
    %c0_4 = arith.constant 0 : index
    %12 = vector.load %arg2[%c0_3, %c0_4] : memref<9x32xbf16, #tpu.memory_space<vmem>>, vector<9x32xbf16>
    %cst = arith.constant dense<0.000000e+00> : vector<32x32xf32>
    %13 = tpu.matmul %11, %12, %cst {dimension_numbers = #tpu.dot_dimension_numbers<[1], [0], [0], [1], [0, 0, 1, 1], [], []>} : vector<32x9xbf16>, vector<9x32xbf16>, vector<32x32xf32> -> vector<32x32xf32>
    %c0_5 = arith.constant 0 : index
    %c0_6 = arith.constant 0 : index
    %14 = vector.load %arg3[%c0_5, %c0_6] : memref<3x32xf32, #tpu.memory_space<vmem>>, vector<3x32xf32>
    %15 = vector.extract_strided_slice %14 {offsets = [0, 0], sizes = [1, 32], strides = [1, 1]} : vector<3x32xf32> to vector<1x32xf32>
    %16 = vector.broadcast %15 : vector<1x32xf32> to vector<32x32xf32>
    %17 = arith.addf %13, %16 : vector<32x32xf32>
    %cst_7 = arith.constant 0.000000e+00 : f32
    %18 = vector.broadcast %cst_7 : f32 to vector<32x32xf32>
    %19 = arith.cmpf oge, %17, %18 : vector<32x32xf32>
    %cst_8 = arith.constant 2.000000e-01 : f32
    %20 = vector.broadcast %cst_8 : f32 to vector<32x32xf32>
    %21 = arith.mulf %20, %17 : vector<32x32xf32>
    %22 = arith.select %19, %17, %21 : vector<32x32xi1>, vector<32x32xf32>
    %23 = vector.extract_strided_slice %14 {offsets = [1, 0], sizes = [1, 32], strides = [1, 1]} : vector<3x32xf32> to vector<1x32xf32>
    %24 = vector.broadcast %23 : vector<1x32xf32> to vector<32x32xf32>
    %25 = arith.mulf %22, %24 : vector<32x32xf32>
    %26 = vector.extract_strided_slice %14 {offsets = [2, 0], sizes = [1, 32], strides = [1, 1]} : vector<3x32xf32> to vector<1x32xf32>
    %27 = vector.broadcast %26 : vector<1x32xf32> to vector<32x32xf32>
    %28 = arith.addf %25, %27 : vector<32x32xf32>
    %29 = vector.shape_cast %28 : vector<32x32xf32> to vector<1x4x8x32xf32>
    %30 = arith.truncf %29 : vector<1x4x8x32xf32> to vector<1x4x8x32xbf16>
    %c0_9 = arith.constant 0 : index
    %c0_10 = arith.constant 0 : index
    %c0_11 = arith.constant 0 : index
    %c0_12 = arith.constant 0 : index
    %31 = vector.load %arg4[%c0_9, %c0_10, %c0_11, %c0_12] : memref<1x4x8x32xbf16, #tpu.memory_space<vmem>>, vector<1x4x8x32xbf16>
    tpu.vector_store %arg4[%c0_9, %c0_10, %c0_11, %c0_12], %30 {strides = array<i32>} : memref<1x4x8x32xbf16, #tpu.memory_space<vmem>>, vector<1x4x8x32xbf16>,
    return
  }
  func.func @transform_0(%arg0: i32) -> (i32, i32, i32, i32) {
    %c0_i32 = arith.constant 0 : i32
    %c0_i32_0 = arith.constant 0 : i32
    %c0_i32_1 = arith.constant 0 : i32
    %c0_i32_2 = arith.constant 0 : i32
    return %arg0, %c0_i32, %c0_i32_0, %c0_i32_1 : i32, i32, i32, i32
  }
  func.func @transform_1(%arg0: i32) -> (i32, i32) {
    %c0_i32 = arith.constant 0 : i32
    %c0_i32_0 = arith.constant 0 : i32
    %c0_i32_1 = arith.constant 0 : i32
    return %c0_i32, %c0_i32_0 : i32, i32
  }
  func.func @transform_2(%arg0: i32) -> (i32, i32) {
    %c0_i32 = arith.constant 0 : i32
    %c0_i32_0 = arith.constant 0 : i32
    %c0_i32_1 = arith.constant 0 : i32
    return %c0_i32, %c0_i32_0 : i32, i32
  }
  func.func @transform_3(%arg0: i32) -> (i32, i32, i32, i32) {
    %c0_i32 = arith.constant 0 : i32
    %c0_i32_0 = arith.constant 0 : i32
    %c0_i32_1 = arith.constant 0 : i32
    %c0_i32_2 = arith.constant 0 : i32
    return %arg0, %c0_i32, %c0_i32_0, %c0_i32_1 : i32, i32, i32, i32
  }
}

module attributes {stable_mosaic.version = 11 : i64} {
  func.func @_conv_bn_kernel(%arg0: i32, %arg1: memref<1x3x5x128xbf16, #tpu.memory_space<vmem>>, %arg2: memref<288x32xbf16, #tpu.memory_space<vmem>>, %arg3: memref<3x32xf32, #tpu.memory_space<vmem>>, %arg4: memref<1x2x4x32xbf16, #tpu.memory_space<vmem>>) attributes {dimension_semantics = [#tpu.dimension_semantics<parallel>], iteration_bounds = array<i64: 2>, scalar_prefetch = 0 : i64, scratch_operands = 0 : i64, tpu.core_type = #tpu.core_type<tc>, window_params = [{transform_indices = @transform_0, window_bounds = array<i64: 1, 3, 5, 128>}, {pipeline_mode = #tpu.pipeline_mode<synchronous>, transform_indices = @transform_1, window_bounds = array<i64: 288, 32>}, {pipeline_mode = #tpu.pipeline_mode<synchronous>, transform_indices = @transform_2, window_bounds = array<i64: 3, 32>}, {transform_indices = @transform_3, window_bounds = array<i64: 1, 2, 4, 32>}]} {
    %c0 = arith.constant 0 : index
    %c0_0 = arith.constant 0 : index
    %c0_1 = arith.constant 0 : index
    %c0_2 = arith.constant 0 : index
    %0 = vector.load %arg1[%c0, %c0_0, %c0_1, %c0_2] : memref<1x3x5x128xbf16, #tpu.memory_space<vmem>>, vector<1x3x5x128xbf16>
    %1 = vector.extract_strided_slice %0 {offsets = [0, 0, 0, 0], sizes = [1, 2, 4, 32], strides = [1, 1, 1, 1]} : vector<1x3x5x128xbf16> to vector<1x2x4x32xbf16>
    %2 = vector.extract_strided_slice %0 {offsets = [0, 0, 0, 32], sizes = [1, 2, 4, 32], strides = [1, 1, 1, 1]} : vector<1x3x5x128xbf16> to vector<1x2x4x32xbf16>
    %3 = vector.extract_strided_slice %0 {offsets = [0, 0, 1, 0], sizes = [1, 2, 4, 32], strides = [1, 1, 1, 1]} : vector<1x3x5x128xbf16> to vector<1x2x4x32xbf16>
    %4 = vector.extract_strided_slice %0 {offsets = [0, 0, 0, 64], sizes = [1, 2, 4, 32], strides = [1, 1, 1, 1]} : vector<1x3x5x128xbf16> to vector<1x2x4x32xbf16>
    %5 = vector.extract_strided_slice %0 {offsets = [0, 0, 0, 96], sizes = [1, 2, 4, 32], strides = [1, 1, 1, 1]} : vector<1x3x5x128xbf16> to vector<1x2x4x32xbf16>
    %6 = vector.extract_strided_slice %0 {offsets = [0, 0, 1, 64], sizes = [1, 2, 4, 32], strides = [1, 1, 1, 1]} : vector<1x3x5x128xbf16> to vector<1x2x4x32xbf16>
    %7 = vector.extract_strided_slice %0 {offsets = [0, 1, 0, 0], sizes = [1, 2, 4, 32], strides = [1, 1, 1, 1]} : vector<1x3x5x128xbf16> to vector<1x2x4x32xbf16>
    %8 = vector.extract_strided_slice %0 {offsets = [0, 1, 0, 32], sizes = [1, 2, 4, 32], strides = [1, 1, 1, 1]} : vector<1x3x5x128xbf16> to vector<1x2x4x32xbf16>
    %9 = vector.extract_strided_slice %0 {offsets = [0, 1, 1, 0], sizes = [1, 2, 4, 32], strides = [1, 1, 1, 1]} : vector<1x3x5x128xbf16> to vector<1x2x4x32xbf16>
    %10 = tpu.concatenate %1, %2, %3, %4, %5, %6, %7, %8, %9 in 3 : vector<1x2x4x32xbf16>, vector<1x2x4x32xbf16>, vector<1x2x4x32xbf16>, vector<1x2x4x32xbf16>, vector<1x2x4x32xbf16>, vector<1x2x4x32xbf16>, vector<1x2x4x32xbf16>, vector<1x2x4x32xbf16>, vector<1x2x4x32xbf16> -> vector<1x2x4x288xbf16>
    %11 = vector.shape_cast %10 : vector<1x2x4x288xbf16> to vector<8x288xbf16>
    %c0_3 = arith.constant 0 : index
    %c0_4 = arith.constant 0 : index
    %12 = vector.load %arg2[%c0_3, %c0_4] : memref<288x32xbf16, #tpu.memory_space<vmem>>, vector<288x32xbf16>
    %cst = arith.constant dense<0.000000e+00> : vector<8x32xf32>
    %13 = tpu.matmul %11, %12, %cst {dimension_numbers = #tpu.dot_dimension_numbers<[1], [0], [0], [1], [0, 0, 1, 1], [], []>} : vector<8x288xbf16>, vector<288x32xbf16>, vector<8x32xf32> -> vector<8x32xf32>
    %c0_5 = arith.constant 0 : index
    %c0_6 = arith.constant 0 : index
    %14 = vector.load %arg3[%c0_5, %c0_6] : memref<3x32xf32, #tpu.memory_space<vmem>>, vector<3x32xf32>
    %15 = vector.extract_strided_slice %14 {offsets = [0, 0], sizes = [1, 32], strides = [1, 1]} : vector<3x32xf32> to vector<1x32xf32>
    %16 = vector.broadcast %15 : vector<1x32xf32> to vector<8x32xf32>
    %17 = arith.addf %13, %16 : vector<8x32xf32>
    %cst_7 = arith.constant 0.000000e+00 : f32
    %18 = vector.broadcast %cst_7 : f32 to vector<8x32xf32>
    %19 = arith.cmpf oge, %17, %18 : vector<8x32xf32>
    %cst_8 = arith.constant 2.000000e-01 : f32
    %20 = vector.broadcast %cst_8 : f32 to vector<8x32xf32>
    %21 = arith.mulf %20, %17 : vector<8x32xf32>
    %22 = arith.select %19, %17, %21 : vector<8x32xi1>, vector<8x32xf32>
    %23 = vector.extract_strided_slice %14 {offsets = [1, 0], sizes = [1, 32], strides = [1, 1]} : vector<3x32xf32> to vector<1x32xf32>
    %24 = vector.broadcast %23 : vector<1x32xf32> to vector<8x32xf32>
    %25 = arith.mulf %22, %24 : vector<8x32xf32>
    %26 = vector.extract_strided_slice %14 {offsets = [2, 0], sizes = [1, 32], strides = [1, 1]} : vector<3x32xf32> to vector<1x32xf32>
    %27 = vector.broadcast %26 : vector<1x32xf32> to vector<8x32xf32>
    %28 = arith.addf %25, %27 : vector<8x32xf32>
    %29 = vector.shape_cast %28 : vector<8x32xf32> to vector<1x2x4x32xf32>
    %30 = arith.truncf %29 : vector<1x2x4x32xf32> to vector<1x2x4x32xbf16>
    %c0_9 = arith.constant 0 : index
    %c0_10 = arith.constant 0 : index
    %c0_11 = arith.constant 0 : index
    %c0_12 = arith.constant 0 : index
    %31 = vector.load %arg4[%c0_9, %c0_10, %c0_11, %c0_12] : memref<1x2x4x32xbf16, #tpu.memory_space<vmem>>, vector<1x2x4x32xbf16>
    tpu.vector_store %arg4[%c0_9, %c0_10, %c0_11, %c0_12], %30 {strides = array<i32>} : memref<1x2x4x32xbf16, #tpu.memory_space<vmem>>, vector<1x2x4x32xbf16>,
    return
  }
  func.func @transform_0(%arg0: i32) -> (i32, i32, i32, i32) {
    %c0_i32 = arith.constant 0 : i32
    %c0_i32_0 = arith.constant 0 : i32
    %c0_i32_1 = arith.constant 0 : i32
    %c0_i32_2 = arith.constant 0 : i32
    return %arg0, %c0_i32, %c0_i32_0, %c0_i32_1 : i32, i32, i32, i32
  }
  func.func @transform_1(%arg0: i32) -> (i32, i32) {
    %c0_i32 = arith.constant 0 : i32
    %c0_i32_0 = arith.constant 0 : i32
    %c0_i32_1 = arith.constant 0 : i32
    return %c0_i32, %c0_i32_0 : i32, i32
  }
  func.func @transform_2(%arg0: i32) -> (i32, i32) {
    %c0_i32 = arith.constant 0 : i32
    %c0_i32_0 = arith.constant 0 : i32
    %c0_i32_1 = arith.constant 0 : i32
    return %c0_i32, %c0_i32_0 : i32, i32
  }
  func.func @transform_3(%arg0: i32) -> (i32, i32, i32, i32) {
    %c0_i32 = arith.constant 0 : i32
    %c0_i32_0 = arith.constant 0 : i32
    %c0_i32_1 = arith.constant 0 : i32
    %c0_i32_2 = arith.constant 0 : i32
    return %arg0, %c0_i32, %c0_i32_0, %c0_i32_1 : i32, i32, i32, i32
  }
}

module attributes {stable_mosaic.version = 11 : i64} {
  func.func @_conv_adv_kernel(%arg0: i32, %arg1: memref<1x2x3x128xbf16, #tpu.memory_space<vmem>>, %arg2: memref<288x32xbf16, #tpu.memory_space<vmem>>, %arg3: memref<1x32xf32, #tpu.memory_space<vmem>>, %arg4: memref<2x2x32xf32, #tpu.memory_space<vmem>>, %arg5: memref<1x1x2xf32, #tpu.memory_space<vmem>>) attributes {dimension_semantics = [#tpu.dimension_semantics<parallel>], iteration_bounds = array<i64: 2>, scalar_prefetch = 0 : i64, scratch_operands = 0 : i64, tpu.core_type = #tpu.core_type<tc>, window_params = [{transform_indices = @transform_0, window_bounds = array<i64: 1, 2, 3, 128>}, {pipeline_mode = #tpu.pipeline_mode<synchronous>, transform_indices = @transform_1, window_bounds = array<i64: 288, 32>}, {pipeline_mode = #tpu.pipeline_mode<synchronous>, transform_indices = @transform_2, window_bounds = array<i64: 1, 32>}, {pipeline_mode = #tpu.pipeline_mode<synchronous>, transform_indices = @transform_3, window_bounds = array<i64: 2, 2, 32>}, {transform_indices = @transform_4, window_bounds = array<i64: 1, 1, 2>}]} {
    %c0 = arith.constant 0 : index
    %c0_0 = arith.constant 0 : index
    %c0_1 = arith.constant 0 : index
    %c0_2 = arith.constant 0 : index
    %0 = vector.load %arg1[%c0, %c0_0, %c0_1, %c0_2] : memref<1x2x3x128xbf16, #tpu.memory_space<vmem>>, vector<1x2x3x128xbf16>
    %1 = vector.extract_strided_slice %0 {offsets = [0, 0, 0, 0], sizes = [1, 1, 2, 32], strides = [1, 1, 1, 1]} : vector<1x2x3x128xbf16> to vector<1x1x2x32xbf16>
    %2 = vector.extract_strided_slice %0 {offsets = [0, 0, 0, 32], sizes = [1, 1, 2, 32], strides = [1, 1, 1, 1]} : vector<1x2x3x128xbf16> to vector<1x1x2x32xbf16>
    %3 = vector.extract_strided_slice %0 {offsets = [0, 0, 1, 0], sizes = [1, 1, 2, 32], strides = [1, 1, 1, 1]} : vector<1x2x3x128xbf16> to vector<1x1x2x32xbf16>
    %4 = vector.extract_strided_slice %0 {offsets = [0, 0, 0, 64], sizes = [1, 1, 2, 32], strides = [1, 1, 1, 1]} : vector<1x2x3x128xbf16> to vector<1x1x2x32xbf16>
    %5 = vector.extract_strided_slice %0 {offsets = [0, 0, 0, 96], sizes = [1, 1, 2, 32], strides = [1, 1, 1, 1]} : vector<1x2x3x128xbf16> to vector<1x1x2x32xbf16>
    %6 = vector.extract_strided_slice %0 {offsets = [0, 0, 1, 64], sizes = [1, 1, 2, 32], strides = [1, 1, 1, 1]} : vector<1x2x3x128xbf16> to vector<1x1x2x32xbf16>
    %7 = vector.extract_strided_slice %0 {offsets = [0, 1, 0, 0], sizes = [1, 1, 2, 32], strides = [1, 1, 1, 1]} : vector<1x2x3x128xbf16> to vector<1x1x2x32xbf16>
    %8 = vector.extract_strided_slice %0 {offsets = [0, 1, 0, 32], sizes = [1, 1, 2, 32], strides = [1, 1, 1, 1]} : vector<1x2x3x128xbf16> to vector<1x1x2x32xbf16>
    %9 = vector.extract_strided_slice %0 {offsets = [0, 1, 1, 0], sizes = [1, 1, 2, 32], strides = [1, 1, 1, 1]} : vector<1x2x3x128xbf16> to vector<1x1x2x32xbf16>
    %10 = tpu.concatenate %1, %2, %3, %4, %5, %6, %7, %8, %9 in 3 : vector<1x1x2x32xbf16>, vector<1x1x2x32xbf16>, vector<1x1x2x32xbf16>, vector<1x1x2x32xbf16>, vector<1x1x2x32xbf16>, vector<1x1x2x32xbf16>, vector<1x1x2x32xbf16>, vector<1x1x2x32xbf16>, vector<1x1x2x32xbf16> -> vector<1x1x2x288xbf16>
    %11 = vector.shape_cast %10 : vector<1x1x2x288xbf16> to vector<2x288xbf16>
    %c0_3 = arith.constant 0 : index
    %c0_4 = arith.constant 0 : index
    %12 = vector.load %arg2[%c0_3, %c0_4] : memref<288x32xbf16, #tpu.memory_space<vmem>>, vector<288x32xbf16>
    %cst = arith.constant dense<0.000000e+00> : vector<2x32xf32>
    %13 = tpu.matmul %11, %12, %cst {dimension_numbers = #tpu.dot_dimension_numbers<[1], [0], [0], [1], [0, 0, 1, 1], [], []>} : vector<2x288xbf16>, vector<288x32xbf16>, vector<2x32xf32> -> vector<2x32xf32>
    %c0_5 = arith.constant 0 : index
    %c0_6 = arith.constant 0 : index
    %14 = vector.load %arg3[%c0_5, %c0_6] : memref<1x32xf32, #tpu.memory_space<vmem>>, vector<1x32xf32>
    %15 = vector.broadcast %14 : vector<1x32xf32> to vector<2x32xf32>
    %16 = arith.addf %13, %15 : vector<2x32xf32>
    %cst_7 = arith.constant 0.000000e+00 : f32
    %17 = vector.broadcast %cst_7 : f32 to vector<2x32xf32>
    %18 = arith.cmpf oge, %16, %17 : vector<2x32xf32>
    %cst_8 = arith.constant 2.000000e-01 : f32
    %19 = vector.broadcast %cst_8 : f32 to vector<2x32xf32>
    %20 = arith.mulf %19, %16 : vector<2x32xf32>
    %21 = arith.select %18, %16, %20 : vector<2x32xi1>, vector<2x32xf32>
    %c0_9 = arith.constant 0 : index
    %c0_10 = arith.constant 0 : index
    %c0_11 = arith.constant 0 : index
    %22 = vector.load %arg4[%c0_9, %c0_10, %c0_11] : memref<2x2x32xf32, #tpu.memory_space<vmem>>, vector<1x2x32xf32>
    %23 = vector.shape_cast %22 : vector<1x2x32xf32> to vector<2x32xf32>
    %24 = arith.mulf %21, %23 : vector<2x32xf32>
    %cst_12 = arith.constant dense<0.000000e+00> : vector<2xf32>
    %25 = vector.multi_reduction <add>, %24, %cst_12 [1] : vector<2x32xf32> to vector<2xf32>
    %26 = vector.shape_cast %25 : vector<2xf32> to vector<2x1xf32>
    %cst_13 = arith.constant dense<0.000000e+00> : vector<1xf32>
    %27 = vector.multi_reduction <add>, %26, %cst_13 [0] : vector<2x1xf32> to vector<1xf32>
    %28 = vector.shape_cast %27 : vector<1xf32> to vector<1x1xf32>
    %c1 = arith.constant 1 : index
    %c0_14 = arith.constant 0 : index
    %c0_15 = arith.constant 0 : index
    %29 = vector.load %arg4[%c1, %c0_14, %c0_15] : memref<2x2x32xf32, #tpu.memory_space<vmem>>, vector<1x2x32xf32>
    %30 = vector.shape_cast %29 : vector<1x2x32xf32> to vector<2x32xf32>
    %31 = arith.mulf %21, %30 : vector<2x32xf32>
    %cst_16 = arith.constant dense<0.000000e+00> : vector<2xf32>
    %32 = vector.multi_reduction <add>, %31, %cst_16 [1] : vector<2x32xf32> to vector<2xf32>
    %33 = vector.shape_cast %32 : vector<2xf32> to vector<2x1xf32>
    %cst_17 = arith.constant dense<0.000000e+00> : vector<1xf32>
    %34 = vector.multi_reduction <add>, %33, %cst_17 [0] : vector<2x1xf32> to vector<1xf32>
    %35 = vector.shape_cast %34 : vector<1xf32> to vector<1x1xf32>
    %36 = tpu.concatenate %28, %35 in 1 : vector<1x1xf32>, vector<1x1xf32> -> vector<1x2xf32>
    %37 = vector.shape_cast %36 : vector<1x2xf32> to vector<1x1x2xf32>
    %c0_18 = arith.constant 0 : index
    %c0_19 = arith.constant 0 : index
    %c0_20 = arith.constant 0 : index
    %38 = vector.load %arg5[%c0_18, %c0_19, %c0_20] : memref<1x1x2xf32, #tpu.memory_space<vmem>>, vector<1x1x2xf32>
    tpu.vector_store %arg5[%c0_18, %c0_19, %c0_20], %37 {strides = array<i32>} : memref<1x1x2xf32, #tpu.memory_space<vmem>>, vector<1x1x2xf32>,
    return
  }
  func.func @transform_0(%arg0: i32) -> (i32, i32, i32, i32) {
    %c0_i32 = arith.constant 0 : i32
    %c0_i32_0 = arith.constant 0 : i32
    %c0_i32_1 = arith.constant 0 : i32
    %c0_i32_2 = arith.constant 0 : i32
    return %arg0, %c0_i32, %c0_i32_0, %c0_i32_1 : i32, i32, i32, i32
  }
  func.func @transform_1(%arg0: i32) -> (i32, i32) {
    %c0_i32 = arith.constant 0 : i32
    %c0_i32_0 = arith.constant 0 : i32
    %c0_i32_1 = arith.constant 0 : i32
    return %c0_i32, %c0_i32_0 : i32, i32
  }
  func.func @transform_2(%arg0: i32) -> (i32, i32) {
    %c0_i32 = arith.constant 0 : i32
    %c0_i32_0 = arith.constant 0 : i32
    %c0_i32_1 = arith.constant 0 : i32
    return %c0_i32, %c0_i32_0 : i32, i32
  }
  func.func @transform_3(%arg0: i32) -> (i32, i32, i32) {
    %c0_i32 = arith.constant 0 : i32
    %c0_i32_0 = arith.constant 0 : i32
    %c0_i32_1 = arith.constant 0 : i32
    %c0_i32_2 = arith.constant 0 : i32
    return %c0_i32, %c0_i32_0, %c0_i32_1 : i32, i32, i32
  }
  func.func @transform_4(%arg0: i32) -> (i32, i32, i32) {
    %c0_i32 = arith.constant 0 : i32
    %c0_i32_0 = arith.constant 0 : i32
    %c0_i32_1 = arith.constant 0 : i32
    return %arg0, %c0_i32, %c0_i32_0 : i32, i32, i32
  }
}

</mosaic_0001>

<llo_original>
// kernel: single_window_forward.8
$region0: #{single_window_forward.8}
  #allocation0 [shape = 'u32[]', space=smem, size = 0x4, offset = 0x4, fixed_abs, tag = 'smem constant byte address 0x4 - core index']
  #allocation1 [shape = 'u32[72,128]{1,0:T(1,128)}', space=vmem, size = 0x9000, scoped, tag = 'internal scratch']
  %s0 = inlined_call_operand.vmem [shape: bf16[4,5,73,4], index: 0, kind: input, shape index: {}]
  %s1 = inlined_call_operand.vmem [shape: bf16[9,32], index: 1, kind: input, shape index: {}]
  %s2 = inlined_call_operand.vmem [shape: f32[3,32], index: 2, kind: input, shape index: {}]
  %s3 = inlined_call_operand.vmem [shape: bf16[4,4,72,32], index: 3, kind: output, shape index: {}]
  %s4 = sld [smem:[#allocation0]]
  $region45: #{single_window_forward.8} parent=0
    _
  %s6 = ssub.s32 1, %s4
  %s7 = scalar_select 0, %s6, %s4
  loop: start=0, step=1, limit=6
  $region2: #{single_window_forward.8} parent=0 // loop_pre_header
    _
  $region3: #{single_window_forward.8} parent=0 // loop_header
    %s9 = sphi 0, %s13
    %p10 = scmp.ge.s32.totalorder %s9, 6
    %s19 = sphi 0, %s21
    %s22 = sphi 0, %s19
    %s23 = sphi 0, %s22
    %s39 = sphi 0, %s23
    %s43 = sphi 0, %s43
    %s45 = sphi 0, %s43
    %s46 = sphi 0, %s45
    %s60 = sphi 0, %s46
    %s64 = sphi 0, %s64
    %s66 = sphi 0, %s64
    %s67 = sphi 0, %s66
    %s81 = sphi 0, %s67
    %s87 = sphi 0, %s89
    %s90 = sphi 0, %s87
    %s91 = sphi 0, %s90
    %s107 = sphi 0, %s91
  $region4: #{single_window_forward.8} parent=0 // loop_header_branch
    %12 = sbr.rel (%p10) target = $region8
  $region5: #{single_window_forward.8} parent=0 // loop_body
    %s14 = ssub.s32 %s9, 1
    %s15 = ssub.s32 %s9, 2
    %s16 = sadd.s32 %s9, 1
    %s17 = ssub.s32 %s9, %s16
    %p18 = scmp.eq.s32.totalorder %s17, 0
    %s20 = sadd.s32 %s19, 1
    %s21 = scalar_select %p18, %s19, %s20
    %p24 = pneg %p18
    %p25 = scmp.eq.s32.totalorder %s9, 3
    %p26 = por %p24, %p25
    %p27 = scmp.ne.s32.totalorder %s19, %s22
    %p28 = scmp.eq.s32.totalorder %s9, 0
    %p29 = por %p27, %p28
    %p30 = scmp.ne.s32.totalorder %s19, %s22
    %p31 = scmp.eq.s32.totalorder %s14, 3
    %p32 = por %p30, %p31
    %p33 = scmp.ne.s32.totalorder %s22, %s23
    %p34 = scmp.eq.s32.totalorder %s14, 0
    %p35 = por %p33, %p34
    %p36 = scmp.ne.s32.totalorder %s22, %s23
    %p37 = scmp.eq.s32.totalorder %s15, 3
    %p38 = por %p36, %p37
    %p40 = scmp.ne.s32.totalorder %s23, %s39
    %p41 = scmp.eq.s32.totalorder %s15, 0
    %p42 = por %p40, %p41
    %s44 = sadd.s32 %s43, 1
    %p47 = scmp.eq.s32.totalorder %s9, 3
    %p48 = scmp.ne.s32.totalorder %s43, %s45
    %p49 = scmp.eq.s32.totalorder %s9, 0
    %p50 = por %p48, %p49
    %p51 = scmp.ne.s32.totalorder %s43, %s45
    %p52 = scmp.eq.s32.totalorder %s14, 3
    %p53 = por %p51, %p52
    %p54 = scmp.ne.s32.totalorder %s45, %s46
    %p55 = scmp.eq.s32.totalorder %s14, 0
    %p56 = por %p54, %p55
    %p57 = scmp.ne.s32.totalorder %s45, %s46
    %p58 = scmp.eq.s32.totalorder %s15, 3
    %p59 = por %p57, %p58
    %p61 = scmp.ne.s32.totalorder %s46, %s60
    %p62 = scmp.eq.s32.totalorder %s15, 0
    %p63 = por %p61, %p62
    %s65 = sadd.s32 %s64, 1
    %p68 = scmp.eq.s32.totalorder %s9, 3
    %p69 = scmp.ne.s32.totalorder %s64, %s66
    %p70 = scmp.eq.s32.totalorder %s9, 0
    %p71 = por %p69, %p70
    %p72 = scmp.ne.s32.totalorder %s64, %s66
    %p73 = scmp.eq.s32.totalorder %s14, 3
    %p74 = por %p72, %p73
    %p75 = scmp.ne.s32.totalorder %s66, %s67
    %p76 = scmp.eq.s32.totalorder %s14, 0
    %p77 = por %p75, %p76
    %p78 = scmp.ne.s32.totalorder %s66, %s67
    %p79 = scmp.eq.s32.totalorder %s15, 3
    %p80 = por %p78, %p79
    %p82 = scmp.ne.s32.totalorder %s67, %s81
    %p83 = scmp.eq.s32.totalorder %s15, 0
    %p84 = por %p82, %p83
    %s85 = ssub.s32 %s9, %s16
    %p86 = scmp.eq.s32.totalorder %s85, 0
    %s88 = sadd.s32 %s87, 1
    %s89 = scalar_select %p86, %s87, %s88
    %p92 = pneg %p86
    %p93 = scmp.eq.s32.totalorder %s9, 3
    %p94 = por %p92, %p93
    %p95 = scmp.ne.s32.totalorder %s87, %s90
    %p96 = scmp.eq.s32.totalorder %s9, 0
    %p97 = por %p95, %p96
    %p98 = scmp.ne.s32.totalorder %s87, %s90
    %p99 = scmp.eq.s32.totalorder %s14, 3
    %p100 = por %p98, %p99
    %p101 = scmp.ne.s32.totalorder %s90, %s91
    %p102 = scmp.eq.s32.totalorder %s14, 0
    %p103 = por %p101, %p102
    %p104 = scmp.ne.s32.totalorder %s90, %s91
    %p105 = scmp.eq.s32.totalorder %s15, 3
    %p106 = por %p104, %p105
    %p108 = scmp.ne.s32.totalorder %s91, %s107
    %p109 = scmp.eq.s32.totalorder %s15, 0
    %p110 = por %p108, %p109
    %p111 = scmp.le.s32.totalorder 1, %s9
    %p112 = scmp.lt.s32.totalorder %s9, 5
    %p113 = pnand %p111, %p112
    %p114 = pneg %p113
    // Predicated region
    $region9: #{single_window_forward.8} parent=5 // pred_check
      _
    $region10: #{single_window_forward.8} parent=5 // pred_check_branch
      %116 = sbr.rel (%p113) target = $region12
    $region11: #{single_window_forward.8} parent=5 // pred_region
      %s117 = ssub.s32 %s9, 1
      // Predicated region
      $region13: #{single_window_forward.8} parent=11 // pred_check
        %p118 = pneg %p56
      $region14: #{single_window_forward.8} parent=11 // pred_check_branch
        %120 = sbr.rel (%p118) target = $region16
      $region15: #{single_window_forward.8} parent=11 // pred_region
        _
      $region16: #{single_window_forward.8} parent=11 // pred_fallthru
        _
      // Predicated region
      $region17: #{single_window_forward.8} parent=11 // pred_check
        %p121 = pneg %p77
      $region18: #{single_window_forward.8} parent=11 // pred_check_branch
        %123 = sbr.rel (%p121) target = $region20
      $region19: #{single_window_forward.8} parent=11 // pred_region
        _
      $region20: #{single_window_forward.8} parent=11 // pred_fallthru
        _
    $region12: #{single_window_forward.8} parent=5 // pred_fallthru
      _
    %p124 = scmp.lt.s32.totalorder %s9, 4
    // Predicated region
    $region21: #{single_window_forward.8} parent=5 // pred_check
      %p125 = pneg %p124
    $region22: #{single_window_forward.8} parent=5 // pred_check_branch
      %127 = sbr.rel (%p125) target = $region24
    $region23: #{single_window_forward.8} parent=5 // pred_region
      // Predicated region
      $region25: #{single_window_forward.8} parent=23 // pred_check
        %p128 = pneg %p29
      $region26: #{single_window_forward.8} parent=23 // pred_check_branch
        %130 = sbr.rel (%p128) target = $region28
      $region27: #{single_window_forward.8} parent=23 // pred_region
        %p131 = scmp.lt.s32.totalorder %s9, 3
        %s132 = scalar_select %p131, %s9, 3
        %s133 = smul.addr %s132, 50
        %s134 = smul.addr %s133, 4
        %s135 = scalar_lea.vmem %s0, %s134
      $region28: #{single_window_forward.8} parent=23 // pred_fallthru
        _
    $region24: #{single_window_forward.8} parent=5 // pred_fallthru
      _
    %p136 = scmp.le.s32.totalorder 1, %s9
    %p137 = scmp.lt.s32.totalorder %s9, 5
    %p138 = pnand %p136, %p137
    %p139 = pneg %p138
    // Predicated region
    $region29: #{single_window_forward.8} parent=5 // pred_check
      _
    $region30: #{single_window_forward.8} parent=5 // pred_check_branch
      %141 = sbr.rel (%p138) target = $region32
    $region31: #{single_window_forward.8} parent=5 // pred_region
      %s142 = ssub.s32 %s9, 1
      %p143 = scmp.lt.s32.totalorder %s14, 3
      %s144 = scalar_select %p143, %s14, 3
      %s145 = smul.addr %s144, 50
      %s146 = smul.addr %s145, 4
      %s147 = scalar_lea.vmem %s0, %s146
      %p148 = pneg %p35
      %p149 = pneg %p32
      %p150 = pneg %p56
      %p151 = pneg %p53
      %p152 = pneg %p77
      %p153 = pneg %p74
      %p154 = pneg %p103
      %p155 = pneg %p100
      %p156 = scmp.lt.s32.totalorder %s14, 3
      %s157 = scalar_select %p156, %s14, 3
      %s158 = smul.addr %s157, 36
      %s159 = smul.addr %s158, 4
      %s160 = scalar_lea.vmem %s3, %s159
      %p161 = scmp.lt.s32.totalorder %s14, 3
      %s162 = scalar_select %p161, %s14, 3
      %s163 = smul.addr %s162, 50
      %s164 = smul.addr %s163, 4
      %s165 = scalar_lea.vmem %s0, %s164
      %p166 = scmp.lt.s32.totalorder %s14, 3
      %s167 = scalar_select %p166, %s14, 3
      %s168 = smul.addr %s167, 36
      %s169 = smul.addr %s168, 4
      %s170 = scalar_lea.vmem %s3, %s169
      %v172 = vld [vmem:[%s165] sm:$0xf]
      %v173 = vld [vmem:[%s165 + $0x4] sm:$0xf]
      %v174 = vld [vmem:[%s165 + $0x8] sm:$0xf]
      %v175 = vld [vmem:[%s165 + $0xc] sm:$0xf]
      %v176 = vld [vmem:[%s165 + $0x10] sm:$0xf]
      %v177 = vld [vmem:[%s165 + $0x14] sm:$0xf]
      %v178 = vld [vmem:[%s165 + $0x18] sm:$0xf]
      %v179 = vld [vmem:[%s165 + $0x1c] sm:$0xf]
      %v180 = vld [vmem:[%s165 + $0x20] sm:$0xf]
      %v181 = vld [vmem:[%s165 + $0x24] sm:$0x1]
      %v182 = vld [vmem:[%s165 + $0x28] sm:$0xf]
      %v183 = vld [vmem:[%s165 + $0x2c] sm:$0xf]
      %v184 = vld [vmem:[%s165 + $0x30] sm:$0xf]
      %v185 = vld [vmem:[%s165 + $0x34] sm:$0xf]
      %v186 = vld [vmem:[%s165 + $0x38] sm:$0xf]
      %v187 = vld [vmem:[%s165 + $0x3c] sm:$0xf]
      %v188 = vld [vmem:[%s165 + $0x40] sm:$0xf]
      %v189 = vld [vmem:[%s165 + $0x44] sm:$0xf]
      %v190 = vld [vmem:[%s165 + $0x48] sm:$0xf]
      %v191 = vld [vmem:[%s165 + $0x4c] sm:$0x1]
      %v192 = vld [vmem:[%s165 + $0x50] sm:$0xf]
      %v193 = vld [vmem:[%s165 + $0x54] sm:$0xf]
      %v194 = vld [vmem:[%s165 + $0x58] sm:$0xf]
      %v195 = vld [vmem:[%s165 + $0x5c] sm:$0xf]
      %v196 = vld [vmem:[%s165 + $0x60] sm:$0xf]
      %v197 = vld [vmem:[%s165 + $0x64] sm:$0xf]
      %v198 = vld [vmem:[%s165 + $0x68] sm:$0xf]
      %v199 = vld [vmem:[%s165 + $0x6c] sm:$0xf]
      %v200 = vld [vmem:[%s165 + $0x70] sm:$0xf]
      %v201 = vld [vmem:[%s165 + $0x74] sm:$0x1]
      %v202 = vld [vmem:[%s165 + $0x78] sm:$0xf]
      %v203 = vld [vmem:[%s165 + $0x7c] sm:$0xf]
      %v204 = vld [vmem:[%s165 + $0x80] sm:$0xf]
      %v205 = vld [vmem:[%s165 + $0x84] sm:$0xf]
      %v206 = vld [vmem:[%s165 + $0x88] sm:$0xf]
      %v207 = vld [vmem:[%s165 + $0x8c] sm:$0xf]
      %v208 = vld [vmem:[%s165 + $0x90] sm:$0xf]
      %v209 = vld [vmem:[%s165 + $0x94] sm:$0xf]
      %v210 = vld [vmem:[%s165 + $0x98] sm:$0xf]
      %v211 = vld [vmem:[%s165 + $0x9c] sm:$0x1]
      %v212 = vld [vmem:[%s165 + $0xa0] sm:$0xf]
      %v213 = vld [vmem:[%s165 + $0xa4] sm:$0xf]
      %v214 = vld [vmem:[%s165 + $0xa8] sm:$0xf]
      %v215 = vld [vmem:[%s165 + $0xac] sm:$0xf]
      %v216 = vld [vmem:[%s165 + $0xb0] sm:$0xf]
      %v217 = vld [vmem:[%s165 + $0xb4] sm:$0xf]
      %v218 = vld [vmem:[%s165 + $0xb8] sm:$0xf]
      %v219 = vld [vmem:[%s165 + $0xbc] sm:$0xf]
      %v220 = vld [vmem:[%s165 + $0xc0] sm:$0xf]
      %v221 = vld [vmem:[%s165 + $0xc4] sm:$0x1]
      %v258 = vunpack.c.l.b16 %v172
      %v259 = vunpack.c.l.b16 %v173
      %v260 = vunpack.c.l.b16 %v174
      %v261 = vunpack.c.l.b16 %v175
      %v262 = vunpack.c.l.b16 %v176
      %v263 = vunpack.c.l.b16 %v177
      %v264 = vunpack.c.l.b16 %v178
      %v265 = vunpack.c.l.b16 %v179
      %v266 = vunpack.c.l.b16 %v180
      %v267 = vunpack.c.l.b16 %v182
      %v268 = vunpack.c.l.b16 %v183
      %v269 = vunpack.c.l.b16 %v184
      %v270 = vunpack.c.l.b16 %v185
      %v271 = vunpack.c.l.b16 %v186
      %v272 = vunpack.c.l.b16 %v187
      %v273 = vunpack.c.l.b16 %v188
      %v274 = vunpack.c.l.b16 %v189
      %v275 = vunpack.c.l.b16 %v190
      %v276 = vunpack.c.l.b16 %v192
      %v277 = vunpack.c.l.b16 %v193
      %v278 = vunpack.c.l.b16 %v194
      %v279 = vunpack.c.l.b16 %v195
      %v280 = vunpack.c.l.b16 %v196
      %v281 = vunpack.c.l.b16 %v197
      %v282 = vunpack.c.l.b16 %v198
      %v283 = vunpack.c.l.b16 %v199
      %v284 = vunpack.c.l.b16 %v200
      %v285 = vunpack.c.l.b16 %v202
      %v286 = vunpack.c.l.b16 %v203
      %v287 = vunpack.c.l.b16 %v204
      %v288 = vunpack.c.l.b16 %v205
      %v289 = vunpack.c.l.b16 %v206
      %v290 = vunpack.c.l.b16 %v207
      %v291 = vunpack.c.l.b16 %v208
      %v292 = vunpack.c.l.b16 %v209
      %v293 = vunpack.c.l.b16 %v210
      %v294 = vpack.c.b16 %v259, %v258
      %v295 = vpack.c.b16 %v261, %v260
      %v296 = vpack.c.b16 %v263, %v262
      %v297 = vpack.c.b16 %v265, %v264
      %v298 = vpack.c.b16 %v266, %v266
      %v299 = vpack.c.b16 %v268, %v267
      %v300 = vpack.c.b16 %v270, %v269
      %v301 = vpack.c.b16 %v272, %v271
      %v302 = vpack.c.b16 %v274, %v273
      %v303 = vpack.c.b16 %v275, %v275
      %v304 = vpack.c.b16 %v277, %v276
      %v305 = vpack.c.b16 %v279, %v278
      %v306 = vpack.c.b16 %v281, %v280
      %v307 = vpack.c.b16 %v283, %v282
      %v308 = vpack.c.b16 %v284, %v284
      %v309 = vpack.c.b16 %v286, %v285
      %v310 = vpack.c.b16 %v288, %v287
      %v311 = vpack.c.b16 %v290, %v289
      %v312 = vpack.c.b16 %v292, %v291
      %v313 = vpack.c.b16 %v293, %v293
      %v318 = vunpack.c.l.b16 %v181
      %v319 = vunpack.c.l.b16 %v191
      %v320 = vunpack.c.l.b16 %v201
      %v321 = vunpack.c.l.b16 %v211
      %v322 = vpack.c.b16 %v318, %v266
      %v323 = vpack.c.b16 %v319, %v275
      %v324 = vpack.c.b16 %v320, %v284
      %v325 = vpack.c.b16 %v321, %v293
      %vm326 = vsmask.f32 7424
      %v328 = vshrl.u32 %v294, 16
      %v330 = vshll.u32 %v294, 16
      %v332 = vrot.slane %v330, 1
      %v333 = vor.u32 %v328, %v332
      %v335 = vshll.u32 %v295, 16
      %v337 = vrot.slane %v335, 1
      %v338 = vsel %vm326, %v333, %v337
      %v339 = vshrl.u32 %v295, 16
      %v341 = vor.u32 %v339, %v337
      %v343 = vshll.u32 %v296, 16
      %v345 = vrot.slane %v343, 1
      %v346 = vsel %vm326, %v341, %v345
      %v347 = vshrl.u32 %v296, 16
      %v349 = vor.u32 %v347, %v345
      %v351 = vshll.u32 %v297, 16
      %v353 = vrot.slane %v351, 1
      %v354 = vsel %vm326, %v349, %v353
      %v355 = vshrl.u32 %v297, 16
      %v357 = vor.u32 %v355, %v353
      %v359 = vshll.u32 %v322, 16
      %v361 = vrot.slane %v359, 1
      %v362 = vsel %vm326, %v357, %v361
      %v363 = vshrl.u32 %v322, 16
      %v365 = vor.u32 %v363, %v361
      %v367 = vshrl.u32 %v299, 16
      %v369 = vshll.u32 %v299, 16
      %v371 = vrot.slane %v369, 1
      %v372 = vor.u32 %v367, %v371
      %v374 = vshll.u32 %v300, 16
      %v376 = vrot.slane %v374, 1
      %v377 = vsel %vm326, %v372, %v376
      %v378 = vshrl.u32 %v300, 16
      %v380 = vor.u32 %v378, %v376
      %v382 = vshll.u32 %v301, 16
      %v384 = vrot.slane %v382, 1
      %v385 = vsel %vm326, %v380, %v384
      %v386 = vshrl.u32 %v301, 16
      %v388 = vor.u32 %v386, %v384
      %v390 = vshll.u32 %v302, 16
      %v392 = vrot.slane %v390, 1
      %v393 = vsel %vm326, %v388, %v392
      %v394 = vshrl.u32 %v302, 16
      %v396 = vor.u32 %v394, %v392
      %v398 = vshll.u32 %v323, 16
      %v400 = vrot.slane %v398, 1
      %v401 = vsel %vm326, %v396, %v400
      %v402 = vshrl.u32 %v323, 16
      %v404 = vor.u32 %v402, %v400
      %v406 = vshrl.u32 %v304, 16
      %v408 = vshll.u32 %v304, 16
      %v410 = vrot.slane %v408, 1
      %v411 = vor.u32 %v406, %v410
      %v413 = vshll.u32 %v305, 16
      %v415 = vrot.slane %v413, 1
      %v416 = vsel %vm326, %v411, %v415
      %v417 = vshrl.u32 %v305, 16
      %v419 = vor.u32 %v417, %v415
      %v421 = vshll.u32 %v306, 16
      %v423 = vrot.slane %v421, 1
      %v424 = vsel %vm326, %v419, %v423
      %v425 = vshrl.u32 %v306, 16
      %v427 = vor.u32 %v425, %v423
      %v429 = vshll.u32 %v307, 16
      %v431 = vrot.slane %v429, 1
      %v432 = vsel %vm326, %v427, %v431
      %v433 = vshrl.u32 %v307, 16
      %v435 = vor.u32 %v433, %v431
      %v437 = vshll.u32 %v324, 16
      %v439 = vrot.slane %v437, 1
      %v440 = vsel %vm326, %v435, %v439
      %v441 = vshrl.u32 %v324, 16
      %v443 = vor.u32 %v441, %v439
      %v445 = vshrl.u32 %v309, 16
      %v447 = vshll.u32 %v309, 16
      %v449 = vrot.slane %v447, 1
      %v450 = vor.u32 %v445, %v449
      %v452 = vshll.u32 %v310, 16
      %v454 = vrot.slane %v452, 1
      %v455 = vsel %vm326, %v450, %v454
      %v456 = vshrl.u32 %v310, 16
      %v458 = vor.u32 %v456, %v454
      %v460 = vshll.u32 %v311, 16
      %v462 = vrot.slane %v460, 1
      %v463 = vsel %vm326, %v458, %v462
      %v464 = vshrl.u32 %v311, 16
      %v466 = vor.u32 %v464, %v462
      %v468 = vshll.u32 %v312, 16
      %v470 = vrot.slane %v468, 1
      %v471 = vsel %vm326, %v466, %v470
      %v472 = vshrl.u32 %v312, 16
      %v474 = vor.u32 %v472, %v470
      %v476 = vshll.u32 %v325, 16
      %v478 = vrot.slane %v476, 1
      %v479 = vsel %vm326, %v474, %v478
      %v480 = vshrl.u32 %v325, 16
      %v482 = vor.u32 %v480, %v478
      %483 = vrot.lane.b32.xlu0 %v338, 2
      %v484 = vpop.permute.xlu0 %483
      %485 = vrot.lane.b32.xlu0 %v346, 2
      %v486 = vpop.permute.xlu0 %485
      %487 = vrot.lane.b32.xlu0 %v354, 2
      %v488 = vpop.permute.xlu0 %487
      %489 = vrot.lane.b32.xlu0 %v362, 2
      %v490 = vpop.permute.xlu0 %489
      %491 = vrot.lane.b32.xlu0 %v365, 2
      %v492 = vpop.permute.xlu0 %491
      %493 = vrot.lane.b32.xlu0 %v377, 2
      %v494 = vpop.permute.xlu0 %493
      %495 = vrot.lane.b32.xlu0 %v385, 2
      %v496 = vpop.permute.xlu0 %495
      %497 = vrot.lane.b32.xlu0 %v393, 2
      %v498 = vpop.permute.xlu0 %497
      %499 = vrot.lane.b32.xlu0 %v401, 2
      %v500 = vpop.permute.xlu0 %499
      %501 = vrot.lane.b32.xlu0 %v404, 2
      %v502 = vpop.permute.xlu0 %501
      %503 = vrot.lane.b32.xlu0 %v416, 2
      %v504 = vpop.permute.xlu0 %503
      %505 = vrot.lane.b32.xlu0 %v424, 2
      %v506 = vpop.permute.xlu0 %505
      %507 = vrot.lane.b32.xlu0 %v432, 2
      %v508 = vpop.permute.xlu0 %507
      %509 = vrot.lane.b32.xlu0 %v440, 2
      %v510 = vpop.permute.xlu0 %509
      %511 = vrot.lane.b32.xlu0 %v443, 2
      %v512 = vpop.permute.xlu0 %511
      %513 = vrot.lane.b32.xlu0 %v455, 2
      %v514 = vpop.permute.xlu0 %513
      %515 = vrot.lane.b32.xlu0 %v463, 2
      %v516 = vpop.permute.xlu0 %515
      %517 = vrot.lane.b32.xlu0 %v471, 2
      %v518 = vpop.permute.xlu0 %517
      %519 = vrot.lane.b32.xlu0 %v479, 2
      %v520 = vpop.permute.xlu0 %519
      %521 = vrot.lane.b32.xlu0 %v482, 2
      %v522 = vpop.permute.xlu0 %521
      %523 = vrot.lane.b32.xlu0 %v294, 1
      %v524 = vpop.permute.xlu0 %523
      %525 = vrot.lane.b32.xlu0 %v295, 1
      %v526 = vpop.permute.xlu0 %525
      %527 = vrot.lane.b32.xlu0 %v296, 1
      %v528 = vpop.permute.xlu0 %527
      %529 = vrot.lane.b32.xlu0 %v297, 1
      %v530 = vpop.permute.xlu0 %529
      %531 = vrot.lane.b32.xlu0 %v298, 1
      %v532 = vpop.permute.xlu0 %531
      %533 = vrot.lane.b32.xlu0 %v299, 1
      %v534 = vpop.permute.xlu0 %533
      %535 = vrot.lane.b32.xlu0 %v300, 1
      %v536 = vpop.permute.xlu0 %535
      %537 = vrot.lane.b32.xlu0 %v301, 1
      %v538 = vpop.permute.xlu0 %537
      %539 = vrot.lane.b32.xlu0 %v302, 1
      %v540 = vpop.permute.xlu0 %539
      %541 = vrot.lane.b32.xlu0 %v303, 1
      %v542 = vpop.permute.xlu0 %541
      %543 = vrot.lane.b32.xlu0 %v304, 1
      %v544 = vpop.permute.xlu0 %543
      %545 = vrot.lane.b32.xlu0 %v305, 1
      %v546 = vpop.permute.xlu0 %545
      %547 = vrot.lane.b32.xlu0 %v306, 1
      %v548 = vpop.permute.xlu0 %547
      %549 = vrot.lane.b32.xlu0 %v307, 1
      %v550 = vpop.permute.xlu0 %549
      %551 = vrot.lane.b32.xlu0 %v308, 1
      %v552 = vpop.permute.xlu0 %551
      %553 = vrot.lane.b32.xlu0 %v309, 1
      %v554 = vpop.permute.xlu0 %553
      %555 = vrot.lane.b32.xlu0 %v310, 1
      %v556 = vpop.permute.xlu0 %555
      %557 = vrot.lane.b32.xlu0 %v311, 1
      %v558 = vpop.permute.xlu0 %557
      %559 = vrot.lane.b32.xlu0 %v312, 1
      %v560 = vpop.permute.xlu0 %559
      %561 = vrot.lane.b32.xlu0 %v313, 1
      %v562 = vpop.permute.xlu0 %561
      %563 = vrot.lane.b32.xlu0 %v338, 3
      %v564 = vpop.permute.xlu0 %563
      %565 = vrot.lane.b32.xlu0 %v346, 3
      %v566 = vpop.permute.xlu0 %565
      %567 = vrot.lane.b32.xlu0 %v354, 3
      %v568 = vpop.permute.xlu0 %567
      %569 = vrot.lane.b32.xlu0 %v362, 3
      %v570 = vpop.permute.xlu0 %569
      %571 = vrot.lane.b32.xlu0 %v365, 3
      %v572 = vpop.permute.xlu0 %571
      %573 = vrot.lane.b32.xlu0 %v377, 3
      %v574 = vpop.permute.xlu0 %573
      %575 = vrot.lane.b32.xlu0 %v385, 3
      %v576 = vpop.permute.xlu0 %575
      %577 = vrot.lane.b32.xlu0 %v393, 3
      %v578 = vpop.permute.xlu0 %577
      %579 = vrot.lane.b32.xlu0 %v401, 3
      %v580 = vpop.permute.xlu0 %579
      %581 = vrot.lane.b32.xlu0 %v404, 3
      %v582 = vpop.permute.xlu0 %581
      %583 = vrot.lane.b32.xlu0 %v416, 3
      %v584 = vpop.permute.xlu0 %583
      %585 = vrot.lane.b32.xlu0 %v424, 3
      %v586 = vpop.permute.xlu0 %585
      %587 = vrot.lane.b32.xlu0 %v432, 3
      %v588 = vpop.permute.xlu0 %587
      %589 = vrot.lane.b32.xlu0 %v440, 3
      %v590 = vpop.permute.xlu0 %589
      %591 = vrot.lane.b32.xlu0 %v443, 3
      %v592 = vpop.permute.xlu0 %591
      %593 = vrot.lane.b32.xlu0 %v455, 3
      %v594 = vpop.permute.xlu0 %593
      %595 = vrot.lane.b32.xlu0 %v463, 3
      %v596 = vpop.permute.xlu0 %595
      %597 = vrot.lane.b32.xlu0 %v471, 3
      %v598 = vpop.permute.xlu0 %597
      %599 = vrot.lane.b32.xlu0 %v479, 3
      %v600 = vpop.permute.xlu0 %599
      %601 = vrot.lane.b32.xlu0 %v482, 3
      %v602 = vpop.permute.xlu0 %601
      %v612 = vunpack.c.l.b16 %v212
      %v613 = vunpack.c.l.b16 %v213
      %v614 = vunpack.c.l.b16 %v214
      %v615 = vunpack.c.l.b16 %v215
      %v616 = vunpack.c.l.b16 %v216
      %v617 = vunpack.c.l.b16 %v217
      %v618 = vunpack.c.l.b16 %v218
      %v619 = vunpack.c.l.b16 %v219
      %v620 = vunpack.c.l.b16 %v220
      %v621 = vpack.c.b16 %v613, %v612
      %v622 = vpack.c.b16 %v615, %v614
      %v623 = vpack.c.b16 %v617, %v616
      %v624 = vpack.c.b16 %v619, %v618
      %v625 = vpack.c.b16 %v620, %v620
      %626 = vrot.lane.b32.xlu0 %v299, 6
      %v627 = vpop.permute.xlu0 %626
      %628 = vrot.lane.b32.xlu0 %v300, 6
      %v629 = vpop.permute.xlu0 %628
      %630 = vrot.lane.b32.xlu0 %v301, 6
      %v631 = vpop.permute.xlu0 %630
      %632 = vrot.lane.b32.xlu0 %v302, 6
      %v633 = vpop.permute.xlu0 %632
      %634 = vrot.lane.b32.xlu0 %v303, 6
      %v635 = vpop.permute.xlu0 %634
      %636 = vrot.lane.b32.xlu0 %v304, 6
      %v637 = vpop.permute.xlu0 %636
      %638 = vrot.lane.b32.xlu0 %v305, 6
      %v639 = vpop.permute.xlu0 %638
      %640 = vrot.lane.b32.xlu0 %v306, 6
      %v641 = vpop.permute.xlu0 %640
      %642 = vrot.lane.b32.xlu0 %v307, 6
      %v643 = vpop.permute.xlu0 %642
      %644 = vrot.lane.b32.xlu0 %v308, 6
      %v645 = vpop.permute.xlu0 %644
      %646 = vrot.lane.b32.xlu0 %v309, 6
      %v647 = vpop.permute.xlu0 %646
      %648 = vrot.lane.b32.xlu0 %v310, 6
      %v649 = vpop.permute.xlu0 %648
      %650 = vrot.lane.b32.xlu0 %v311, 6
      %v651 = vpop.permute.xlu0 %650
      %652 = vrot.lane.b32.xlu0 %v312, 6
      %v653 = vpop.permute.xlu0 %652
      %654 = vrot.lane.b32.xlu0 %v313, 6
      %v655 = vpop.permute.xlu0 %654
      %656 = vrot.lane.b32.xlu0 %v621, 6
      %v657 = vpop.permute.xlu0 %656
      %658 = vrot.lane.b32.xlu0 %v622, 6
      %v659 = vpop.permute.xlu0 %658
      %660 = vrot.lane.b32.xlu0 %v623, 6
      %v661 = vpop.permute.xlu0 %660
      %662 = vrot.lane.b32.xlu0 %v624, 6
      %v663 = vpop.permute.xlu0 %662
      %664 = vrot.lane.b32.xlu0 %v625, 6
      %v665 = vpop.permute.xlu0 %664
      %v667 = vunpack.c.l.b16 %v221
      %v668 = vpack.c.b16 %v667, %v620
      %v670 = vshrl.u32 %v621, 16
      %v672 = vshll.u32 %v621, 16
      %v674 = vrot.slane %v672, 1
      %v675 = vor.u32 %v670, %v674
      %v677 = vshll.u32 %v622, 16
      %v679 = vrot.slane %v677, 1
      %v680 = vsel %vm326, %v675, %v679
      %v681 = vshrl.u32 %v622, 16
      %v683 = vor.u32 %v681, %v679
      %v685 = vshll.u32 %v623, 16
      %v687 = vrot.slane %v685, 1
      %v688 = vsel %vm326, %v683, %v687
      %v689 = vshrl.u32 %v623, 16
      %v691 = vor.u32 %v689, %v687
      %v693 = vshll.u32 %v624, 16
      %v695 = vrot.slane %v693, 1
      %v696 = vsel %vm326, %v691, %v695
      %v697 = vshrl.u32 %v624, 16
      %v699 = vor.u32 %v697, %v695
      %v701 = vshll.u32 %v668, 16
      %v703 = vrot.slane %v701, 1
      %v704 = vsel %vm326, %v699, %v703
      %v705 = vshrl.u32 %v668, 16
      %v707 = vor.u32 %v705, %v703
      %708 = vrot.lane.b32.xlu0 %v377, 8
      %v709 = vpop.permute.xlu0 %708
      %710 = vrot.lane.b32.xlu0 %v385, 8
      %v711 = vpop.permute.xlu0 %710
      %712 = vrot.lane.b32.xlu0 %v393, 8
      %v713 = vpop.permute.xlu0 %712
      %714 = vrot.lane.b32.xlu0 %v401, 8
      %v715 = vpop.permute.xlu0 %714
      %716 = vrot.lane.b32.xlu0 %v404, 8
      %v717 = vpop.permute.xlu0 %716
      %718 = vrot.lane.b32.xlu0 %v416, 8
      %v719 = vpop.permute.xlu0 %718
      %720 = vrot.lane.b32.xlu0 %v424, 8
      %v721 = vpop.permute.xlu0 %720
      %722 = vrot.lane.b32.xlu0 %v432, 8
      %v723 = vpop.permute.xlu0 %722
      %724 = vrot.lane.b32.xlu0 %v440, 8
      %v725 = vpop.permute.xlu0 %724
      %726 = vrot.lane.b32.xlu0 %v443, 8
      %v727 = vpop.permute.xlu0 %726
      %728 = vrot.lane.b32.xlu0 %v455, 8
      %v729 = vpop.permute.xlu0 %728
      %730 = vrot.lane.b32.xlu0 %v463, 8
      %v731 = vpop.permute.xlu0 %730
      %732 = vrot.lane.b32.xlu0 %v471, 8
      %v733 = vpop.permute.xlu0 %732
      %734 = vrot.lane.b32.xlu0 %v479, 8
      %v735 = vpop.permute.xlu0 %734
      %736 = vrot.lane.b32.xlu0 %v482, 8
      %v737 = vpop.permute.xlu0 %736
      %738 = vrot.lane.b32.xlu0 %v680, 8
      %v739 = vpop.permute.xlu0 %738
      %740 = vrot.lane.b32.xlu0 %v688, 8
      %v741 = vpop.permute.xlu0 %740
      %742 = vrot.lane.b32.xlu0 %v696, 8
      %v743 = vpop.permute.xlu0 %742
      %744 = vrot.lane.b32.xlu0 %v704, 8
      %v745 = vpop.permute.xlu0 %744
      %746 = vrot.lane.b32.xlu0 %v707, 8
      %v747 = vpop.permute.xlu0 %746
      %vm752 = vcmask 15360
      %v754 = vsel %vm752, %v294, %v484
      %v756 = vsel %vm752, %v295, %v486
      %v758 = vsel %vm752, %v296, %v488
      %v760 = vsel %vm752, %v297, %v490
      %v762 = vsel %vm752, %v298, %v492
      %v764 = vsel %vm752, %v299, %v494
      %v766 = vsel %vm752, %v300, %v496
      %v768 = vsel %vm752, %v301, %v498
      %v770 = vsel %vm752, %v302, %v500
      %v772 = vsel %vm752, %v303, %v502
      %v774 = vsel %vm752, %v304, %v504
      %v776 = vsel %vm752, %v305, %v506
      %v778 = vsel %vm752, %v306, %v508
      %v780 = vsel %vm752, %v307, %v510
      %v782 = vsel %vm752, %v308, %v512
      %v784 = vsel %vm752, %v309, %v514
      %v786 = vsel %vm752, %v310, %v516
      %v788 = vsel %vm752, %v311, %v518
      %v790 = vsel %vm752, %v312, %v520
      %v792 = vsel %vm752, %v313, %v522
      %vm793 = vcmask 23552
      %v795 = vsel %vm793, %v754, %v524
      %v797 = vsel %vm793, %v756, %v526
      %v799 = vsel %vm793, %v758, %v528
      %v801 = vsel %vm793, %v760, %v530
      %v803 = vsel %vm793, %v762, %v532
      %v805 = vsel %vm793, %v764, %v534
      %v807 = vsel %vm793, %v766, %v536
      %v809 = vsel %vm793, %v768, %v538
      %v811 = vsel %vm793, %v770, %v540
      %v813 = vsel %vm793, %v772, %v542
      %v815 = vsel %vm793, %v774, %v544
      %v817 = vsel %vm793, %v776, %v546
      %v819 = vsel %vm793, %v778, %v548
      %v821 = vsel %vm793, %v780, %v550
      %v823 = vsel %vm793, %v782, %v552
      %v825 = vsel %vm793, %v784, %v554
      %v827 = vsel %vm793, %v786, %v556
      %v829 = vsel %vm793, %v788, %v558
      %v831 = vsel %vm793, %v790, %v560
      %v833 = vsel %vm793, %v792, %v562
      %vm834 = vcmask 31744
      %v835 = vsel %vm834, %v795, %v524
      %v836 = vsel %vm834, %v797, %v526
      %v837 = vsel %vm834, %v799, %v528
      %v838 = vsel %vm834, %v801, %v530
      %v839 = vsel %vm834, %v803, %v532
      %v840 = vsel %vm834, %v805, %v534
      %v841 = vsel %vm834, %v807, %v536
      %v842 = vsel %vm834, %v809, %v538
      %v843 = vsel %vm834, %v811, %v540
      %v844 = vsel %vm834, %v813, %v542
      %v845 = vsel %vm834, %v815, %v544
      %v846 = vsel %vm834, %v817, %v546
      %v847 = vsel %vm834, %v819, %v548
      %v848 = vsel %vm834, %v821, %v550
      %v849 = vsel %vm834, %v823, %v552
      %v850 = vsel %vm834, %v825, %v554
      %v851 = vsel %vm834, %v827, %v556
      %v852 = vsel %vm834, %v829, %v558
      %v853 = vsel %vm834, %v831, %v560
      %v854 = vsel %vm834, %v833, %v562
      %vm855 = vcmask 39936
      %v857 = vsel %vm855, %v835, %v564
      %v859 = vsel %vm855, %v836, %v566
      %v861 = vsel %vm855, %v837, %v568
      %v863 = vsel %vm855, %v838, %v570
      %v865 = vsel %vm855, %v839, %v572
      %v867 = vsel %vm855, %v840, %v574
      %v869 = vsel %vm855, %v841, %v576
      %v871 = vsel %vm855, %v842, %v578
      %v873 = vsel %vm855, %v843, %v580
      %v875 = vsel %vm855, %v844, %v582
      %v877 = vsel %vm855, %v845, %v584
      %v879 = vsel %vm855, %v846, %v586
      %v881 = vsel %vm855, %v847, %v588
      %v883 = vsel %vm855, %v848, %v590
      %v885 = vsel %vm855, %v849, %v592
      %v887 = vsel %vm855, %v850, %v594
      %v889 = vsel %vm855, %v851, %v596
      %v891 = vsel %vm855, %v852, %v598
      %v893 = vsel %vm855, %v853, %v600
      %v895 = vsel %vm855, %v854, %v602
      %vm896 = vcmask 48128
      %v898 = vsel %vm896, %v857, %v627
      %v900 = vsel %vm896, %v859, %v629
      %v902 = vsel %vm896, %v861, %v631
      %v904 = vsel %vm896, %v863, %v633
      %v906 = vsel %vm896, %v865, %v635
      %v908 = vsel %vm896, %v867, %v637
      %v910 = vsel %vm896, %v869, %v639
      %v912 = vsel %vm896, %v871, %v641
      %v914 = vsel %vm896, %v873, %v643
      %v916 = vsel %vm896, %v875, %v645
      %v918 = vsel %vm896, %v877, %v647
      %v920 = vsel %vm896, %v879, %v649
      %v922 = vsel %vm896, %v881, %v651
      %v924 = vsel %vm896, %v883, %v653
      %v926 = vsel %vm896, %v885, %v655
      %v928 = vsel %vm896, %v887, %v657
      %v930 = vsel %vm896, %v889, %v659
      %v932 = vsel %vm896, %v891, %v661
      %v934 = vsel %vm896, %v893, %v663
      %v936 = vsel %vm896, %v895, %v665
      %vm937 = vcmask 56320
      %v938 = vsel %vm937, %v898, %v627
      %v939 = vsel %vm937, %v900, %v629
      %v940 = vsel %vm937, %v902, %v631
      %v941 = vsel %vm937, %v904, %v633
      %v942 = vsel %vm937, %v906, %v635
      %v943 = vsel %vm937, %v908, %v637
      %v944 = vsel %vm937, %v910, %v639
      %v945 = vsel %vm937, %v912, %v641
      %v946 = vsel %vm937, %v914, %v643
      %v947 = vsel %vm937, %v916, %v645
      %v948 = vsel %vm937, %v918, %v647
      %v949 = vsel %vm937, %v920, %v649
      %v950 = vsel %vm937, %v922, %v651
      %v951 = vsel %vm937, %v924, %v653
      %v952 = vsel %vm937, %v926, %v655
      %v953 = vsel %vm937, %v928, %v657
      %v954 = vsel %vm937, %v930, %v659
      %v955 = vsel %vm937, %v932, %v661
      %v956 = vsel %vm937, %v934, %v663
      %v957 = vsel %vm937, %v936, %v665
      %vm958 = vcmask 64512
      %v960 = vsel %vm958, %v938, %v709
      %v962 = vsel %vm958, %v939, %v711
      %v964 = vsel %vm958, %v940, %v713
      %v966 = vsel %vm958, %v941, %v715
      %v968 = vsel %vm958, %v942, %v717
      %v970 = vsel %vm958, %v943, %v719
      %v972 = vsel %vm958, %v944, %v721
      %v974 = vsel %vm958, %v945, %v723
      %v976 = vsel %vm958, %v946, %v725
      %v978 = vsel %vm958, %v947, %v727
      %v980 = vsel %vm958, %v948, %v729
      %v982 = vsel %vm958, %v949, %v731
      %v984 = vsel %vm958, %v950, %v733
      %v986 = vsel %vm958, %v951, %v735
      %v988 = vsel %vm958, %v952, %v737
      %v990 = vsel %vm958, %v953, %v739
      %v992 = vsel %vm958, %v954, %v741
      %v994 = vsel %vm958, %v955, %v743
      %v996 = vsel %vm958, %v956, %v745
      %v998 = vsel %vm958, %v957, %v747
      %v1019 = vunpack.c.l.b16 %v960
      %v1020 = vunpack.c.h.b16 %v960
      %v1021 = vunpack.c.l.b16 %v962
      %v1022 = vunpack.c.h.b16 %v962
      %v1023 = vunpack.c.l.b16 %v964
      %v1024 = vunpack.c.h.b16 %v964
      %v1025 = vunpack.c.l.b16 %v966
      %v1026 = vunpack.c.h.b16 %v966
      %v1027 = vunpack.c.l.b16 %v968
      %v1028 = vunpack.c.l.b16 %v970
      %v1029 = vunpack.c.h.b16 %v970
      %v1030 = vunpack.c.l.b16 %v972
      %v1031 = vunpack.c.h.b16 %v972
      %v1032 = vunpack.c.l.b16 %v974
      %v1033 = vunpack.c.h.b16 %v974
      %v1034 = vunpack.c.l.b16 %v976
      %v1035 = vunpack.c.h.b16 %v976
      %v1036 = vunpack.c.l.b16 %v978
      %v1037 = vunpack.c.l.b16 %v980
      %v1038 = vunpack.c.h.b16 %v980
      %v1039 = vunpack.c.l.b16 %v982
      %v1040 = vunpack.c.h.b16 %v982
      %v1041 = vunpack.c.l.b16 %v984
      %v1042 = vunpack.c.h.b16 %v984
      %v1043 = vunpack.c.l.b16 %v986
      %v1044 = vunpack.c.h.b16 %v986
      %v1045 = vunpack.c.l.b16 %v988
      %v1046 = vunpack.c.l.b16 %v990
      %v1047 = vunpack.c.h.b16 %v990
      %v1048 = vunpack.c.l.b16 %v992
      %v1049 = vunpack.c.h.b16 %v992
      %v1050 = vunpack.c.l.b16 %v994
      %v1051 = vunpack.c.h.b16 %v994
      %v1052 = vunpack.c.l.b16 %v996
      %v1053 = vunpack.c.h.b16 %v996
      %v1054 = vunpack.c.l.b16 %v998
      %v1055 = vld [vmem:[%s1] sm:$0xf]
      %v1056 = vld [vmem:[%s1 + $0x4] sm:$0x1]
      %v1057 = vld [vmem:[%s2] sm:$0x7]
      %v1058 = vperm.slane %v1057, 0
      %v1059 = vpack.c.b16 %v1020, %v1019
      %v1060 = vpack.c.b16 %v1022, %v1021
      %v1061 = vpack.c.b16 %v1024, %v1023
      %v1062 = vpack.c.b16 %v1026, %v1025
      %v1063 = vpack.c.b16 %v1028, %v1027
      %v1064 = vpack.c.b16 %v1030, %v1029
      %v1065 = vpack.c.b16 %v1032, %v1031
      %v1066 = vpack.c.b16 %v1034, %v1033
      %v1067 = vpack.c.b16 %v1036, %v1035
      %v1068 = vpack.c.b16 %v1038, %v1037
      %v1069 = vpack.c.b16 %v1040, %v1039
      %v1070 = vpack.c.b16 %v1042, %v1041
      %v1071 = vpack.c.b16 %v1044, %v1043
      %v1072 = vpack.c.b16 %v1046, %v1045
      %v1073 = vpack.c.b16 %v1048, %v1047
      %v1074 = vpack.c.b16 %v1050, %v1049
      %v1075 = vpack.c.b16 %v1052, %v1051
      %v1076 = vpack.c.b16 %v1054, %v1053
      %v1079 = vunpack.c.l.b16 %v1055
      %v1080 = vunpack.c.l.b16 %v1056
      %v1081 = vpack.c.b16 %v1080, %v1079
      %vm1082 = vcmask 72704
      %v1084 = vsel %vm1082, %v1059, 0
      %v1087 = vsel %vm1082, %v1060, 0
      %v1090 = vsel %vm1082, %v1061, 0
      %v1093 = vsel %vm1082, %v1062, 0
      %v1096 = vsel %vm1082, %v1063, 0
      %v1099 = vsel %vm1082, %v1064, 0
      %v1102 = vsel %vm1082, %v1065, 0
      %v1105 = vsel %vm1082, %v1066, 0
      %v1108 = vsel %vm1082, %v1067, 0
      %v1111 = vsel %vm1082, %v1068, 0
      %v1114 = vsel %vm1082, %v1069, 0
      %v1117 = vsel %vm1082, %v1070, 0
      %v1120 = vsel %vm1082, %v1071, 0
      %v1123 = vsel %vm1082, %v1072, 0
      %v1126 = vsel %vm1082, %v1073, 0
      %v1129 = vsel %vm1082, %v1074, 0
      %v1132 = vsel %vm1082, %v1075, 0
      %v1135 = vsel %vm1082, %v1076, 0
      %vm1137 = vcmask 1043456
      %vm1138 = vcmask 1044480
      %v1139 = vsel %vm1137, 4294967295, 65535
      %v1140 = vsel %vm1138, %v1139, 0
      %v1142 = vand.u32 %v1081, %v1140
      %1144 = vmatpush.bf16.msra.mxu0 0
      %1145 = vmatpush.bf16.msra.mxu0 0
      %1146 = vmatpush.bf16.msra.mxu0 0
      %1147 = vmatpush.bf16.msra.mxu0 0
      %1148 = vmatpush.bf16.msra.mxu0 0
      %1149 = vmatpush.bf16.msra.mxu0 0
      %1150 = vmatpush.bf16.msra.mxu0 0
      %1151 = vmatpush.bf16.msra.mxu0 %v1142
      %1152 = vmatmul.bf16.gmra.mxu0 %v1084
      %v1153 = vpop.f32.mrf.mxu0
      %v1154 = vadd.f32 %v1058, %v1153
      %v1155 = vpop.f32.mrf.mxu0
      %v1156 = vadd.f32 %v1058, %v1155
      %1157 = vmatmul.bf16.gmra.mxu0 %v1087
      %v1158 = vpop.f32.mrf.mxu0
      %v1159 = vadd.f32 %v1058, %v1158
      %v1160 = vpop.f32.mrf.mxu0
      %v1161 = vadd.f32 %v1058, %v1160
      %1162 = vmatmul.bf16.gmra.mxu0 %v1090
      %v1163 = vpop.f32.mrf.mxu0
      %v1164 = vadd.f32 %v1058, %v1163
      %v1165 = vpop.f32.mrf.mxu0
      %v1166 = vadd.f32 %v1058, %v1165
      %1167 = vmatmul.bf16.gmra.mxu0 %v1093
      %v1168 = vpop.f32.mrf.mxu0
      %v1169 = vadd.f32 %v1058, %v1168
      %v1170 = vpop.f32.mrf.mxu0
      %v1171 = vadd.f32 %v1058, %v1170
      %1172 = vmatmul.bf16.gmra.mxu0 %v1096
      %v1173 = vpop.f32.mrf.mxu0
      %v1174 = vadd.f32 %v1058, %v1173
      %v1175 = vpop.f32.mrf.mxu0
      %v1176 = vadd.f32 %v1058, %v1175
      %1177 = vmatmul.bf16.gmra.mxu0 %v1099
      %v1178 = vpop.f32.mrf.mxu0
      %v1179 = vadd.f32 %v1058, %v1178
      %v1180 = vpop.f32.mrf.mxu0
      %v1181 = vadd.f32 %v1058, %v1180
      %1182 = vmatmul.bf16.gmra.mxu0 %v1102
      %v1183 = vpop.f32.mrf.mxu0
      %v1184 = vadd.f32 %v1058, %v1183
      %v1185 = vpop.f32.mrf.mxu0
      %v1186 = vadd.f32 %v1058, %v1185
      %1187 = vmatmul.bf16.gmra.mxu0 %v1105
      %v1188 = vpop.f32.mrf.mxu0
      %v1189 = vadd.f32 %v1058, %v1188
      %v1190 = vpop.f32.mrf.mxu0
      %v1191 = vadd.f32 %v1058, %v1190
      %1192 = vmatmul.bf16.gmra.mxu0 %v1108
      %v1193 = vpop.f32.mrf.mxu0
      %v1194 = vadd.f32 %v1058, %v1193
      %v1195 = vpop.f32.mrf.mxu0
      %v1196 = vadd.f32 %v1058, %v1195
      %1197 = vmatmul.bf16.gmra.mxu0 %v1111
      %v1198 = vpop.f32.mrf.mxu0
      %v1199 = vadd.f32 %v1058, %v1198
      %v1200 = vpop.f32.mrf.mxu0
      %v1201 = vadd.f32 %v1058, %v1200
      %1202 = vmatmul.bf16.gmra.mxu0 %v1114
      %v1203 = vpop.f32.mrf.mxu0
      %v1204 = vadd.f32 %v1058, %v1203
      %v1205 = vpop.f32.mrf.mxu0
      %v1206 = vadd.f32 %v1058, %v1205
      %1207 = vmatmul.bf16.gmra.mxu0 %v1117
      %v1208 = vpop.f32.mrf.mxu0
      %v1209 = vadd.f32 %v1058, %v1208
      %v1210 = vpop.f32.mrf.mxu0
      %v1211 = vadd.f32 %v1058, %v1210
      %1212 = vmatmul.bf16.gmra.mxu0 %v1120
      %v1213 = vpop.f32.mrf.mxu0
      %v1214 = vadd.f32 %v1058, %v1213
      %v1215 = vpop.f32.mrf.mxu0
      %v1216 = vadd.f32 %v1058, %v1215
      %1217 = vmatmul.bf16.gmra.mxu0 %v1123
      %v1218 = vpop.f32.mrf.mxu0
      %v1219 = vadd.f32 %v1058, %v1218
      %v1220 = vpop.f32.mrf.mxu0
      %v1221 = vadd.f32 %v1058, %v1220
      %1222 = vmatmul.bf16.gmra.mxu0 %v1126
      %v1223 = vpop.f32.mrf.mxu0
      %v1224 = vadd.f32 %v1058, %v1223
      %v1225 = vpop.f32.mrf.mxu0
      %v1226 = vadd.f32 %v1058, %v1225
      %1227 = vmatmul.bf16.gmra.mxu0 %v1129
      %v1228 = vpop.f32.mrf.mxu0
      %v1229 = vadd.f32 %v1058, %v1228
      %v1230 = vpop.f32.mrf.mxu0
      %v1231 = vadd.f32 %v1058, %v1230
      %1232 = vmatmul.bf16.gmra.mxu0 %v1132
      %v1233 = vpop.f32.mrf.mxu0
      %v1234 = vadd.f32 %v1058, %v1233
      %v1235 = vpop.f32.mrf.mxu0
      %v1236 = vadd.f32 %v1058, %v1235
      %1237 = vmatmul.bf16.gmra.mxu0 %v1135
      %v1238 = vpop.f32.mrf.mxu0
      %v1239 = vadd.f32 %v1058, %v1238
      %v1240 = vpop.f32.mrf.mxu0
      %v1241 = vadd.f32 %v1058, %v1240
      %1242 = vdwg.mxu0
      %vm1243 = vcmp.ge.f32.partialorder %v1154, 0.0
      %vm1244 = vcmp.ge.f32.partialorder %v1156, 0.0
      %vm1245 = vcmp.ge.f32.partialorder %v1159, 0.0
      %vm1246 = vcmp.ge.f32.partialorder %v1161, 0.0
      %vm1247 = vcmp.ge.f32.partialorder %v1164, 0.0
      %vm1248 = vcmp.ge.f32.partialorder %v1166, 0.0
      %vm1249 = vcmp.ge.f32.partialorder %v1169, 0.0
      %vm1250 = vcmp.ge.f32.partialorder %v1171, 0.0
      %vm1251 = vcmp.ge.f32.partialorder %v1174, 0.0
      %vm1252 = vcmp.ge.f32.partialorder %v1176, 0.0
      %vm1253 = vcmp.ge.f32.partialorder %v1179, 0.0
      %vm1254 = vcmp.ge.f32.partialorder %v1181, 0.0
      %vm1255 = vcmp.ge.f32.partialorder %v1184, 0.0
      %vm1256 = vcmp.ge.f32.partialorder %v1186, 0.0
      %vm1257 = vcmp.ge.f32.partialorder %v1189, 0.0
      %vm1258 = vcmp.ge.f32.partialorder %v1191, 0.0
      %vm1259 = vcmp.ge.f32.partialorder %v1194, 0.0
      %vm1260 = vcmp.ge.f32.partialorder %v1196, 0.0
      %vm1261 = vcmp.ge.f32.partialorder %v1199, 0.0
      %vm1262 = vcmp.ge.f32.partialorder %v1201, 0.0
      %vm1263 = vcmp.ge.f32.partialorder %v1204, 0.0
      %vm1264 = vcmp.ge.f32.partialorder %v1206, 0.0
      %vm1265 = vcmp.ge.f32.partialorder %v1209, 0.0
      %vm1266 = vcmp.ge.f32.partialorder %v1211, 0.0
      %vm1267 = vcmp.ge.f32.partialorder %v1214, 0.0
      %vm1268 = vcmp.ge.f32.partialorder %v1216, 0.0
      %vm1269 = vcmp.ge.f32.partialorder %v1219, 0.0
      %vm1270 = vcmp.ge.f32.partialorder %v1221, 0.0
      %vm1271 = vcmp.ge.f32.partialorder %v1224, 0.0
      %vm1272 = vcmp.ge.f32.partialorder %v1226, 0.0
      %vm1273 = vcmp.ge.f32.partialorder %v1229, 0.0
      %vm1274 = vcmp.ge.f32.partialorder %v1231, 0.0
      %vm1275 = vcmp.ge.f32.partialorder %v1234, 0.0
      %vm1276 = vcmp.ge.f32.partialorder %v1236, 0.0
      %vm1277 = vcmp.ge.f32.partialorder %v1239, 0.0
      %vm1278 = vcmp.ge.f32.partialorder %v1241, 0.0
      %v1279 = vmul.f32 %v1154, 0.2
      %v1280 = vmul.f32 %v1156, 0.2
      %v1281 = vmul.f32 %v1159, 0.2
      %v1282 = vmul.f32 %v1161, 0.2
      %v1283 = vmul.f32 %v1164, 0.2
      %v1284 = vmul.f32 %v1166, 0.2
      %v1285 = vmul.f32 %v1169, 0.2
      %v1286 = vmul.f32 %v1171, 0.2
      %v1287 = vmul.f32 %v1174, 0.2
      %v1288 = vmul.f32 %v1176, 0.2
      %v1289 = vmul.f32 %v1179, 0.2
      %v1290 = vmul.f32 %v1181, 0.2
      %v1291 = vmul.f32 %v1184, 0.2
      %v1292 = vmul.f32 %v1186, 0.2
      %v1293 = vmul.f32 %v1189, 0.2
      %v1294 = vmul.f32 %v1191, 0.2
      %v1295 = vmul.f32 %v1194, 0.2
      %v1296 = vmul.f32 %v1196, 0.2
      %v1297 = vmul.f32 %v1199, 0.2
      %v1298 = vmul.f32 %v1201, 0.2
      %v1299 = vmul.f32 %v1204, 0.2
      %v1300 = vmul.f32 %v1206, 0.2
      %v1301 = vmul.f32 %v1209, 0.2
      %v1302 = vmul.f32 %v1211, 0.2
      %v1303 = vmul.f32 %v1214, 0.2
      %v1304 = vmul.f32 %v1216, 0.2
      %v1305 = vmul.f32 %v1219, 0.2
      %v1306 = vmul.f32 %v1221, 0.2
      %v1307 = vmul.f32 %v1224, 0.2
      %v1308 = vmul.f32 %v1226, 0.2
      %v1309 = vmul.f32 %v1229, 0.2
      %v1310 = vmul.f32 %v1231, 0.2
      %v1311 = vmul.f32 %v1234, 0.2
      %v1312 = vmul.f32 %v1236, 0.2
      %v1313 = vmul.f32 %v1239, 0.2
      %v1314 = vmul.f32 %v1241, 0.2
      %v1315 = vsel %vm1243, %v1154, %v1279
      %v1316 = vsel %vm1244, %v1156, %v1280
      %v1317 = vsel %vm1245, %v1159, %v1281
      %v1318 = vsel %vm1246, %v1161, %v1282
      %v1319 = vsel %vm1247, %v1164, %v1283
      %v1320 = vsel %vm1248, %v1166, %v1284
      %v1321 = vsel %vm1249, %v1169, %v1285
      %v1322 = vsel %vm1250, %v1171, %v1286
      %v1323 = vsel %vm1251, %v1174, %v1287
      %v1324 = vsel %vm1252, %v1176, %v1288
      %v1325 = vsel %vm1253, %v1179, %v1289
      %v1326 = vsel %vm1254, %v1181, %v1290
      %v1327 = vsel %vm1255, %v1184, %v1291
      %v1328 = vsel %vm1256, %v1186, %v1292
      %v1329 = vsel %vm1257, %v1189, %v1293
      %v1330 = vsel %vm1258, %v1191, %v1294
      %v1331 = vsel %vm1259, %v1194, %v1295
      %v1332 = vsel %vm1260, %v1196, %v1296
      %v1333 = vsel %vm1261, %v1199, %v1297
      %v1334 = vsel %vm1262, %v1201, %v1298
      %v1335 = vsel %vm1263, %v1204, %v1299
      %v1336 = vsel %vm1264, %v1206, %v1300
      %v1337 = vsel %vm1265, %v1209, %v1301
      %v1338 = vsel %vm1266, %v1211, %v1302
      %v1339 = vsel %vm1267, %v1214, %v1303
      %v1340 = vsel %vm1268, %v1216, %v1304
      %v1341 = vsel %vm1269, %v1219, %v1305
      %v1342 = vsel %vm1270, %v1221, %v1306
      %v1343 = vsel %vm1271, %v1224, %v1307
      %v1344 = vsel %vm1272, %v1226, %v1308
      %v1345 = vsel %vm1273, %v1229, %v1309
      %v1346 = vsel %vm1274, %v1231, %v1310
      %v1347 = vsel %vm1275, %v1234, %v1311
      %v1348 = vsel %vm1276, %v1236, %v1312
      %v1349 = vsel %vm1277, %v1239, %v1313
      %v1350 = vsel %vm1278, %v1241, %v1314
      %v1351 = vperm.slane %v1057, 1
      %v1352 = vmul.f32 %v1315, %v1351
      %v1353 = vmul.f32 %v1316, %v1351
      %v1354 = vmul.f32 %v1317, %v1351
      %v1355 = vmul.f32 %v1318, %v1351
      %v1356 = vmul.f32 %v1319, %v1351
      %v1357 = vmul.f32 %v1320, %v1351
      %v1358 = vmul.f32 %v1321, %v1351
      %v1359 = vmul.f32 %v1322, %v1351
      %v1360 = vmul.f32 %v1323, %v1351
      %v1361 = vmul.f32 %v1324, %v1351
      %v1362 = vmul.f32 %v1325, %v1351
      %v1363 = vmul.f32 %v1326, %v1351
      %v1364 = vmul.f32 %v1327, %v1351
      %v1365 = vmul.f32 %v1328, %v1351
      %v1366 = vmul.f32 %v1329, %v1351
      %v1367 = vmul.f32 %v1330, %v1351
      %v1368 = vmul.f32 %v1331, %v1351
      %v1369 = vmul.f32 %v1332, %v1351
      %v1370 = vmul.f32 %v1333, %v1351
      %v1371 = vmul.f32 %v1334, %v1351
      %v1372 = vmul.f32 %v1335, %v1351
      %v1373 = vmul.f32 %v1336, %v1351
      %v1374 = vmul.f32 %v1337, %v1351
      %v1375 = vmul.f32 %v1338, %v1351
      %v1376 = vmul.f32 %v1339, %v1351
      %v1377 = vmul.f32 %v1340, %v1351
      %v1378 = vmul.f32 %v1341, %v1351
      %v1379 = vmul.f32 %v1342, %v1351
      %v1380 = vmul.f32 %v1343, %v1351
      %v1381 = vmul.f32 %v1344, %v1351
      %v1382 = vmul.f32 %v1345, %v1351
      %v1383 = vmul.f32 %v1346, %v1351
      %v1384 = vmul.f32 %v1347, %v1351
      %v1385 = vmul.f32 %v1348, %v1351
      %v1386 = vmul.f32 %v1349, %v1351
      %v1387 = vmul.f32 %v1350, %v1351
      %v1388 = vperm.slane %v1057, 2
      %v1389 = vadd.f32 %v1352, %v1388
      %v1390 = vadd.f32 %v1353, %v1388
      %v1391 = vadd.f32 %v1354, %v1388
      %v1392 = vadd.f32 %v1355, %v1388
      %v1393 = vadd.f32 %v1356, %v1388
      %v1394 = vadd.f32 %v1357, %v1388
      %v1395 = vadd.f32 %v1358, %v1388
      %v1396 = vadd.f32 %v1359, %v1388
      %v1397 = vadd.f32 %v1360, %v1388
      %v1398 = vadd.f32 %v1361, %v1388
      %v1399 = vadd.f32 %v1362, %v1388
      %v1400 = vadd.f32 %v1363, %v1388
      %v1401 = vadd.f32 %v1364, %v1388
      %v1402 = vadd.f32 %v1365, %v1388
      %v1403 = vadd.f32 %v1366, %v1388
      %v1404 = vadd.f32 %v1367, %v1388
      %v1405 = vadd.f32 %v1368, %v1388
      %v1406 = vadd.f32 %v1369, %v1388
      %v1407 = vadd.f32 %v1370, %v1388
      %v1408 = vadd.f32 %v1371, %v1388
      %v1409 = vadd.f32 %v1372, %v1388
      %v1410 = vadd.f32 %v1373, %v1388
      %v1411 = vadd.f32 %v1374, %v1388
      %v1412 = vadd.f32 %v1375, %v1388
      %v1413 = vadd.f32 %v1376, %v1388
      %v1414 = vadd.f32 %v1377, %v1388
      %v1415 = vadd.f32 %v1378, %v1388
      %v1416 = vadd.f32 %v1379, %v1388
      %v1417 = vadd.f32 %v1380, %v1388
      %v1418 = vadd.f32 %v1381, %v1388
      %v1419 = vadd.f32 %v1382, %v1388
      %v1420 = vadd.f32 %v1383, %v1388
      %v1421 = vadd.f32 %v1384, %v1388
      %v1422 = vadd.f32 %v1385, %v1388
      %v1423 = vadd.f32 %v1386, %v1388
      %v1424 = vadd.f32 %v1387, %v1388
      %v1425 = vpack.c.bf16 %v1389, %v1389
      %v1426 = vpack.c.bf16 %v1390, %v1390
      %v1427 = vpack.c.bf16 %v1391, %v1391
      %v1428 = vpack.c.bf16 %v1392, %v1392
      %v1429 = vpack.c.bf16 %v1393, %v1393
      %v1430 = vpack.c.bf16 %v1394, %v1394
      %v1431 = vpack.c.bf16 %v1395, %v1395
      %v1432 = vpack.c.bf16 %v1396, %v1396
      %v1433 = vpack.c.bf16 %v1397, %v1397
      %v1434 = vpack.c.bf16 %v1398, %v1398
      %v1435 = vpack.c.bf16 %v1399, %v1399
      %v1436 = vpack.c.bf16 %v1400, %v1400
      %v1437 = vpack.c.bf16 %v1401, %v1401
      %v1438 = vpack.c.bf16 %v1402, %v1402
      %v1439 = vpack.c.bf16 %v1403, %v1403
      %v1440 = vpack.c.bf16 %v1404, %v1404
      %v1441 = vpack.c.bf16 %v1405, %v1405
      %v1442 = vpack.c.bf16 %v1406, %v1406
      %v1443 = vpack.c.bf16 %v1407, %v1407
      %v1444 = vpack.c.bf16 %v1408, %v1408
      %v1445 = vpack.c.bf16 %v1409, %v1409
      %v1446 = vpack.c.bf16 %v1410, %v1410
      %v1447 = vpack.c.bf16 %v1411, %v1411
      %v1448 = vpack.c.bf16 %v1412, %v1412
      %v1449 = vpack.c.bf16 %v1413, %v1413
      %v1450 = vpack.c.bf16 %v1414, %v1414
      %v1451 = vpack.c.bf16 %v1415, %v1415
      %v1452 = vpack.c.bf16 %v1416, %v1416
      %v1453 = vpack.c.bf16 %v1417, %v1417
      %v1454 = vpack.c.bf16 %v1418, %v1418
      %v1455 = vpack.c.bf16 %v1419, %v1419
      %v1456 = vpack.c.bf16 %v1420, %v1420
      %v1457 = vpack.c.bf16 %v1421, %v1421
      %v1458 = vpack.c.bf16 %v1422, %v1422
      %v1459 = vpack.c.bf16 %v1423, %v1423
      %v1460 = vpack.c.bf16 %v1424, %v1424
      %vm1461 = vcmask 257024
      %1462 = vst.msk [vmem:[%s170] sm:$0xf] %vm1461, %v1425
      %1463 = vst.msk [vmem:[%s170 + $0x4] sm:$0xf] %vm1461, %v1426
      %1464 = vst.msk [vmem:[%s170 + $0x8] sm:$0xf] %vm1461, %v1427
      %1465 = vst.msk [vmem:[%s170 + $0xc] sm:$0xf] %vm1461, %v1428
      %1466 = vst.msk [vmem:[%s170 + $0x10] sm:$0xf] %vm1461, %v1429
      %1467 = vst.msk [vmem:[%s170 + $0x14] sm:$0xf] %vm1461, %v1430
      %1468 = vst.msk [vmem:[%s170 + $0x18] sm:$0xf] %vm1461, %v1431
      %1469 = vst.msk [vmem:[%s170 + $0x1c] sm:$0xf] %vm1461, %v1432
      %1470 = vst.msk [vmem:[%s170 + $0x20] sm:$0xf] %vm1461, %v1433
      %1471 = vst.msk [vmem:[%s170 + $0x24] sm:$0xf] %vm1461, %v1434
      %1472 = vst.msk [vmem:[%s170 + $0x28] sm:$0xf] %vm1461, %v1435
      %1473 = vst.msk [vmem:[%s170 + $0x2c] sm:$0xf] %vm1461, %v1436
      %1474 = vst.msk [vmem:[%s170 + $0x30] sm:$0xf] %vm1461, %v1437
      %1475 = vst.msk [vmem:[%s170 + $0x34] sm:$0xf] %vm1461, %v1438
      %1476 = vst.msk [vmem:[%s170 + $0x38] sm:$0xf] %vm1461, %v1439
      %1477 = vst.msk [vmem:[%s170 + $0x3c] sm:$0xf] %vm1461, %v1440
      %1478 = vst.msk [vmem:[%s170 + $0x40] sm:$0xf] %vm1461, %v1441
      %1479 = vst.msk [vmem:[%s170 + $0x44] sm:$0xf] %vm1461, %v1442
      %1480 = vst.msk [vmem:[%s170 + $0x48] sm:$0xf] %vm1461, %v1443
      %1481 = vst.msk [vmem:[%s170 + $0x4c] sm:$0xf] %vm1461, %v1444
      %1482 = vst.msk [vmem:[%s170 + $0x50] sm:$0xf] %vm1461, %v1445
      %1483 = vst.msk [vmem:[%s170 + $0x54] sm:$0xf] %vm1461, %v1446
      %1484 = vst.msk [vmem:[%s170 + $0x58] sm:$0xf] %vm1461, %v1447
      %1485 = vst.msk [vmem:[%s170 + $0x5c] sm:$0xf] %vm1461, %v1448
      %1486 = vst.msk [vmem:[%s170 + $0x60] sm:$0xf] %vm1461, %v1449
      %1487 = vst.msk [vmem:[%s170 + $0x64] sm:$0xf] %vm1461, %v1450
      %1488 = vst.msk [vmem:[%s170 + $0x68] sm:$0xf] %vm1461, %v1451
      %1489 = vst.msk [vmem:[%s170 + $0x6c] sm:$0xf] %vm1461, %v1452
      %1490 = vst.msk [vmem:[%s170 + $0x70] sm:$0xf] %vm1461, %v1453
      %1491 = vst.msk [vmem:[%s170 + $0x74] sm:$0xf] %vm1461, %v1454
      %1492 = vst.msk [vmem:[%s170 + $0x78] sm:$0xf] %vm1461, %v1455
      %1493 = vst.msk [vmem:[%s170 + $0x7c] sm:$0xf] %vm1461, %v1456
      %1494 = vst.msk [vmem:[%s170 + $0x80] sm:$0xf] %vm1461, %v1457
      %1495 = vst.msk [vmem:[%s170 + $0x84] sm:$0xf] %vm1461, %v1458
      %1496 = vst.msk [vmem:[%s170 + $0x88] sm:$0xf] %vm1461, %v1459
      %1497 = vst.msk [vmem:[%s170 + $0x8c] sm:$0xf] %vm1461, %v1460
      %p1498 = scmp.lt.s32.totalorder %s14, 3
      %s1499 = scalar_select %p1498, %s14, 3
      %s1500 = smul.addr %s1499, 36
      %s1501 = smul.addr %s1500, 4
      %s1502 = scalar_lea.vmem %s3, %s1501
      // Predicated region
      $region33: #{single_window_forward.8} parent=31 // pred_check
        %p1503 = pneg %p100
      $region34: #{single_window_forward.8} parent=31 // pred_check_branch
        %1505 = sbr.rel (%p1503) target = $region36
      $region35: #{single_window_forward.8} parent=31 // pred_region
        _
      $region36: #{single_window_forward.8} parent=31 // pred_fallthru
        _
    $region32: #{single_window_forward.8} parent=5 // pred_fallthru
      _
    %p1506 = scmp.le.s32.totalorder 2, %s9
    // Predicated region
    $region37: #{single_window_forward.8} parent=5 // pred_check
      %p1507 = pneg %p1506
    $region38: #{single_window_forward.8} parent=5 // pred_check_branch
      %1509 = sbr.rel (%p1507) target = $region40
    $region39: #{single_window_forward.8} parent=5 // pred_region
      %s1510 = ssub.s32 %s9, 2
      // Predicated region
      $region41: #{single_window_forward.8} parent=39 // pred_check
        %p1511 = pneg %p106
      $region42: #{single_window_forward.8} parent=39 // pred_check_branch
        %1513 = sbr.rel (%p1511) target = $region44
      $region43: #{single_window_forward.8} parent=39 // pred_region
        %p1514 = scmp.lt.s32.totalorder %s15, 3
        %s1515 = scalar_select %p1514, %s15, 3
        %s1516 = smul.addr %s1515, 36
        %s1517 = smul.addr %s1516, 4
        %s1518 = scalar_lea.vmem %s3, %s1517
      $region44: #{single_window_forward.8} parent=39 // pred_fallthru
        _
    $region40: #{single_window_forward.8} parent=5 // pred_fallthru
      _
  $region6: #{single_window_forward.8} parent=0 // loop_footer
    %s13 = sadd.s32 1, %s9
  $region7: #{single_window_forward.8} parent=0 // loop_footer_branch
    %8 = sbr.rel target = $region3
  $region8: #{single_window_forward.8} parent=0 // loop_exit
    _

// kernel: single_window_forward.9
$region0: #{single_window_forward.9}
  #allocation0 [shape = 'u32[]', space=smem, size = 0x4, offset = 0x4, fixed_abs, tag = 'smem constant byte address 0x4 - core index']
  #allocation1 [shape = 'u32[72,128]{1,0:T(1,128)}', space=vmem, size = 0x9000, scoped, tag = 'internal scratch']
  %s0 = inlined_call_operand.vmem [shape: bf16[4,3,37,128], index: 0, kind: input, shape index: {}]
  %s1 = inlined_call_operand.vmem [shape: bf16[288,32], index: 1, kind: input, shape index: {}]
  %s2 = inlined_call_operand.vmem [shape: f32[3,32], index: 2, kind: input, shape index: {}]
  %s3 = inlined_call_operand.vmem [shape: bf16[4,2,36,32], index: 3, kind: output, shape index: {}]
  %s4 = sld [smem:[#allocation0]]
  $region45: #{single_window_forward.9} parent=0
    _
  %s6 = ssub.s32 1, %s4
  %s7 = scalar_select 0, %s6, %s4
  loop: start=0, step=1, limit=6
  $region2: #{single_window_forward.9} parent=0 // loop_pre_header
    _
  $region3: #{single_window_forward.9} parent=0 // loop_header
    %s9 = sphi 0, %s13
    %p10 = scmp.ge.s32.totalorder %s9, 6
    %s19 = sphi 0, %s21
    %s22 = sphi 0, %s19
    %s23 = sphi 0, %s22
    %s39 = sphi 0, %s23
    %s43 = sphi 0, %s43
    %s45 = sphi 0, %s43
    %s46 = sphi 0, %s45
    %s60 = sphi 0, %s46
    %s64 = sphi 0, %s64
    %s66 = sphi 0, %s64
    %s67 = sphi 0, %s66
    %s81 = sphi 0, %s67
    %s87 = sphi 0, %s89
    %s90 = sphi 0, %s87
    %s91 = sphi 0, %s90
    %s107 = sphi 0, %s91
  $region4: #{single_window_forward.9} parent=0 // loop_header_branch
    %12 = sbr.rel (%p10) target = $region8
  $region5: #{single_window_forward.9} parent=0 // loop_body
    %s14 = ssub.s32 %s9, 1
    %s15 = ssub.s32 %s9, 2
    %s16 = sadd.s32 %s9, 1
    %s17 = ssub.s32 %s9, %s16
    %p18 = scmp.eq.s32.totalorder %s17, 0
    %s20 = sadd.s32 %s19, 1
    %s21 = scalar_select %p18, %s19, %s20
    %p24 = pneg %p18
    %p25 = scmp.eq.s32.totalorder %s9, 3
    %p26 = por %p24, %p25
    %p27 = scmp.ne.s32.totalorder %s19, %s22
    %p28 = scmp.eq.s32.totalorder %s9, 0
    %p29 = por %p27, %p28
    %p30 = scmp.ne.s32.totalorder %s19, %s22
    %p31 = scmp.eq.s32.totalorder %s14, 3
    %p32 = por %p30, %p31
    %p33 = scmp.ne.s32.totalorder %s22, %s23
    %p34 = scmp.eq.s32.totalorder %s14, 0
    %p35 = por %p33, %p34
    %p36 = scmp.ne.s32.totalorder %s22, %s23
    %p37 = scmp.eq.s32.totalorder %s15, 3
    %p38 = por %p36, %p37
    %p40 = scmp.ne.s32.totalorder %s23, %s39
    %p41 = scmp.eq.s32.totalorder %s15, 0
    %p42 = por %p40, %p41
    %s44 = sadd.s32 %s43, 1
    %p47 = scmp.eq.s32.totalorder %s9, 3
    %p48 = scmp.ne.s32.totalorder %s43, %s45
    %p49 = scmp.eq.s32.totalorder %s9, 0
    %p50 = por %p48, %p49
    %p51 = scmp.ne.s32.totalorder %s43, %s45
    %p52 = scmp.eq.s32.totalorder %s14, 3
    %p53 = por %p51, %p52
    %p54 = scmp.ne.s32.totalorder %s45, %s46
    %p55 = scmp.eq.s32.totalorder %s14, 0
    %p56 = por %p54, %p55
    %p57 = scmp.ne.s32.totalorder %s45, %s46
    %p58 = scmp.eq.s32.totalorder %s15, 3
    %p59 = por %p57, %p58
    %p61 = scmp.ne.s32.totalorder %s46, %s60
    %p62 = scmp.eq.s32.totalorder %s15, 0
    %p63 = por %p61, %p62
    %s65 = sadd.s32 %s64, 1
    %p68 = scmp.eq.s32.totalorder %s9, 3
    %p69 = scmp.ne.s32.totalorder %s64, %s66
    %p70 = scmp.eq.s32.totalorder %s9, 0
    %p71 = por %p69, %p70
    %p72 = scmp.ne.s32.totalorder %s64, %s66
    %p73 = scmp.eq.s32.totalorder %s14, 3
    %p74 = por %p72, %p73
    %p75 = scmp.ne.s32.totalorder %s66, %s67
    %p76 = scmp.eq.s32.totalorder %s14, 0
    %p77 = por %p75, %p76
    %p78 = scmp.ne.s32.totalorder %s66, %s67
    %p79 = scmp.eq.s32.totalorder %s15, 3
    %p80 = por %p78, %p79
    %p82 = scmp.ne.s32.totalorder %s67, %s81
    %p83 = scmp.eq.s32.totalorder %s15, 0
    %p84 = por %p82, %p83
    %s85 = ssub.s32 %s9, %s16
    %p86 = scmp.eq.s32.totalorder %s85, 0
    %s88 = sadd.s32 %s87, 1
    %s89 = scalar_select %p86, %s87, %s88
    %p92 = pneg %p86
    %p93 = scmp.eq.s32.totalorder %s9, 3
    %p94 = por %p92, %p93
    %p95 = scmp.ne.s32.totalorder %s87, %s90
    %p96 = scmp.eq.s32.totalorder %s9, 0
    %p97 = por %p95, %p96
    %p98 = scmp.ne.s32.totalorder %s87, %s90
    %p99 = scmp.eq.s32.totalorder %s14, 3
    %p100 = por %p98, %p99
    %p101 = scmp.ne.s32.totalorder %s90, %s91
    %p102 = scmp.eq.s32.totalorder %s14, 0
    %p103 = por %p101, %p102
    %p104 = scmp.ne.s32.totalorder %s90, %s91
    %p105 = scmp.eq.s32.totalorder %s15, 3
    %p106 = por %p104, %p105
    %p108 = scmp.ne.s32.totalorder %s91, %s107
    %p109 = scmp.eq.s32.totalorder %s15, 0
    %p110 = por %p108, %p109
    %p111 = scmp.le.s32.totalorder 1, %s9
    %p112 = scmp.lt.s32.totalorder %s9, 5
    %p113 = pnand %p111, %p112
    %p114 = pneg %p113
    // Predicated region
    $region9: #{single_window_forward.9} parent=5 // pred_check
      _
    $region10: #{single_window_forward.9} parent=5 // pred_check_branch
      %116 = sbr.rel (%p113) target = $region12
    $region11: #{single_window_forward.9} parent=5 // pred_region
      %s117 = ssub.s32 %s9, 1
      // Predicated region
      $region13: #{single_window_forward.9} parent=11 // pred_check
        %p118 = pneg %p56
      $region14: #{single_window_forward.9} parent=11 // pred_check_branch
        %120 = sbr.rel (%p118) target = $region16
      $region15: #{single_window_forward.9} parent=11 // pred_region
        _
      $region16: #{single_window_forward.9} parent=11 // pred_fallthru
        _
      // Predicated region
      $region17: #{single_window_forward.9} parent=11 // pred_check
        %p121 = pneg %p77
      $region18: #{single_window_forward.9} parent=11 // pred_check_branch
        %123 = sbr.rel (%p121) target = $region20
      $region19: #{single_window_forward.9} parent=11 // pred_region
        _
      $region20: #{single_window_forward.9} parent=11 // pred_fallthru
        _
    $region12: #{single_window_forward.9} parent=5 // pred_fallthru
      _
    %p124 = scmp.lt.s32.totalorder %s9, 4
    // Predicated region
    $region21: #{single_window_forward.9} parent=5 // pred_check
      %p125 = pneg %p124
    $region22: #{single_window_forward.9} parent=5 // pred_check_branch
      %127 = sbr.rel (%p125) target = $region24
    $region23: #{single_window_forward.9} parent=5 // pred_region
      // Predicated region
      $region25: #{single_window_forward.9} parent=23 // pred_check
        %p128 = pneg %p29
      $region26: #{single_window_forward.9} parent=23 // pred_check_branch
        %130 = sbr.rel (%p128) target = $region28
      $region27: #{single_window_forward.9} parent=23 // pred_region
        %p131 = scmp.lt.s32.totalorder %s9, 3
        %s132 = scalar_select %p131, %s9, 3
        %s133 = smul.addr %s132, 15
        %s134 = smul.addr %s133, 4
        %s135 = scalar_lea.vmem %s0, %s134
      $region28: #{single_window_forward.9} parent=23 // pred_fallthru
        _
    $region24: #{single_window_forward.9} parent=5 // pred_fallthru
      _
    %p136 = scmp.le.s32.totalorder 1, %s9
    %p137 = scmp.lt.s32.totalorder %s9, 5
    %p138 = pnand %p136, %p137
    %p139 = pneg %p138
    // Predicated region
    $region29: #{single_window_forward.9} parent=5 // pred_check
      _
    $region30: #{single_window_forward.9} parent=5 // pred_check_branch
      %141 = sbr.rel (%p138) target = $region32
    $region31: #{single_window_forward.9} parent=5 // pred_region
      %s142 = ssub.s32 %s9, 1
      %p143 = scmp.lt.s32.totalorder %s14, 3
      %s144 = scalar_select %p143, %s14, 3
      %s145 = smul.addr %s144, 15
      %s146 = smul.addr %s145, 4
      %s147 = scalar_lea.vmem %s0, %s146
      %p148 = pneg %p35
      %p149 = pneg %p32
      %p150 = pneg %p56
      %p151 = pneg %p53
      %p152 = pneg %p77
      %p153 = pneg %p74
      %p154 = pneg %p103
      %p155 = pneg %p100
      %p156 = scmp.lt.s32.totalorder %s14, 3
      %s157 = scalar_select %p156, %s14, 3
      %s158 = smul.addr %s157, 10
      %s159 = smul.addr %s158, 4
      %s160 = scalar_lea.vmem %s3, %s159
      %p161 = scmp.lt.s32.totalorder %s14, 3
      %s162 = scalar_select %p161, %s14, 3
      %s163 = smul.addr %s162, 15
      %s164 = smul.addr %s163, 4
      %s165 = scalar_lea.vmem %s0, %s164
      %p166 = scmp.lt.s32.totalorder %s14, 3
      %s167 = scalar_select %p166, %s14, 3
      %s168 = smul.addr %s167, 10
      %s169 = smul.addr %s168, 4
      %s170 = scalar_lea.vmem %s3, %s169
      %v172 = vld [vmem:[%s165] sm:$0xf]
      %v173 = vld [vmem:[%s165 + $0x4] sm:$0xf]
      %v174 = vld [vmem:[%s165 + $0x8] sm:$0xf]
      %v175 = vld [vmem:[%s165 + $0xc] sm:$0xf]
      %v176 = vld [vmem:[%s165 + $0x10] sm:$0x7]
      %v177 = vld [vmem:[%s165 + $0x14] sm:$0xf]
      %v178 = vld [vmem:[%s165 + $0x18] sm:$0xf]
      %v179 = vld [vmem:[%s165 + $0x1c] sm:$0xf]
      %v180 = vld [vmem:[%s165 + $0x20] sm:$0xf]
      %v181 = vld [vmem:[%s165 + $0x24] sm:$0x7]
      %v182 = vld [vmem:[%s165 + $0x28] sm:$0xf]
      %v183 = vld [vmem:[%s165 + $0x2c] sm:$0xf]
      %v184 = vld [vmem:[%s165 + $0x30] sm:$0xf]
      %v185 = vld [vmem:[%s165 + $0x34] sm:$0xf]
      %v186 = vld [vmem:[%s165 + $0x38] sm:$0x7]
      %v197 = vunpack.c.l.b16 %v172
      %v198 = vunpack.c.l.b16 %v173
      %v199 = vunpack.c.l.b16 %v174
      %v200 = vunpack.c.l.b16 %v175
      %v201 = vunpack.c.l.b16 %v176
      %v202 = vunpack.c.l.b16 %v177
      %v203 = vunpack.c.l.b16 %v178
      %v204 = vunpack.c.l.b16 %v179
      %v205 = vunpack.c.l.b16 %v180
      %v206 = vunpack.c.l.b16 %v181
      %v207 = vpack.c.b16 %v198, %v197
      %v208 = vpack.c.b16 %v200, %v199
      %v209 = vpack.c.b16 %v201, %v201
      %v210 = vpack.c.b16 %v203, %v202
      %v211 = vpack.c.b16 %v205, %v204
      %v212 = vpack.c.b16 %v206, %v206
      %vm213 = vsmask.f32 7424
      %v215 = vshrl.u32 %v207, 16
      %v217 = vshll.u32 %v207, 16
      %v219 = vrot.slane %v217, 1
      %v220 = vor.u32 %v215, %v219
      %v222 = vshll.u32 %v208, 16
      %v224 = vrot.slane %v222, 1
      %v225 = vsel %vm213, %v220, %v224
      %v226 = vshrl.u32 %v208, 16
      %v228 = vor.u32 %v226, %v224
      %v230 = vshll.u32 %v209, 16
      %v232 = vrot.slane %v230, 1
      %v233 = vsel %vm213, %v228, %v232
      %v234 = vshrl.u32 %v209, 16
      %v236 = vor.u32 %v234, %v232
      %v238 = vshrl.u32 %v210, 16
      %v240 = vshll.u32 %v210, 16
      %v242 = vrot.slane %v240, 1
      %v243 = vor.u32 %v238, %v242
      %v245 = vshll.u32 %v211, 16
      %v247 = vrot.slane %v245, 1
      %v248 = vsel %vm213, %v243, %v247
      %v249 = vshrl.u32 %v211, 16
      %v251 = vor.u32 %v249, %v247
      %v253 = vshll.u32 %v212, 16
      %v255 = vrot.slane %v253, 1
      %v256 = vsel %vm213, %v251, %v255
      %v257 = vshrl.u32 %v212, 16
      %v259 = vor.u32 %v257, %v255
      %260 = vrot.lane.b32.xlu0 %v225, 64
      %v261 = vpop.permute.xlu0 %260
      %262 = vrot.lane.b32.xlu0 %v233, 64
      %v263 = vpop.permute.xlu0 %262
      %264 = vrot.lane.b32.xlu0 %v236, 64
      %v265 = vpop.permute.xlu0 %264
      %266 = vrot.lane.b32.xlu0 %v248, 64
      %v267 = vpop.permute.xlu0 %266
      %268 = vrot.lane.b32.xlu0 %v256, 64
      %v269 = vpop.permute.xlu0 %268
      %270 = vrot.lane.b32.xlu0 %v259, 64
      %v271 = vpop.permute.xlu0 %270
      %272 = vrot.lane.b32.xlu0 %v207, 32
      %v273 = vpop.permute.xlu0 %272
      %274 = vrot.lane.b32.xlu0 %v208, 32
      %v275 = vpop.permute.xlu0 %274
      %276 = vrot.lane.b32.xlu0 %v209, 32
      %v277 = vpop.permute.xlu0 %276
      %278 = vrot.lane.b32.xlu0 %v210, 32
      %v279 = vpop.permute.xlu0 %278
      %280 = vrot.lane.b32.xlu0 %v211, 32
      %v281 = vpop.permute.xlu0 %280
      %282 = vrot.lane.b32.xlu0 %v212, 32
      %v283 = vpop.permute.xlu0 %282
      %284 = vrot.lane.b32.xlu0 %v225, 96
      %v285 = vpop.permute.xlu0 %284
      %286 = vrot.lane.b32.xlu0 %v233, 96
      %v287 = vpop.permute.xlu0 %286
      %288 = vrot.lane.b32.xlu0 %v236, 96
      %v289 = vpop.permute.xlu0 %288
      %290 = vrot.lane.b32.xlu0 %v248, 96
      %v291 = vpop.permute.xlu0 %290
      %292 = vrot.lane.b32.xlu0 %v256, 96
      %v293 = vpop.permute.xlu0 %292
      %294 = vrot.lane.b32.xlu0 %v259, 96
      %v295 = vpop.permute.xlu0 %294
      %v301 = vunpack.c.l.b16 %v182
      %v302 = vunpack.c.l.b16 %v183
      %v303 = vunpack.c.l.b16 %v184
      %v304 = vunpack.c.l.b16 %v185
      %v305 = vunpack.c.l.b16 %v186
      %v306 = vpack.c.b16 %v302, %v301
      %v307 = vpack.c.b16 %v304, %v303
      %v308 = vpack.c.b16 %v305, %v305
      %309 = vrot.lane.b32.xlu0 %v210, 64
      %v310 = vpop.permute.xlu0 %309
      %311 = vrot.lane.b32.xlu0 %v211, 64
      %v312 = vpop.permute.xlu0 %311
      %313 = vrot.lane.b32.xlu0 %v212, 64
      %v314 = vpop.permute.xlu0 %313
      %315 = vrot.lane.b32.xlu0 %v306, 64
      %v316 = vpop.permute.xlu0 %315
      %317 = vrot.lane.b32.xlu0 %v307, 64
      %v318 = vpop.permute.xlu0 %317
      %319 = vrot.lane.b32.xlu0 %v308, 64
      %v320 = vpop.permute.xlu0 %319
      %v322 = vshrl.u32 %v306, 16
      %v324 = vshll.u32 %v306, 16
      %v326 = vrot.slane %v324, 1
      %v327 = vor.u32 %v322, %v326
      %v329 = vshll.u32 %v307, 16
      %v331 = vrot.slane %v329, 1
      %v332 = vsel %vm213, %v327, %v331
      %v333 = vshrl.u32 %v307, 16
      %v335 = vor.u32 %v333, %v331
      %v337 = vshll.u32 %v308, 16
      %v339 = vrot.slane %v337, 1
      %v340 = vsel %vm213, %v335, %v339
      %v341 = vshrl.u32 %v308, 16
      %v343 = vor.u32 %v341, %v339
      %vm344 = vcmask 261120
      %vm345 = vcmask 523264
      %v347 = vsel %vm345, %v207, %v261
      %v349 = vsel %vm345, %v208, %v263
      %v351 = vsel %vm345, %v209, %v265
      %v353 = vsel %vm345, %v210, %v267
      %v355 = vsel %vm345, %v211, %v269
      %v357 = vsel %vm345, %v212, %v271
      %vm358 = vcmask 785408
      %v360 = vsel %vm358, %v347, %v273
      %v362 = vsel %vm358, %v349, %v275
      %v364 = vsel %vm358, %v351, %v277
      %v366 = vsel %vm358, %v353, %v279
      %v368 = vsel %vm358, %v355, %v281
      %v370 = vsel %vm358, %v357, %v283
      %v372 = vsel %vm344, %v273, %v285
      %v374 = vsel %vm344, %v275, %v287
      %v376 = vsel %vm344, %v277, %v289
      %v378 = vsel %vm344, %v279, %v291
      %v380 = vsel %vm344, %v281, %v293
      %v382 = vsel %vm344, %v283, %v295
      %v384 = vsel %vm345, %v372, %v310
      %v386 = vsel %vm345, %v374, %v312
      %v388 = vsel %vm345, %v376, %v314
      %v390 = vsel %vm345, %v378, %v316
      %v392 = vsel %vm345, %v380, %v318
      %v394 = vsel %vm345, %v382, %v320
      %v395 = vsel %vm358, %v384, %v310
      %v396 = vsel %vm358, %v386, %v312
      %v397 = vsel %vm358, %v388, %v314
      %v398 = vsel %vm358, %v390, %v316
      %v399 = vsel %vm358, %v392, %v318
      %v400 = vsel %vm358, %v394, %v320
      %v407 = vrot.slane %v395, 6
      %v408 = vrot.slane %v248, 4
      %v409 = vrot.slane %v396, 6
      %v410 = vrot.slane %v256, 4
      %v411 = vrot.slane %v397, 6
      %v412 = vrot.slane %v259, 4
      %v413 = vrot.slane %v398, 6
      %v414 = vrot.slane %v332, 4
      %v415 = vrot.slane %v399, 6
      %v416 = vrot.slane %v340, 4
      %v417 = vrot.slane %v400, 6
      %v418 = vrot.slane %v343, 4
      %vm419 = vcmask 1041408
      %v421 = vsel %vm419, %v360, %v407
      %vm422 = vcmask 1043456
      %v424 = vsel %vm422, %v421, %v408
      %vm425 = vcmask 1043458
      %v426 = vsel %vm425, %v360, %v407
      %vm427 = vcmask 1045506
      %v428 = vsel %vm427, %v426, %v408
      %v430 = vrot.slane %v428, 2
      %vm431 = vcmask 1045508
      %v432 = vsel %vm431, %v360, %v407
      %v433 = vsel %vm422, %v408, %v432
      %v435 = vrot.slane %v433, 4
      %vm436 = vcmask 1045504
      %v437 = vsel %vm436, %v407, %v360
      %v438 = vsel %vm427, %v408, %v437
      %v440 = vrot.slane %v438, 6
      %v442 = vsel %vm419, %v362, %v409
      %v444 = vsel %vm422, %v442, %v410
      %v445 = vsel %vm425, %v362, %v409
      %v446 = vsel %vm427, %v445, %v410
      %v448 = vrot.slane %v446, 2
      %v449 = vsel %vm431, %v362, %v409
      %v450 = vsel %vm422, %v410, %v449
      %v452 = vrot.slane %v450, 4
      %v453 = vsel %vm436, %v409, %v362
      %v454 = vsel %vm427, %v410, %v453
      %v456 = vrot.slane %v454, 6
      %v458 = vsel %vm419, %v364, %v411
      %v460 = vsel %vm422, %v458, %v412
      %v462 = vsel %vm419, %v366, %v413
      %v464 = vsel %vm422, %v462, %v414
      %v465 = vsel %vm425, %v366, %v413
      %v466 = vsel %vm427, %v465, %v414
      %v468 = vrot.slane %v466, 2
      %v469 = vsel %vm431, %v366, %v413
      %v470 = vsel %vm422, %v414, %v469
      %v472 = vrot.slane %v470, 4
      %v473 = vsel %vm436, %v413, %v366
      %v474 = vsel %vm427, %v414, %v473
      %v476 = vrot.slane %v474, 6
      %v478 = vsel %vm419, %v368, %v415
      %v480 = vsel %vm422, %v478, %v416
      %v481 = vsel %vm425, %v368, %v415
      %v482 = vsel %vm427, %v481, %v416
      %v484 = vrot.slane %v482, 2
      %v485 = vsel %vm431, %v368, %v415
      %v486 = vsel %vm422, %v416, %v485
      %v488 = vrot.slane %v486, 4
      %v489 = vsel %vm436, %v415, %v368
      %v490 = vsel %vm427, %v416, %v489
      %v492 = vrot.slane %v490, 6
      %v494 = vsel %vm419, %v370, %v417
      %v496 = vsel %vm422, %v494, %v418
      %v497 = vld [vmem:[%s1] sm:$0xf]
      %v498 = vld [vmem:[%s1 + $0x4] sm:$0xf]
      %v499 = vld [vmem:[%s1 + $0x8] sm:$0xf]
      %v500 = vld [vmem:[%s1 + $0xc] sm:$0xf]
      %v501 = vld [vmem:[%s1 + $0x10] sm:$0xf]
      %v502 = vld [vmem:[%s1 + $0x14] sm:$0xf]
      %v503 = vld [vmem:[%s1 + $0x18] sm:$0xf]
      %v504 = vld [vmem:[%s1 + $0x1c] sm:$0xf]
      %v505 = vld [vmem:[%s1 + $0x20] sm:$0xf]
      %v506 = vld [vmem:[%s1 + $0x24] sm:$0xf]
      %v507 = vld [vmem:[%s1 + $0x28] sm:$0xf]
      %v508 = vld [vmem:[%s1 + $0x2c] sm:$0xf]
      %v509 = vld [vmem:[%s1 + $0x30] sm:$0xf]
      %v510 = vld [vmem:[%s1 + $0x34] sm:$0xf]
      %v511 = vld [vmem:[%s1 + $0x38] sm:$0xf]
      %v512 = vld [vmem:[%s1 + $0x3c] sm:$0xf]
      %v513 = vld [vmem:[%s1 + $0x40] sm:$0xf]
      %v514 = vld [vmem:[%s1 + $0x44] sm:$0xf]
      %v515 = vld [vmem:[%s1 + $0x48] sm:$0xf]
      %v516 = vld [vmem:[%s1 + $0x4c] sm:$0xf]
      %v517 = vld [vmem:[%s1 + $0x50] sm:$0xf]
      %v518 = vld [vmem:[%s1 + $0x54] sm:$0xf]
      %v519 = vld [vmem:[%s1 + $0x58] sm:$0xf]
      %v520 = vld [vmem:[%s1 + $0x5c] sm:$0xf]
      %v521 = vld [vmem:[%s1 + $0x60] sm:$0xf]
      %v522 = vld [vmem:[%s1 + $0x64] sm:$0xf]
      %v523 = vld [vmem:[%s1 + $0x68] sm:$0xf]
      %v524 = vld [vmem:[%s1 + $0x6c] sm:$0xf]
      %v525 = vld [vmem:[%s1 + $0x70] sm:$0xf]
      %v526 = vld [vmem:[%s1 + $0x74] sm:$0xf]
      %v527 = vld [vmem:[%s1 + $0x78] sm:$0xf]
      %v528 = vld [vmem:[%s1 + $0x7c] sm:$0xf]
      %v529 = vld [vmem:[%s1 + $0x80] sm:$0xf]
      %v530 = vld [vmem:[%s1 + $0x84] sm:$0xf]
      %v531 = vld [vmem:[%s1 + $0x88] sm:$0xf]
      %v532 = vld [vmem:[%s1 + $0x8c] sm:$0xf]
      %v533 = vld [vmem:[%s2] sm:$0x7]
      %v534 = vperm.slane %v533, 0
      %535 = vst [vmem:[#allocation1] ss:$4 sm:$0xff] %v424
      %s537 = scalar_lea.vmem [#allocation1], 1
      %538 = vst [vmem:[%s537] ss:$4 sm:$0xff] %v430
      %s540 = scalar_lea.vmem [#allocation1], 2
      %541 = vst [vmem:[%s540] ss:$4 sm:$0xff] %v435
      %s543 = scalar_lea.vmem [#allocation1], 3
      %544 = vst [vmem:[%s543] ss:$4 sm:$0xff] %v440
      %s545 = scalar_lea.vmem [#allocation1], 32
      %546 = vst [vmem:[%s545] ss:$4 sm:$0xff] %v444
      %s548 = scalar_lea.vmem [#allocation1], 33
      %549 = vst [vmem:[%s548] ss:$4 sm:$0xff] %v448
      %s551 = scalar_lea.vmem [#allocation1], 34
      %552 = vst [vmem:[%s551] ss:$4 sm:$0xff] %v452
      %s554 = scalar_lea.vmem [#allocation1], 35
      %555 = vst [vmem:[%s554] ss:$4 sm:$0xff] %v456
      %v556 = vld.sshfl [vmem:[#allocation1] sm:$0xff pattern:$0x73625140]
      %v557 = vld.sshfl [vmem:[#allocation1 + $0x8] sm:$0xff pattern:$0x73625140]
      %v558 = vld.sshfl [vmem:[#allocation1 + $0x10] sm:$0xff pattern:$0x73625140]
      %v559 = vld.sshfl [vmem:[#allocation1 + $0x20] sm:$0xff pattern:$0x73625140]
      %v560 = vld.sshfl [vmem:[#allocation1 + $0x28] sm:$0xff pattern:$0x73625140]
      %v561 = vld.sshfl [vmem:[#allocation1 + $0x30] sm:$0xff pattern:$0x73625140]
      %562 = vst [vmem:[#allocation1] ss:$4 sm:$0xff] %v460
      %563 = vst [vmem:[%s537] ss:$4 sm:$0xff] %v464
      %565 = vst [vmem:[%s540] ss:$4 sm:$0xff] %v468
      %567 = vst [vmem:[%s543] ss:$4 sm:$0xff] %v472
      %569 = vst [vmem:[%s545] ss:$4 sm:$0xff] %v476
      %570 = vst [vmem:[%s548] ss:$4 sm:$0xff] %v480
      %572 = vst [vmem:[%s551] ss:$4 sm:$0xff] %v484
      %574 = vst [vmem:[%s554] ss:$4 sm:$0xff] %v488
      %v575 = vld.sshfl [vmem:[#allocation1] sm:$0xff pattern:$0x73625140]
      %v576 = vld.sshfl [vmem:[#allocation1 + $0x8] sm:$0xff pattern:$0x73625140]
      %v577 = vld.sshfl [vmem:[#allocation1 + $0x10] sm:$0xff pattern:$0x73625140]
      %v578 = vld.sshfl [vmem:[#allocation1 + $0x20] sm:$0xff pattern:$0x73625140]
      %v579 = vld.sshfl [vmem:[#allocation1 + $0x28] sm:$0xff pattern:$0x73625140]
      %v580 = vld.sshfl [vmem:[#allocation1 + $0x30] sm:$0xff pattern:$0x73625140]
      %582 = vst [vmem:[#allocation1] ss:$4 sm:$0xff] %v492
      %583 = vst [vmem:[%s537] ss:$4 sm:$0xff] %v496
      %v584 = vld.sshfl [vmem:[#allocation1] sm:$0xff pattern:$0x73625140]
      %v585 = vld.sshfl [vmem:[#allocation1 + $0x8] sm:$0xff pattern:$0x73625140]
      %v586 = vld.sshfl [vmem:[#allocation1 + $0x10] sm:$0xff pattern:$0x73625140]
      %v633 = vunpack.c.l.b16 %v497
      %v634 = vunpack.c.l.b16 %v498
      %v635 = vunpack.c.l.b16 %v499
      %v636 = vunpack.c.l.b16 %v500
      %v637 = vunpack.c.l.b16 %v501
      %v638 = vunpack.c.l.b16 %v502
      %v639 = vunpack.c.l.b16 %v503
      %v640 = vunpack.c.l.b16 %v504
      %v641 = vunpack.c.l.b16 %v505
      %v642 = vunpack.c.l.b16 %v506
      %v643 = vunpack.c.l.b16 %v507
      %v644 = vunpack.c.l.b16 %v508
      %v645 = vunpack.c.l.b16 %v509
      %v646 = vunpack.c.l.b16 %v510
      %v647 = vunpack.c.l.b16 %v511
      %v648 = vunpack.c.l.b16 %v512
      %v649 = vunpack.c.l.b16 %v513
      %v650 = vunpack.c.l.b16 %v514
      %v651 = vunpack.c.l.b16 %v515
      %v652 = vunpack.c.l.b16 %v516
      %v653 = vunpack.c.l.b16 %v517
      %v654 = vunpack.c.l.b16 %v518
      %v655 = vunpack.c.l.b16 %v519
      %v656 = vunpack.c.l.b16 %v520
      %v657 = vunpack.c.l.b16 %v521
      %v658 = vunpack.c.l.b16 %v522
      %v659 = vunpack.c.l.b16 %v523
      %v660 = vunpack.c.l.b16 %v524
      %v661 = vunpack.c.l.b16 %v525
      %v662 = vunpack.c.l.b16 %v526
      %v663 = vunpack.c.l.b16 %v527
      %v664 = vunpack.c.l.b16 %v528
      %v665 = vunpack.c.l.b16 %v529
      %v666 = vunpack.c.l.b16 %v530
      %v667 = vunpack.c.l.b16 %v531
      %v668 = vunpack.c.l.b16 %v532
      %v669 = vpack.c.b16 %v634, %v633
      %v670 = vpack.c.b16 %v636, %v635
      %v671 = vpack.c.b16 %v638, %v637
      %v672 = vpack.c.b16 %v640, %v639
      %v673 = vpack.c.b16 %v642, %v641
      %v674 = vpack.c.b16 %v644, %v643
      %v675 = vpack.c.b16 %v646, %v645
      %v676 = vpack.c.b16 %v648, %v647
      %v677 = vpack.c.b16 %v650, %v649
      %v678 = vpack.c.b16 %v652, %v651
      %v679 = vpack.c.b16 %v654, %v653
      %v680 = vpack.c.b16 %v656, %v655
      %v681 = vpack.c.b16 %v658, %v657
      %v682 = vpack.c.b16 %v660, %v659
      %v683 = vpack.c.b16 %v662, %v661
      %v684 = vpack.c.b16 %v664, %v663
      %v685 = vpack.c.b16 %v666, %v665
      %v686 = vpack.c.b16 %v668, %v667
      %v705 = vsel %vm344, %v558, 0
      %v707 = vsel %vm344, %v561, 0
      %v709 = vsel %vm344, %v577, 0
      %v711 = vsel %vm344, %v580, 0
      %v713 = vsel %vm344, %v586, 0
      %715 = vmatpush.bf16.msra.mxu0 %v676
      %716 = vmatpush.bf16.msra.mxu0 %v675
      %717 = vmatpush.bf16.msra.mxu0 %v674
      %718 = vmatpush.bf16.msra.mxu0 %v673
      %719 = vmatpush.bf16.msra.mxu0 %v672
      %720 = vmatpush.bf16.msra.mxu0 %v671
      %721 = vmatpush.bf16.msra.mxu0 %v670
      %722 = vmatpush.bf16.msra.mxu0 %v669
      %723 = vmatmul.bf16.gmra.mxu0 %v556
      %v724 = vpop.f32.mrf.mxu0
      %v725 = vadd.f32 %v534, %v724
      %v726 = vpop.f32.mrf.mxu0
      %v727 = vadd.f32 %v534, %v726
      %728 = vmatmul.bf16.gmra.mxu0 %v559
      %v729 = vpop.f32.mrf.mxu0
      %v730 = vadd.f32 %v534, %v729
      %v731 = vpop.f32.mrf.mxu0
      %v732 = vadd.f32 %v534, %v731
      %733 = vmatmul.bf16.gmra.mxu0 %v575
      %v734 = vpop.f32.mrf.mxu0
      %v735 = vadd.f32 %v534, %v734
      %v736 = vpop.f32.mrf.mxu0
      %v737 = vadd.f32 %v534, %v736
      %738 = vmatmul.bf16.gmra.mxu0 %v578
      %v739 = vpop.f32.mrf.mxu0
      %v740 = vadd.f32 %v534, %v739
      %v741 = vpop.f32.mrf.mxu0
      %v742 = vadd.f32 %v534, %v741
      %743 = vmatmul.bf16.gmra.mxu0 %v584
      %v744 = vpop.f32.mrf.mxu0
      %v745 = vadd.f32 %v534, %v744
      %v746 = vpop.f32.mrf.mxu0
      %747 = vdwg.mxu0
      %748 = vmatpush.bf16.msra.mxu0 %v684
      %749 = vmatpush.bf16.msra.mxu0 %v683
      %750 = vmatpush.bf16.msra.mxu0 %v682
      %751 = vmatpush.bf16.msra.mxu0 %v681
      %752 = vmatpush.bf16.msra.mxu0 %v680
      %753 = vmatpush.bf16.msra.mxu0 %v679
      %754 = vmatpush.bf16.msra.mxu0 %v678
      %755 = vmatpush.bf16.msra.mxu0 %v677
      %756 = vmatmul.bf16.gmra.mxu0 %v557
      %v757 = vpop.f32.mrf.mxu0
      %v758 = vadd.f32 %v725, %v757
      %v759 = vpop.f32.mrf.mxu0
      %v760 = vadd.f32 %v727, %v759
      %761 = vmatmul.bf16.gmra.mxu0 %v560
      %v762 = vpop.f32.mrf.mxu0
      %v763 = vadd.f32 %v730, %v762
      %v764 = vpop.f32.mrf.mxu0
      %v765 = vadd.f32 %v732, %v764
      %766 = vmatmul.bf16.gmra.mxu0 %v576
      %v767 = vpop.f32.mrf.mxu0
      %v768 = vadd.f32 %v735, %v767
      %v769 = vpop.f32.mrf.mxu0
      %v770 = vadd.f32 %v737, %v769
      %771 = vmatmul.bf16.gmra.mxu0 %v579
      %v772 = vpop.f32.mrf.mxu0
      %v773 = vadd.f32 %v740, %v772
      %v774 = vpop.f32.mrf.mxu0
      %v775 = vadd.f32 %v742, %v774
      %776 = vmatmul.bf16.gmra.mxu0 %v585
      %v777 = vpop.f32.mrf.mxu0
      %v778 = vadd.f32 %v745, %v777
      %v779 = vpop.f32.mrf.mxu0
      %780 = vdwg.mxu0
      %781 = vmatpush.bf16.msra.mxu0 0
      %782 = vmatpush.bf16.msra.mxu0 0
      %783 = vmatpush.bf16.msra.mxu0 0
      %784 = vmatpush.bf16.msra.mxu0 0
      %785 = vmatpush.bf16.msra.mxu0 0
      %786 = vmatpush.bf16.msra.mxu0 0
      %787 = vmatpush.bf16.msra.mxu0 %v686
      %788 = vmatpush.bf16.msra.mxu0 %v685
      %789 = vmatmul.bf16.gmra.mxu0 %v705
      %v790 = vpop.f32.mrf.mxu0
      %v791 = vadd.f32 %v758, %v790
      %v792 = vpop.f32.mrf.mxu0
      %v793 = vadd.f32 %v760, %v792
      %794 = vmatmul.bf16.gmra.mxu0 %v707
      %v795 = vpop.f32.mrf.mxu0
      %v796 = vadd.f32 %v763, %v795
      %v797 = vpop.f32.mrf.mxu0
      %v798 = vadd.f32 %v765, %v797
      %799 = vmatmul.bf16.gmra.mxu0 %v709
      %v800 = vpop.f32.mrf.mxu0
      %v801 = vadd.f32 %v768, %v800
      %v802 = vpop.f32.mrf.mxu0
      %v803 = vadd.f32 %v770, %v802
      %804 = vmatmul.bf16.gmra.mxu0 %v711
      %v805 = vpop.f32.mrf.mxu0
      %v806 = vadd.f32 %v773, %v805
      %v807 = vpop.f32.mrf.mxu0
      %v808 = vadd.f32 %v775, %v807
      %809 = vmatmul.bf16.gmra.mxu0 %v713
      %v810 = vpop.f32.mrf.mxu0
      %v811 = vadd.f32 %v778, %v810
      %v812 = vpop.f32.mrf.mxu0
      %813 = vdwg.mxu0
      %vm814 = vcmp.ge.f32.partialorder %v791, 0.0
      %vm815 = vcmp.ge.f32.partialorder %v793, 0.0
      %vm816 = vcmp.ge.f32.partialorder %v796, 0.0
      %vm817 = vcmp.ge.f32.partialorder %v798, 0.0
      %vm818 = vcmp.ge.f32.partialorder %v801, 0.0
      %vm819 = vcmp.ge.f32.partialorder %v803, 0.0
      %vm820 = vcmp.ge.f32.partialorder %v806, 0.0
      %vm821 = vcmp.ge.f32.partialorder %v808, 0.0
      %vm822 = vcmp.ge.f32.partialorder %v811, 0.0
      %v823 = vmul.f32 %v791, 0.2
      %v824 = vmul.f32 %v793, 0.2
      %v825 = vmul.f32 %v796, 0.2
      %v826 = vmul.f32 %v798, 0.2
      %v827 = vmul.f32 %v801, 0.2
      %v828 = vmul.f32 %v803, 0.2
      %v829 = vmul.f32 %v806, 0.2
      %v830 = vmul.f32 %v808, 0.2
      %v831 = vmul.f32 %v811, 0.2
      %v832 = vsel %vm814, %v791, %v823
      %v833 = vsel %vm815, %v793, %v824
      %v834 = vsel %vm816, %v796, %v825
      %v835 = vsel %vm817, %v798, %v826
      %v836 = vsel %vm818, %v801, %v827
      %v837 = vsel %vm819, %v803, %v828
      %v838 = vsel %vm820, %v806, %v829
      %v839 = vsel %vm821, %v808, %v830
      %v840 = vsel %vm822, %v811, %v831
      %v841 = vperm.slane %v533, 1
      %v842 = vmul.f32 %v832, %v841
      %v843 = vmul.f32 %v833, %v841
      %v844 = vmul.f32 %v834, %v841
      %v845 = vmul.f32 %v835, %v841
      %v846 = vmul.f32 %v836, %v841
      %v847 = vmul.f32 %v837, %v841
      %v848 = vmul.f32 %v838, %v841
      %v849 = vmul.f32 %v839, %v841
      %v850 = vmul.f32 %v840, %v841
      %v851 = vperm.slane %v533, 2
      %v852 = vadd.f32 %v842, %v851
      %v853 = vadd.f32 %v843, %v851
      %v854 = vadd.f32 %v844, %v851
      %v855 = vadd.f32 %v845, %v851
      %v856 = vadd.f32 %v846, %v851
      %v857 = vadd.f32 %v847, %v851
      %v858 = vadd.f32 %v848, %v851
      %v859 = vadd.f32 %v849, %v851
      %v860 = vadd.f32 %v850, %v851
      %v870 = vrot.slane %v852, 4
      %v871 = vrot.slane %v853, 4
      %v872 = vrot.slane %v854, 4
      %v873 = vrot.slane %v855, 4
      %v874 = vrot.slane %v856, 4
      %v875 = vrot.slane %v857, 4
      %v876 = vrot.slane %v858, 4
      %v877 = vrot.slane %v859, 4
      %v878 = vrot.slane %v860, 4
      %879 = vst [vmem:[#allocation1] ss:$2 sm:$0xff] %v852
      %s880 = scalar_lea.vmem [#allocation1], 1
      %881 = vst [vmem:[%s880] ss:$2 sm:$0xff] %v870
      %s882 = scalar_lea.vmem [#allocation1], 16
      %883 = vst [vmem:[%s882] ss:$2 sm:$0xff] %v853
      %s884 = scalar_lea.vmem [#allocation1], 17
      %885 = vst [vmem:[%s884] ss:$2 sm:$0xff] %v871
      %s886 = scalar_lea.vmem [#allocation1], 32
      %887 = vst [vmem:[%s886] ss:$2 sm:$0xff] %v854
      %s888 = scalar_lea.vmem [#allocation1], 33
      %889 = vst [vmem:[%s888] ss:$2 sm:$0xff] %v872
      %s890 = scalar_lea.vmem [#allocation1], 48
      %891 = vst [vmem:[%s890] ss:$2 sm:$0xff] %v855
      %s892 = scalar_lea.vmem [#allocation1], 49
      %893 = vst [vmem:[%s892] ss:$2 sm:$0xff] %v873
      %v894 = vld.sshfl [vmem:[#allocation1] sm:$0xff pattern:$0x75316420]
      %v895 = vld.sshfl [vmem:[#allocation1 + $0x10] sm:$0xff pattern:$0x75316420]
      %v896 = vld.sshfl [vmem:[#allocation1 + $0x20] sm:$0xff pattern:$0x75316420]
      %v897 = vld.sshfl [vmem:[#allocation1 + $0x30] sm:$0xff pattern:$0x75316420]
      %898 = vst [vmem:[#allocation1] ss:$2 sm:$0xff] %v856
      %v899 = vld.sshfl [vmem:[#allocation1] sm:$0xff pattern:$0x75316420]
      %900 = vst [vmem:[%s882] ss:$2 sm:$0xff] %v874
      %901 = vst [vmem:[%s884] ss:$2 sm:$0xff] %v857
      %902 = vst [vmem:[%s886] ss:$2 sm:$0xff] %v875
      %903 = vst [vmem:[%s888] ss:$2 sm:$0xff] %v858
      %904 = vst [vmem:[%s890] ss:$2 sm:$0xff] %v876
      %905 = vst [vmem:[%s892] ss:$2 sm:$0xff] %v859
      %v906 = vld.sshfl [vmem:[#allocation1 + $0x10] sm:$0xff pattern:$0x75316420]
      %v907 = vld.sshfl [vmem:[#allocation1 + $0x20] sm:$0xff pattern:$0x75316420]
      %v908 = vld.sshfl [vmem:[#allocation1 + $0x30] sm:$0xff pattern:$0x75316420]
      %909 = vst [vmem:[#allocation1] ss:$2 sm:$0xff] %v877
      %910 = vst [vmem:[%s880] ss:$2 sm:$0xff] %v860
      %911 = vst [vmem:[%s882] ss:$2 sm:$0xff] %v878
      %v912 = vld.sshfl [vmem:[#allocation1] sm:$0xff pattern:$0x75316420]
      %v913 = vld.sshfl [vmem:[#allocation1 + $0x10] sm:$0xff pattern:$0x75316420]
      %v924 = vpack.c.bf16 %v894, %v894
      %v925 = vpack.c.bf16 %v895, %v895
      %v926 = vpack.c.bf16 %v896, %v896
      %v927 = vpack.c.bf16 %v897, %v897
      %v928 = vpack.c.bf16 %v899, %v899
      %v929 = vpack.c.bf16 %v906, %v906
      %v930 = vpack.c.bf16 %v907, %v907
      %v931 = vpack.c.bf16 %v908, %v908
      %v932 = vpack.c.bf16 %v912, %v912
      %v933 = vpack.c.bf16 %v913, %v913
      %vm934 = vcmask 257024
      %935 = vst.msk [vmem:[%s170] sm:$0xf] %vm934, %v924
      %936 = vst.msk [vmem:[%s170 + $0x4] sm:$0xf] %vm934, %v925
      %937 = vst.msk [vmem:[%s170 + $0x8] sm:$0xf] %vm934, %v926
      %938 = vst.msk [vmem:[%s170 + $0xc] sm:$0xf] %vm934, %v927
      %vm939 = vcmask 254976
      %940 = vst.msk [vmem:[%s170 + $0x10] sm:$0x3] %vm939, %v928
      %941 = vst.msk [vmem:[%s170 + $0x14] sm:$0xf] %vm934, %v929
      %942 = vst.msk [vmem:[%s170 + $0x18] sm:$0xf] %vm934, %v930
      %943 = vst.msk [vmem:[%s170 + $0x1c] sm:$0xf] %vm934, %v931
      %944 = vst.msk [vmem:[%s170 + $0x20] sm:$0xf] %vm934, %v932
      %945 = vst.msk [vmem:[%s170 + $0x24] sm:$0x3] %vm939, %v933
      %p946 = scmp.lt.s32.totalorder %s14, 3
      %s947 = scalar_select %p946, %s14, 3
      %s948 = smul.addr %s947, 10
      %s949 = smul.addr %s948, 4
      %s950 = scalar_lea.vmem %s3, %s949
      // Predicated region
      $region33: #{single_window_forward.9} parent=31 // pred_check
        %p951 = pneg %p100
      $region34: #{single_window_forward.9} parent=31 // pred_check_branch
        %953 = sbr.rel (%p951) target = $region36
      $region35: #{single_window_forward.9} parent=31 // pred_region
        _
      $region36: #{single_window_forward.9} parent=31 // pred_fallthru
        _
    $region32: #{single_window_forward.9} parent=5 // pred_fallthru
      _
    %p954 = scmp.le.s32.totalorder 2, %s9
    // Predicated region
    $region37: #{single_window_forward.9} parent=5 // pred_check
      %p955 = pneg %p954
    $region38: #{single_window_forward.9} parent=5 // pred_check_branch
      %957 = sbr.rel (%p955) target = $region40
    $region39: #{single_window_forward.9} parent=5 // pred_region
      %s958 = ssub.s32 %s9, 2
      // Predicated region
      $region41: #{single_window_forward.9} parent=39 // pred_check
        %p959 = pneg %p106
      $region42: #{single_window_forward.9} parent=39 // pred_check_branch
        %961 = sbr.rel (%p959) target = $region44
      $region43: #{single_window_forward.9} parent=39 // pred_region
        %p962 = scmp.lt.s32.totalorder %s15, 3
        %s963 = scalar_select %p962, %s15, 3
        %s964 = smul.addr %s963, 10
        %s965 = smul.addr %s964, 4
        %s966 = scalar_lea.vmem %s3, %s965
      $region44: #{single_window_forward.9} parent=39 // pred_fallthru
        _
    $region40: #{single_window_forward.9} parent=5 // pred_fallthru
      _
  $region6: #{single_window_forward.9} parent=0 // loop_footer
    %s13 = sadd.s32 1, %s9
  $region7: #{single_window_forward.9} parent=0 // loop_footer_branch
    %8 = sbr.rel target = $region3
  $region8: #{single_window_forward.9} parent=0 // loop_exit
    _

// kernel: single_window_forward.11
$region0: #{single_window_forward.11}
  #allocation0 [shape = 'u32[]', space=smem, size = 0x4, offset = 0x4, fixed_abs, tag = 'smem constant byte address 0x4 - core index']
  #allocation1 [shape = 'u32[72,128]{1,0:T(1,128)}', space=vmem, size = 0x9000, scoped, tag = 'internal scratch']
  %s0 = inlined_call_operand.vmem [shape: bf16[4,2,19,128], index: 0, kind: input, shape index: {}]
  %s1 = inlined_call_operand.vmem [shape: bf16[288,32], index: 1, kind: input, shape index: {}]
  %s2 = inlined_call_operand.vmem [shape: f32[1,32], index: 2, kind: input, shape index: {}]
  %s3 = inlined_call_operand.vmem [shape: f32[2,18,32], index: 3, kind: input, shape index: {}]
  %s4 = inlined_call_operand.vmem [shape: f32[4,1,2], index: 4, kind: output, shape index: {}]
  %s5 = sld [smem:[#allocation0]]
  $region49: #{single_window_forward.11} parent=0
    _
  %s7 = ssub.s32 1, %s5
  %s8 = scalar_select 0, %s7, %s5
  loop: start=0, step=1, limit=6
  $region2: #{single_window_forward.11} parent=0 // loop_pre_header
    _
  $region3: #{single_window_forward.11} parent=0 // loop_header
    %s10 = sphi 0, %s14
    %p11 = scmp.ge.s32.totalorder %s10, 6
    %s20 = sphi 0, %s22
    %s23 = sphi 0, %s20
    %s24 = sphi 0, %s23
    %s40 = sphi 0, %s24
    %s44 = sphi 0, %s44
    %s46 = sphi 0, %s44
    %s47 = sphi 0, %s46
    %s61 = sphi 0, %s47
    %s65 = sphi 0, %s65
    %s67 = sphi 0, %s65
    %s68 = sphi 0, %s67
    %s82 = sphi 0, %s68
    %s86 = sphi 0, %s86
    %s88 = sphi 0, %s86
    %s89 = sphi 0, %s88
    %s103 = sphi 0, %s89
    %s109 = sphi 0, %s111
    %s112 = sphi 0, %s109
    %s113 = sphi 0, %s112
    %s129 = sphi 0, %s113
  $region4: #{single_window_forward.11} parent=0 // loop_header_branch
    %13 = sbr.rel (%p11) target = $region8
  $region5: #{single_window_forward.11} parent=0 // loop_body
    %s15 = ssub.s32 %s10, 1
    %s16 = ssub.s32 %s10, 2
    %s17 = sadd.s32 %s10, 1
    %s18 = ssub.s32 %s10, %s17
    %p19 = scmp.eq.s32.totalorder %s18, 0
    %s21 = sadd.s32 %s20, 1
    %s22 = scalar_select %p19, %s20, %s21
    %p25 = pneg %p19
    %p26 = scmp.eq.s32.totalorder %s10, 3
    %p27 = por %p25, %p26
    %p28 = scmp.ne.s32.totalorder %s20, %s23
    %p29 = scmp.eq.s32.totalorder %s10, 0
    %p30 = por %p28, %p29
    %p31 = scmp.ne.s32.totalorder %s20, %s23
    %p32 = scmp.eq.s32.totalorder %s15, 3
    %p33 = por %p31, %p32
    %p34 = scmp.ne.s32.totalorder %s23, %s24
    %p35 = scmp.eq.s32.totalorder %s15, 0
    %p36 = por %p34, %p35
    %p37 = scmp.ne.s32.totalorder %s23, %s24
    %p38 = scmp.eq.s32.totalorder %s16, 3
    %p39 = por %p37, %p38
    %p41 = scmp.ne.s32.totalorder %s24, %s40
    %p42 = scmp.eq.s32.totalorder %s16, 0
    %p43 = por %p41, %p42
    %s45 = sadd.s32 %s44, 1
    %p48 = scmp.eq.s32.totalorder %s10, 3
    %p49 = scmp.ne.s32.totalorder %s44, %s46
    %p50 = scmp.eq.s32.totalorder %s10, 0
    %p51 = por %p49, %p50
    %p52 = scmp.ne.s32.totalorder %s44, %s46
    %p53 = scmp.eq.s32.totalorder %s15, 3
    %p54 = por %p52, %p53
    %p55 = scmp.ne.s32.totalorder %s46, %s47
    %p56 = scmp.eq.s32.totalorder %s15, 0
    %p57 = por %p55, %p56
    %p58 = scmp.ne.s32.totalorder %s46, %s47
    %p59 = scmp.eq.s32.totalorder %s16, 3
    %p60 = por %p58, %p59
    %p62 = scmp.ne.s32.totalorder %s47, %s61
    %p63 = scmp.eq.s32.totalorder %s16, 0
    %p64 = por %p62, %p63
    %s66 = sadd.s32 %s65, 1
    %p69 = scmp.eq.s32.totalorder %s10, 3
    %p70 = scmp.ne.s32.totalorder %s65, %s67
    %p71 = scmp.eq.s32.totalorder %s10, 0
    %p72 = por %p70, %p71
    %p73 = scmp.ne.s32.totalorder %s65, %s67
    %p74 = scmp.eq.s32.totalorder %s15, 3
    %p75 = por %p73, %p74
    %p76 = scmp.ne.s32.totalorder %s67, %s68
    %p77 = scmp.eq.s32.totalorder %s15, 0
    %p78 = por %p76, %p77
    %p79 = scmp.ne.s32.totalorder %s67, %s68
    %p80 = scmp.eq.s32.totalorder %s16, 3
    %p81 = por %p79, %p80
    %p83 = scmp.ne.s32.totalorder %s68, %s82
    %p84 = scmp.eq.s32.totalorder %s16, 0
    %p85 = por %p83, %p84
    %s87 = sadd.s32 %s86, 1
    %p90 = scmp.eq.s32.totalorder %s10, 3
    %p91 = scmp.ne.s32.totalorder %s86, %s88
    %p92 = scmp.eq.s32.totalorder %s10, 0
    %p93 = por %p91, %p92
    %p94 = scmp.ne.s32.totalorder %s86, %s88
    %p95 = scmp.eq.s32.totalorder %s15, 3
    %p96 = por %p94, %p95
    %p97 = scmp.ne.s32.totalorder %s88, %s89
    %p98 = scmp.eq.s32.totalorder %s15, 0
    %p99 = por %p97, %p98
    %p100 = scmp.ne.s32.totalorder %s88, %s89
    %p101 = scmp.eq.s32.totalorder %s16, 3
    %p102 = por %p100, %p101
    %p104 = scmp.ne.s32.totalorder %s89, %s103
    %p105 = scmp.eq.s32.totalorder %s16, 0
    %p106 = por %p104, %p105
    %s107 = ssub.s32 %s10, %s17
    %p108 = scmp.eq.s32.totalorder %s107, 0
    %s110 = sadd.s32 %s109, 1
    %s111 = scalar_select %p108, %s109, %s110
    %p114 = pneg %p108
    %p115 = scmp.eq.s32.totalorder %s10, 3
    %p116 = por %p114, %p115
    %p117 = scmp.ne.s32.totalorder %s109, %s112
    %p118 = scmp.eq.s32.totalorder %s10, 0
    %p119 = por %p117, %p118
    %p120 = scmp.ne.s32.totalorder %s109, %s112
    %p121 = scmp.eq.s32.totalorder %s15, 3
    %p122 = por %p120, %p121
    %p123 = scmp.ne.s32.totalorder %s112, %s113
    %p124 = scmp.eq.s32.totalorder %s15, 0
    %p125 = por %p123, %p124
    %p126 = scmp.ne.s32.totalorder %s112, %s113
    %p127 = scmp.eq.s32.totalorder %s16, 3
    %p128 = por %p126, %p127
    %p130 = scmp.ne.s32.totalorder %s113, %s129
    %p131 = scmp.eq.s32.totalorder %s16, 0
    %p132 = por %p130, %p131
    %p133 = scmp.le.s32.totalorder 1, %s10
    %p134 = scmp.lt.s32.totalorder %s10, 5
    %p135 = pnand %p133, %p134
    %p136 = pneg %p135
    // Predicated region
    $region9: #{single_window_forward.11} parent=5 // pred_check
      _
    $region10: #{single_window_forward.11} parent=5 // pred_check_branch
      %138 = sbr.rel (%p135) target = $region12
    $region11: #{single_window_forward.11} parent=5 // pred_region
      %s139 = ssub.s32 %s10, 1
      // Predicated region
      $region13: #{single_window_forward.11} parent=11 // pred_check
        %p140 = pneg %p57
      $region14: #{single_window_forward.11} parent=11 // pred_check_branch
        %142 = sbr.rel (%p140) target = $region16
      $region15: #{single_window_forward.11} parent=11 // pred_region
        _
      $region16: #{single_window_forward.11} parent=11 // pred_fallthru
        _
      // Predicated region
      $region17: #{single_window_forward.11} parent=11 // pred_check
        %p143 = pneg %p78
      $region18: #{single_window_forward.11} parent=11 // pred_check_branch
        %145 = sbr.rel (%p143) target = $region20
      $region19: #{single_window_forward.11} parent=11 // pred_region
        _
      $region20: #{single_window_forward.11} parent=11 // pred_fallthru
        _
      // Predicated region
      $region21: #{single_window_forward.11} parent=11 // pred_check
        %p146 = pneg %p99
      $region22: #{single_window_forward.11} parent=11 // pred_check_branch
        %148 = sbr.rel (%p146) target = $region24
      $region23: #{single_window_forward.11} parent=11 // pred_region
        _
      $region24: #{single_window_forward.11} parent=11 // pred_fallthru
        _
    $region12: #{single_window_forward.11} parent=5 // pred_fallthru
      _
    %p149 = scmp.lt.s32.totalorder %s10, 4
    // Predicated region
    $region25: #{single_window_forward.11} parent=5 // pred_check
      %p150 = pneg %p149
    $region26: #{single_window_forward.11} parent=5 // pred_check_branch
      %152 = sbr.rel (%p150) target = $region28
    $region27: #{single_window_forward.11} parent=5 // pred_region
      // Predicated region
      $region29: #{single_window_forward.11} parent=27 // pred_check
        %p153 = pneg %p30
      $region30: #{single_window_forward.11} parent=27 // pred_check_branch
        %155 = sbr.rel (%p153) target = $region32
      $region31: #{single_window_forward.11} parent=27 // pred_region
        %p156 = scmp.lt.s32.totalorder %s10, 3
        %s157 = scalar_select %p156, %s10, 3
        %s158 = smul.addr %s157, 6
        %s159 = smul.addr %s158, 4
        %s160 = scalar_lea.vmem %s0, %s159
      $region32: #{single_window_forward.11} parent=27 // pred_fallthru
        _
    $region28: #{single_window_forward.11} parent=5 // pred_fallthru
      _
    %p161 = scmp.le.s32.totalorder 1, %s10
    %p162 = scmp.lt.s32.totalorder %s10, 5
    %p163 = pnand %p161, %p162
    %p164 = pneg %p163
    // Predicated region
    $region33: #{single_window_forward.11} parent=5 // pred_check
      _
    $region34: #{single_window_forward.11} parent=5 // pred_check_branch
      %166 = sbr.rel (%p163) target = $region36
    $region35: #{single_window_forward.11} parent=5 // pred_region
      %s167 = ssub.s32 %s10, 1
      %p168 = scmp.lt.s32.totalorder %s15, 3
      %s169 = scalar_select %p168, %s15, 3
      %s170 = smul.addr %s169, 6
      %s171 = smul.addr %s170, 4
      %s172 = scalar_lea.vmem %s0, %s171
      %p173 = pneg %p36
      %p174 = pneg %p33
      %p175 = pneg %p57
      %p176 = pneg %p54
      %p177 = pneg %p78
      %p178 = pneg %p75
      %p179 = pneg %p99
      %p180 = pneg %p96
      %p181 = pneg %p125
      %p182 = pneg %p122
      %p183 = scmp.lt.s32.totalorder %s15, 3
      %s184 = scalar_select %p183, %s15, 3
      %s185 = scalar_lea.vmem %s4, %s184
      %p186 = scmp.lt.s32.totalorder %s15, 3
      %s187 = scalar_select %p186, %s15, 3
      %s188 = smul.addr %s187, 6
      %s189 = smul.addr %s188, 4
      %s190 = scalar_lea.vmem %s0, %s189
      %p191 = scmp.lt.s32.totalorder %s15, 3
      %s192 = scalar_select %p191, %s15, 3
      %s193 = scalar_lea.vmem %s4, %s192
      %v195 = vld [vmem:[%s190] sm:$0xf]
      %v196 = vld [vmem:[%s190 + $0x4] sm:$0xf]
      %v197 = vld [vmem:[%s190 + $0x8] sm:$0x3]
      %v198 = vld [vmem:[%s190 + $0xc] sm:$0xf]
      %v199 = vld [vmem:[%s190 + $0x10] sm:$0xf]
      %v200 = vld [vmem:[%s190 + $0x14] sm:$0x3]
      %v204 = vunpack.c.l.b16 %v195
      %v205 = vunpack.c.l.b16 %v196
      %v206 = vunpack.c.l.b16 %v197
      %v207 = vpack.c.b16 %v205, %v204
      %v208 = vpack.c.b16 %v206, %v206
      %vm209 = vsmask.f32 7424
      %v211 = vshrl.u32 %v207, 16
      %v213 = vshll.u32 %v207, 16
      %v215 = vrot.slane %v213, 1
      %v216 = vor.u32 %v211, %v215
      %v218 = vshll.u32 %v208, 16
      %v220 = vrot.slane %v218, 1
      %v221 = vsel %vm209, %v216, %v220
      %v222 = vshrl.u32 %v208, 16
      %v224 = vor.u32 %v222, %v220
      %225 = vrot.lane.b32.xlu0 %v221, 64
      %v226 = vpop.permute.xlu0 %225
      %227 = vrot.lane.b32.xlu0 %v224, 64
      %v228 = vpop.permute.xlu0 %227
      %229 = vrot.lane.b32.xlu0 %v207, 32
      %v230 = vpop.permute.xlu0 %229
      %231 = vrot.lane.b32.xlu0 %v208, 32
      %v232 = vpop.permute.xlu0 %231
      %233 = vrot.lane.b32.xlu0 %v221, 96
      %v234 = vpop.permute.xlu0 %233
      %235 = vrot.lane.b32.xlu0 %v224, 96
      %v236 = vpop.permute.xlu0 %235
      %v240 = vunpack.c.l.b16 %v198
      %v241 = vunpack.c.l.b16 %v199
      %v242 = vunpack.c.l.b16 %v200
      %v243 = vpack.c.b16 %v241, %v240
      %v244 = vpack.c.b16 %v242, %v242
      %245 = vrot.lane.b32.xlu0 %v243, 64
      %v246 = vpop.permute.xlu0 %245
      %247 = vrot.lane.b32.xlu0 %v244, 64
      %v248 = vpop.permute.xlu0 %247
      %v250 = vshrl.u32 %v243, 16
      %v252 = vshll.u32 %v243, 16
      %v254 = vrot.slane %v252, 1
      %v255 = vor.u32 %v250, %v254
      %v257 = vshll.u32 %v244, 16
      %v259 = vrot.slane %v257, 1
      %v260 = vsel %vm209, %v255, %v259
      %v261 = vshrl.u32 %v244, 16
      %v263 = vor.u32 %v261, %v259
      %vm264 = vcmask 261120
      %vm265 = vcmask 523264
      %v267 = vsel %vm265, %v207, %v226
      %v269 = vsel %vm265, %v208, %v228
      %vm270 = vcmask 785408
      %v272 = vsel %vm270, %v267, %v230
      %v275 = vsel %vm270, %v269, %v232
      %v278 = vsel %vm264, %v230, %v234
      %v280 = vsel %vm264, %v232, %v236
      %v282 = vsel %vm265, %v278, %v246
      %v284 = vsel %vm265, %v280, %v248
      %v285 = vsel %vm270, %v282, %v246
      %v287 = vsel %vm270, %v284, %v248
      %v289 = vld [vmem:[%s1] sm:$0xf]
      %v290 = vld [vmem:[%s1 + $0x4] sm:$0xf]
      %v291 = vld [vmem:[%s1 + $0x8] sm:$0xf]
      %v292 = vld [vmem:[%s1 + $0xc] sm:$0xf]
      %v293 = vld [vmem:[%s1 + $0x10] sm:$0xf]
      %v294 = vld [vmem:[%s1 + $0x14] sm:$0xf]
      %v295 = vld [vmem:[%s1 + $0x18] sm:$0xf]
      %v296 = vld [vmem:[%s1 + $0x1c] sm:$0xf]
      %v297 = vld [vmem:[%s1 + $0x20] sm:$0xf]
      %v298 = vld [vmem:[%s1 + $0x24] sm:$0xf]
      %v299 = vld [vmem:[%s1 + $0x28] sm:$0xf]
      %v300 = vld [vmem:[%s1 + $0x2c] sm:$0xf]
      %v301 = vld [vmem:[%s1 + $0x30] sm:$0xf]
      %v302 = vld [vmem:[%s1 + $0x34] sm:$0xf]
      %v303 = vld [vmem:[%s1 + $0x38] sm:$0xf]
      %v304 = vld [vmem:[%s1 + $0x3c] sm:$0xf]
      %v305 = vld [vmem:[%s1 + $0x40] sm:$0xf]
      %v306 = vld [vmem:[%s1 + $0x44] sm:$0xf]
      %v307 = vld [vmem:[%s1 + $0x48] sm:$0xf]
      %v308 = vld [vmem:[%s1 + $0x4c] sm:$0xf]
      %v309 = vld [vmem:[%s1 + $0x50] sm:$0xf]
      %v310 = vld [vmem:[%s1 + $0x54] sm:$0xf]
      %v311 = vld [vmem:[%s1 + $0x58] sm:$0xf]
      %v312 = vld [vmem:[%s1 + $0x5c] sm:$0xf]
      %v313 = vld [vmem:[%s1 + $0x60] sm:$0xf]
      %v314 = vld [vmem:[%s1 + $0x64] sm:$0xf]
      %v315 = vld [vmem:[%s1 + $0x68] sm:$0xf]
      %v316 = vld [vmem:[%s1 + $0x6c] sm:$0xf]
      %v317 = vld [vmem:[%s1 + $0x70] sm:$0xf]
      %v318 = vld [vmem:[%s1 + $0x74] sm:$0xf]
      %v319 = vld [vmem:[%s1 + $0x78] sm:$0xf]
      %v320 = vld [vmem:[%s1 + $0x7c] sm:$0xf]
      %v321 = vld [vmem:[%s1 + $0x80] sm:$0xf]
      %v322 = vld [vmem:[%s1 + $0x84] sm:$0xf]
      %v323 = vld [vmem:[%s1 + $0x88] sm:$0xf]
      %v324 = vld [vmem:[%s1 + $0x8c] sm:$0xf]
      %v325 = vld [vmem:[%s2] sm:$0x1]
      %v327 = vperm.slane %v325, 0
      %v365 = vunpack.c.l.b16 %v289
      %v366 = vunpack.c.l.b16 %v290
      %v367 = vunpack.c.l.b16 %v291
      %v368 = vunpack.c.l.b16 %v292
      %v369 = vunpack.c.l.b16 %v293
      %v370 = vunpack.c.l.b16 %v294
      %v371 = vunpack.c.l.b16 %v295
      %v372 = vunpack.c.l.b16 %v296
      %v373 = vunpack.c.l.b16 %v297
      %v374 = vunpack.c.l.b16 %v298
      %v375 = vunpack.c.l.b16 %v299
      %v376 = vunpack.c.l.b16 %v300
      %v377 = vunpack.c.l.b16 %v301
      %v378 = vunpack.c.l.b16 %v302
      %v379 = vunpack.c.l.b16 %v303
      %v380 = vunpack.c.l.b16 %v304
      %v381 = vunpack.c.l.b16 %v305
      %v382 = vunpack.c.l.b16 %v306
      %v383 = vunpack.c.l.b16 %v307
      %v384 = vunpack.c.l.b16 %v308
      %v385 = vunpack.c.l.b16 %v309
      %v386 = vunpack.c.l.b16 %v310
      %v387 = vunpack.c.l.b16 %v311
      %v388 = vunpack.c.l.b16 %v312
      %v389 = vunpack.c.l.b16 %v313
      %v390 = vunpack.c.l.b16 %v314
      %v391 = vunpack.c.l.b16 %v315
      %v392 = vunpack.c.l.b16 %v316
      %v393 = vunpack.c.l.b16 %v317
      %v394 = vunpack.c.l.b16 %v318
      %v395 = vunpack.c.l.b16 %v319
      %v396 = vunpack.c.l.b16 %v320
      %v397 = vunpack.c.l.b16 %v321
      %v398 = vunpack.c.l.b16 %v322
      %v399 = vunpack.c.l.b16 %v323
      %v400 = vunpack.c.l.b16 %v324
      %v401 = vpack.c.b16 %v366, %v365
      %v402 = vpack.c.b16 %v368, %v367
      %v403 = vpack.c.b16 %v370, %v369
      %v404 = vpack.c.b16 %v372, %v371
      %v405 = vpack.c.b16 %v374, %v373
      %v406 = vpack.c.b16 %v376, %v375
      %v407 = vpack.c.b16 %v378, %v377
      %v408 = vpack.c.b16 %v380, %v379
      %v409 = vpack.c.b16 %v382, %v381
      %v410 = vpack.c.b16 %v384, %v383
      %v411 = vpack.c.b16 %v386, %v385
      %v412 = vpack.c.b16 %v388, %v387
      %v413 = vpack.c.b16 %v390, %v389
      %v414 = vpack.c.b16 %v392, %v391
      %v415 = vpack.c.b16 %v394, %v393
      %v416 = vpack.c.b16 %v396, %v395
      %v417 = vpack.c.b16 %v398, %v397
      %v418 = vpack.c.b16 %v400, %v399
      %v438 = vsel %vm264, %v260, 0
      %v441 = vsel %vm264, %v263, 0
      %443 = vmatpush.bf16.msra.mxu0 %v408
      %444 = vmatpush.bf16.msra.mxu0 %v407
      %445 = vmatpush.bf16.msra.mxu0 %v406
      %446 = vmatpush.bf16.msra.mxu0 %v405
      %447 = vmatpush.bf16.msra.mxu0 %v404
      %448 = vmatpush.bf16.msra.mxu0 %v403
      %449 = vmatpush.bf16.msra.mxu0 %v402
      %450 = vmatpush.bf16.msra.mxu0 %v401
      %451 = vmatmul.bf16.gmra.mxu0 %v272
      %v452 = vpop.f32.mrf.mxu0
      %v453 = vadd.f32 %v327, %v452
      %v454 = vpop.f32.mrf.mxu0
      %v455 = vadd.f32 %v327, %v454
      %456 = vmatmul.bf16.gmra.mxu0 %v275
      %v457 = vpop.f32.mrf.mxu0
      %v458 = vadd.f32 %v327, %v457
      %v459 = vpop.f32.mrf.mxu0
      %460 = vdwg.mxu0
      %461 = vmatpush.bf16.msra.mxu0 %v416
      %462 = vmatpush.bf16.msra.mxu0 %v415
      %463 = vmatpush.bf16.msra.mxu0 %v414
      %464 = vmatpush.bf16.msra.mxu0 %v413
      %465 = vmatpush.bf16.msra.mxu0 %v412
      %466 = vmatpush.bf16.msra.mxu0 %v411
      %467 = vmatpush.bf16.msra.mxu0 %v410
      %468 = vmatpush.bf16.msra.mxu0 %v409
      %469 = vmatmul.bf16.gmra.mxu0 %v285
      %v470 = vpop.f32.mrf.mxu0
      %v471 = vadd.f32 %v453, %v470
      %v472 = vpop.f32.mrf.mxu0
      %v473 = vadd.f32 %v455, %v472
      %474 = vmatmul.bf16.gmra.mxu0 %v287
      %v475 = vpop.f32.mrf.mxu0
      %v476 = vadd.f32 %v458, %v475
      %v477 = vpop.f32.mrf.mxu0
      %478 = vdwg.mxu0
      %479 = vmatpush.bf16.msra.mxu0 0
      %480 = vmatpush.bf16.msra.mxu0 0
      %481 = vmatpush.bf16.msra.mxu0 0
      %482 = vmatpush.bf16.msra.mxu0 0
      %483 = vmatpush.bf16.msra.mxu0 0
      %484 = vmatpush.bf16.msra.mxu0 0
      %485 = vmatpush.bf16.msra.mxu0 %v418
      %486 = vmatpush.bf16.msra.mxu0 %v417
      %487 = vmatmul.bf16.gmra.mxu0 %v438
      %v488 = vpop.f32.mrf.mxu0
      %v489 = vadd.f32 %v471, %v488
      %v490 = vpop.f32.mrf.mxu0
      %v491 = vadd.f32 %v473, %v490
      %492 = vmatmul.bf16.gmra.mxu0 %v441
      %v493 = vpop.f32.mrf.mxu0
      %v494 = vadd.f32 %v476, %v493
      %v495 = vpop.f32.mrf.mxu0
      %496 = vdwg.mxu0
      %vm497 = vcmp.ge.f32.partialorder %v489, 0.0
      %vm498 = vcmp.ge.f32.partialorder %v491, 0.0
      %vm499 = vcmp.ge.f32.partialorder %v494, 0.0
      %v500 = vmul.f32 %v489, 0.2
      %v501 = vmul.f32 %v491, 0.2
      %v502 = vmul.f32 %v494, 0.2
      %v503 = vsel %vm497, %v489, %v500
      %v504 = vsel %vm498, %v491, %v501
      %v505 = vsel %vm499, %v494, %v502
      %v506 = vld [vmem:[%s3] sm:$0xff]
      %v507 = vld [vmem:[%s3 + $0x8] sm:$0xff]
      %v508 = vld [vmem:[%s3 + $0x10] sm:$0x3]
      %v509 = vmul.f32 %v503, %v506
      %v510 = vmul.f32 %v504, %v507
      %v511 = vmul.f32 %v505, %v508
      %v512 = vsel %vm264, %v509, 0.0
      %513 = vadd.xlane.f32.xlu0 %v512
      %v514 = vpop.xlane.xlu0 %513
      %v515 = vsel %vm264, %v510, 0.0
      %516 = vadd.xlane.f32.xlu0 %v515
      %v517 = vpop.xlane.xlu0 %516
      %vm518 = vcmask 254976
      %v519 = vsel %vm518, %v511, 0.0
      %520 = vadd.xlane.f32.xlu0 %v519
      %v521 = vpop.xlane.xlu0 %520
      %v522 = vadd.f32 %v514, %v517
      %vm523 = vcmask 1041408
      %v524 = vsel %vm523, %v521, 0.0
      %v525 = vadd.f32 %v522, %v524
      %v526 = vrot.slane %v525, 4
      %v527 = vadd.f32 %v525, %v526
      %v528 = vrot.slane %v527, 2
      %v529 = vadd.f32 %v527, %v528
      %v530 = vrot.slane %v529, 1
      %v531 = vadd.f32 %v529, %v530
      %s532 = scalar_lea.vmem %s3, 24
      %v533 = vld [vmem:[%s532] sm:$0xff]
      %v534 = vld [vmem:[%s532 + $0x8] sm:$0xff]
      %v535 = vld [vmem:[%s532 + $0x10] sm:$0x3]
      %v536 = vmul.f32 %v503, %v533
      %v537 = vmul.f32 %v504, %v534
      %v538 = vmul.f32 %v505, %v535
      %v539 = vsel %vm264, %v536, 0.0
      %540 = vadd.xlane.f32.xlu0 %v539
      %v541 = vpop.xlane.xlu0 %540
      %v542 = vsel %vm264, %v537, 0.0
      %543 = vadd.xlane.f32.xlu0 %v542
      %v544 = vpop.xlane.xlu0 %543
      %v545 = vsel %vm518, %v538, 0.0
      %546 = vadd.xlane.f32.xlu0 %v545
      %v547 = vpop.xlane.xlu0 %546
      %v548 = vadd.f32 %v541, %v544
      %v549 = vsel %vm523, %v547, 0.0
      %v550 = vadd.f32 %v548, %v549
      %v551 = vrot.slane %v550, 4
      %v552 = vadd.f32 %v550, %v551
      %v553 = vrot.slane %v552, 2
      %v554 = vadd.f32 %v552, %v553
      %v555 = vrot.slane %v554, 1
      %v556 = vadd.f32 %v554, %v555
      %vm557 = vcmask 7168
      %v558 = vsel %vm557, %v531, %v556
      %vm559 = vcmask 8192
      %560 = vst.msk [vmem:[%s193] sm:$0x1] %vm559, %v558
      %p561 = scmp.lt.s32.totalorder %s15, 3
      %s562 = scalar_select %p561, %s15, 3
      %s563 = scalar_lea.vmem %s4, %s562
      // Predicated region
      $region37: #{single_window_forward.11} parent=35 // pred_check
        %p564 = pneg %p122
      $region38: #{single_window_forward.11} parent=35 // pred_check_branch
        %566 = sbr.rel (%p564) target = $region40
      $region39: #{single_window_forward.11} parent=35 // pred_region
        _
      $region40: #{single_window_forward.11} parent=35 // pred_fallthru
        _
    $region36: #{single_window_forward.11} parent=5 // pred_fallthru
      _
    %p567 = scmp.le.s32.totalorder 2, %s10
    // Predicated region
    $region41: #{single_window_forward.11} parent=5 // pred_check
      %p568 = pneg %p567
    $region42: #{single_window_forward.11} parent=5 // pred_check_branch
      %570 = sbr.rel (%p568) target = $region44
    $region43: #{single_window_forward.11} parent=5 // pred_region
      %s571 = ssub.s32 %s10, 2
      // Predicated region
      $region45: #{single_window_forward.11} parent=43 // pred_check
        %p572 = pneg %p128
      $region46: #{single_window_forward.11} parent=43 // pred_check_branch
        %574 = sbr.rel (%p572) target = $region48
      $region47: #{single_window_forward.11} parent=43 // pred_region
        %p575 = scmp.lt.s32.totalorder %s16, 3
        %s576 = scalar_select %p575, %s16, 3
        %s577 = scalar_lea.vmem %s4, %s576
      $region48: #{single_window_forward.11} parent=43 // pred_fallthru
        _
    $region44: #{single_window_forward.11} parent=5 // pred_fallthru
      _
  $region6: #{single_window_forward.11} parent=0 // loop_footer
    %s14 = sadd.s32 1, %s10
  $region7: #{single_window_forward.11} parent=0 // loop_footer_branch
    %9 = sbr.rel target = $region3
  $region8: #{single_window_forward.11} parent=0 // loop_exit
    _

// kernel: single_window_forward.6
$region0: #{single_window_forward.6}
  #allocation0 [shape = 'u32[]', space=smem, size = 0x4, offset = 0x4, fixed_abs, tag = 'smem constant byte address 0x4 - core index']
  #allocation1 [shape = 'u32[72,128]{1,0:T(1,128)}', space=vmem, size = 0x9000, scoped, tag = 'internal scratch']
  %s0 = inlined_call_operand.vmem [shape: bf16[2,5,9,4], index: 0, kind: input, shape index: {}]
  %s1 = inlined_call_operand.vmem [shape: bf16[9,32], index: 1, kind: input, shape index: {}]
  %s2 = inlined_call_operand.vmem [shape: f32[3,32], index: 2, kind: input, shape index: {}]
  %s3 = inlined_call_operand.vmem [shape: bf16[2,4,8,32], index: 3, kind: output, shape index: {}]
  %s4 = sld [smem:[#allocation0]]
  $region45: #{single_window_forward.6} parent=0
    _
  %s6 = ssub.s32 1, %s4
  %s7 = scalar_select 0, %s6, %s4
  loop: start=0, step=1, limit=4
  $region2: #{single_window_forward.6} parent=0 // loop_pre_header
    _
  $region3: #{single_window_forward.6} parent=0 // loop_header
    %s9 = sphi 0, %s13
    %p10 = scmp.ge.s32.totalorder %s9, 4
    %s19 = sphi 0, %s21
    %s22 = sphi 0, %s19
    %s23 = sphi 0, %s22
    %s39 = sphi 0, %s23
    %s43 = sphi 0, %s43
    %s45 = sphi 0, %s43
    %s46 = sphi 0, %s45
    %s60 = sphi 0, %s46
    %s64 = sphi 0, %s64
    %s66 = sphi 0, %s64
    %s67 = sphi 0, %s66
    %s81 = sphi 0, %s67
    %s87 = sphi 0, %s89
    %s90 = sphi 0, %s87
    %s91 = sphi 0, %s90
    %s107 = sphi 0, %s91
  $region4: #{single_window_forward.6} parent=0 // loop_header_branch
    %12 = sbr.rel (%p10) target = $region8
  $region5: #{single_window_forward.6} parent=0 // loop_body
    %s14 = ssub.s32 %s9, 1
    %s15 = ssub.s32 %s9, 2
    %s16 = sadd.s32 %s9, 1
    %s17 = ssub.s32 %s9, %s16
    %p18 = scmp.eq.s32.totalorder %s17, 0
    %s20 = sadd.s32 %s19, 1
    %s21 = scalar_select %p18, %s19, %s20
    %p24 = pneg %p18
    %p25 = scmp.eq.s32.totalorder %s9, 1
    %p26 = por %p24, %p25
    %p27 = scmp.ne.s32.totalorder %s19, %s22
    %p28 = scmp.eq.s32.totalorder %s9, 0
    %p29 = por %p27, %p28
    %p30 = scmp.ne.s32.totalorder %s19, %s22
    %p31 = scmp.eq.s32.totalorder %s14, 1
    %p32 = por %p30, %p31
    %p33 = scmp.ne.s32.totalorder %s22, %s23
    %p34 = scmp.eq.s32.totalorder %s14, 0
    %p35 = por %p33, %p34
    %p36 = scmp.ne.s32.totalorder %s22, %s23
    %p37 = scmp.eq.s32.totalorder %s15, 1
    %p38 = por %p36, %p37
    %p40 = scmp.ne.s32.totalorder %s23, %s39
    %p41 = scmp.eq.s32.totalorder %s15, 0
    %p42 = por %p40, %p41
    %s44 = sadd.s32 %s43, 1
    %p47 = scmp.eq.s32.totalorder %s9, 1
    %p48 = scmp.ne.s32.totalorder %s43, %s45
    %p49 = scmp.eq.s32.totalorder %s9, 0
    %p50 = por %p48, %p49
    %p51 = scmp.ne.s32.totalorder %s43, %s45
    %p52 = scmp.eq.s32.totalorder %s14, 1
    %p53 = por %p51, %p52
    %p54 = scmp.ne.s32.totalorder %s45, %s46
    %p55 = scmp.eq.s32.totalorder %s14, 0
    %p56 = por %p54, %p55
    %p57 = scmp.ne.s32.totalorder %s45, %s46
    %p58 = scmp.eq.s32.totalorder %s15, 1
    %p59 = por %p57, %p58
    %p61 = scmp.ne.s32.totalorder %s46, %s60
    %p62 = scmp.eq.s32.totalorder %s15, 0
    %p63 = por %p61, %p62
    %s65 = sadd.s32 %s64, 1
    %p68 = scmp.eq.s32.totalorder %s9, 1
    %p69 = scmp.ne.s32.totalorder %s64, %s66
    %p70 = scmp.eq.s32.totalorder %s9, 0
    %p71 = por %p69, %p70
    %p72 = scmp.ne.s32.totalorder %s64, %s66
    %p73 = scmp.eq.s32.totalorder %s14, 1
    %p74 = por %p72, %p73
    %p75 = scmp.ne.s32.totalorder %s66, %s67
    %p76 = scmp.eq.s32.totalorder %s14, 0
    %p77 = por %p75, %p76
    %p78 = scmp.ne.s32.totalorder %s66, %s67
    %p79 = scmp.eq.s32.totalorder %s15, 1
    %p80 = por %p78, %p79
    %p82 = scmp.ne.s32.totalorder %s67, %s81
    %p83 = scmp.eq.s32.totalorder %s15, 0
    %p84 = por %p82, %p83
    %s85 = ssub.s32 %s9, %s16
    %p86 = scmp.eq.s32.totalorder %s85, 0
    %s88 = sadd.s32 %s87, 1
    %s89 = scalar_select %p86, %s87, %s88
    %p92 = pneg %p86
    %p93 = scmp.eq.s32.totalorder %s9, 1
    %p94 = por %p92, %p93
    %p95 = scmp.ne.s32.totalorder %s87, %s90
    %p96 = scmp.eq.s32.totalorder %s9, 0
    %p97 = por %p95, %p96
    %p98 = scmp.ne.s32.totalorder %s87, %s90
    %p99 = scmp.eq.s32.totalorder %s14, 1
    %p100 = por %p98, %p99
    %p101 = scmp.ne.s32.totalorder %s90, %s91
    %p102 = scmp.eq.s32.totalorder %s14, 0
    %p103 = por %p101, %p102
    %p104 = scmp.ne.s32.totalorder %s90, %s91
    %p105 = scmp.eq.s32.totalorder %s15, 1
    %p106 = por %p104, %p105
    %p108 = scmp.ne.s32.totalorder %s91, %s107
    %p109 = scmp.eq.s32.totalorder %s15, 0
    %p110 = por %p108, %p109
    %p111 = scmp.le.s32.totalorder 1, %s9
    %p112 = scmp.lt.s32.totalorder %s9, 3
    %p113 = pnand %p111, %p112
    %p114 = pneg %p113
    // Predicated region
    $region9: #{single_window_forward.6} parent=5 // pred_check
      _
    $region10: #{single_window_forward.6} parent=5 // pred_check_branch
      %116 = sbr.rel (%p113) target = $region12
    $region11: #{single_window_forward.6} parent=5 // pred_region
      %s117 = ssub.s32 %s9, 1
      // Predicated region
      $region13: #{single_window_forward.6} parent=11 // pred_check
        %p118 = pneg %p56
      $region14: #{single_window_forward.6} parent=11 // pred_check_branch
        %120 = sbr.rel (%p118) target = $region16
      $region15: #{single_window_forward.6} parent=11 // pred_region
        _
      $region16: #{single_window_forward.6} parent=11 // pred_fallthru
        _
      // Predicated region
      $region17: #{single_window_forward.6} parent=11 // pred_check
        %p121 = pneg %p77
      $region18: #{single_window_forward.6} parent=11 // pred_check_branch
        %123 = sbr.rel (%p121) target = $region20
      $region19: #{single_window_forward.6} parent=11 // pred_region
        _
      $region20: #{single_window_forward.6} parent=11 // pred_fallthru
        _
    $region12: #{single_window_forward.6} parent=5 // pred_fallthru
      _
    %p124 = scmp.lt.s32.totalorder %s9, 2
    // Predicated region
    $region21: #{single_window_forward.6} parent=5 // pred_check
      %p125 = pneg %p124
    $region22: #{single_window_forward.6} parent=5 // pred_check_branch
      %127 = sbr.rel (%p125) target = $region24
    $region23: #{single_window_forward.6} parent=5 // pred_region
      // Predicated region
      $region25: #{single_window_forward.6} parent=23 // pred_check
        %p128 = pneg %p29
      $region26: #{single_window_forward.6} parent=23 // pred_check_branch
        %130 = sbr.rel (%p128) target = $region28
      $region27: #{single_window_forward.6} parent=23 // pred_region
        %p131 = scmp.lt.s32.totalorder %s9, 1
        %s132 = scalar_select %p131, %s9, 1
        %s133 = smul.addr %s132, 10
        %s134 = smul.addr %s133, 4
        %s135 = scalar_lea.vmem %s0, %s134
      $region28: #{single_window_forward.6} parent=23 // pred_fallthru
        _
    $region24: #{single_window_forward.6} parent=5 // pred_fallthru
      _
    %p136 = scmp.le.s32.totalorder 1, %s9
    %p137 = scmp.lt.s32.totalorder %s9, 3
    %p138 = pnand %p136, %p137
    %p139 = pneg %p138
    // Predicated region
    $region29: #{single_window_forward.6} parent=5 // pred_check
      _
    $region30: #{single_window_forward.6} parent=5 // pred_check_branch
      %141 = sbr.rel (%p138) target = $region32
    $region31: #{single_window_forward.6} parent=5 // pred_region
      %s142 = ssub.s32 %s9, 1
      %p143 = scmp.lt.s32.totalorder %s14, 1
      %s144 = scalar_select %p143, %s14, 1
      %s145 = smul.addr %s144, 10
      %s146 = smul.addr %s145, 4
      %s147 = scalar_lea.vmem %s0, %s146
      %p148 = pneg %p35
      %p149 = pneg %p32
      %p150 = pneg %p56
      %p151 = pneg %p53
      %p152 = pneg %p77
      %p153 = pneg %p74
      %p154 = pneg %p103
      %p155 = pneg %p100
      %p156 = scmp.lt.s32.totalorder %s14, 1
      %s157 = scalar_select %p156, %s14, 1
      %s158 = smul.addr %s157, 4
      %s159 = smul.addr %s158, 4
      %s160 = scalar_lea.vmem %s3, %s159
      %p161 = scmp.lt.s32.totalorder %s14, 1
      %s162 = scalar_select %p161, %s14, 1
      %s163 = smul.addr %s162, 10
      %s164 = smul.addr %s163, 4
      %s165 = scalar_lea.vmem %s0, %s164
      %p166 = scmp.lt.s32.totalorder %s14, 1
      %s167 = scalar_select %p166, %s14, 1
      %s168 = smul.addr %s167, 4
      %s169 = smul.addr %s168, 4
      %s170 = scalar_lea.vmem %s3, %s169
      %v172 = vld [vmem:[%s165] sm:$0xf]
      %v173 = vld [vmem:[%s165 + $0x4] sm:$0x1]
      %v174 = vld [vmem:[%s165 + $0x8] sm:$0xf]
      %v175 = vld [vmem:[%s165 + $0xc] sm:$0x1]
      %v176 = vld [vmem:[%s165 + $0x10] sm:$0xf]
      %v177 = vld [vmem:[%s165 + $0x14] sm:$0x1]
      %v178 = vld [vmem:[%s165 + $0x18] sm:$0xf]
      %v179 = vld [vmem:[%s165 + $0x1c] sm:$0x1]
      %v180 = vld [vmem:[%s165 + $0x20] sm:$0xf]
      %v181 = vld [vmem:[%s165 + $0x24] sm:$0x1]
      %v190 = vunpack.c.l.b16 %v172
      %v191 = vunpack.c.l.b16 %v173
      %v192 = vunpack.c.l.b16 %v174
      %v193 = vunpack.c.l.b16 %v175
      %v194 = vunpack.c.l.b16 %v176
      %v195 = vunpack.c.l.b16 %v177
      %v196 = vunpack.c.l.b16 %v178
      %v197 = vunpack.c.l.b16 %v179
      %v198 = vpack.c.b16 %v191, %v190
      %v199 = vpack.c.b16 %v193, %v192
      %v200 = vpack.c.b16 %v195, %v194
      %v201 = vpack.c.b16 %v197, %v196
      %v203 = vshrl.u32 %v198, 16
      %v205 = vshll.u32 %v198, 16
      %v207 = vrot.slane %v205, 1
      %v208 = vor.u32 %v203, %v207
      %v210 = vshrl.u32 %v199, 16
      %v212 = vshll.u32 %v199, 16
      %v214 = vrot.slane %v212, 1
      %v215 = vor.u32 %v210, %v214
      %v217 = vshrl.u32 %v200, 16
      %v219 = vshll.u32 %v200, 16
      %v221 = vrot.slane %v219, 1
      %v222 = vor.u32 %v217, %v221
      %v224 = vshrl.u32 %v201, 16
      %v226 = vshll.u32 %v201, 16
      %v228 = vrot.slane %v226, 1
      %v229 = vor.u32 %v224, %v228
      %230 = vrot.lane.b32.xlu0 %v208, 2
      %v231 = vpop.permute.xlu0 %230
      %232 = vrot.lane.b32.xlu0 %v215, 2
      %v233 = vpop.permute.xlu0 %232
      %234 = vrot.lane.b32.xlu0 %v222, 2
      %v235 = vpop.permute.xlu0 %234
      %236 = vrot.lane.b32.xlu0 %v229, 2
      %v237 = vpop.permute.xlu0 %236
      %v238 = vpack.c.b16 %v190, %v190
      %v239 = vpack.c.b16 %v192, %v192
      %v240 = vpack.c.b16 %v194, %v194
      %v241 = vpack.c.b16 %v196, %v196
      %242 = vrot.lane.b32.xlu0 %v238, 1
      %v243 = vpop.permute.xlu0 %242
      %244 = vrot.lane.b32.xlu0 %v239, 1
      %v245 = vpop.permute.xlu0 %244
      %246 = vrot.lane.b32.xlu0 %v240, 1
      %v247 = vpop.permute.xlu0 %246
      %248 = vrot.lane.b32.xlu0 %v241, 1
      %v249 = vpop.permute.xlu0 %248
      %250 = vrot.lane.b32.xlu0 %v208, 3
      %v251 = vpop.permute.xlu0 %250
      %252 = vrot.lane.b32.xlu0 %v215, 3
      %v253 = vpop.permute.xlu0 %252
      %254 = vrot.lane.b32.xlu0 %v222, 3
      %v255 = vpop.permute.xlu0 %254
      %256 = vrot.lane.b32.xlu0 %v229, 3
      %v257 = vpop.permute.xlu0 %256
      %v259 = vunpack.c.l.b16 %v180
      %v260 = vpack.c.b16 %v259, %v259
      %261 = vrot.lane.b32.xlu0 %v239, 6
      %v262 = vpop.permute.xlu0 %261
      %263 = vrot.lane.b32.xlu0 %v240, 6
      %v264 = vpop.permute.xlu0 %263
      %265 = vrot.lane.b32.xlu0 %v241, 6
      %v266 = vpop.permute.xlu0 %265
      %267 = vrot.lane.b32.xlu0 %v260, 6
      %v268 = vpop.permute.xlu0 %267
      %v270 = vunpack.c.l.b16 %v181
      %v271 = vpack.c.b16 %v270, %v259
      %v273 = vshrl.u32 %v271, 16
      %v275 = vshll.u32 %v271, 16
      %v277 = vrot.slane %v275, 1
      %v278 = vor.u32 %v273, %v277
      %279 = vrot.lane.b32.xlu0 %v215, 8
      %v280 = vpop.permute.xlu0 %279
      %281 = vrot.lane.b32.xlu0 %v222, 8
      %v282 = vpop.permute.xlu0 %281
      %283 = vrot.lane.b32.xlu0 %v229, 8
      %v284 = vpop.permute.xlu0 %283
      %285 = vrot.lane.b32.xlu0 %v278, 8
      %v286 = vpop.permute.xlu0 %285
      %vm291 = vcmask 15360
      %v293 = vsel %vm291, %v172, %v231
      %v295 = vsel %vm291, %v174, %v233
      %v297 = vsel %vm291, %v176, %v235
      %v299 = vsel %vm291, %v178, %v237
      %vm300 = vcmask 23552
      %v302 = vsel %vm300, %v293, %v243
      %v304 = vsel %vm300, %v295, %v245
      %v306 = vsel %vm300, %v297, %v247
      %v308 = vsel %vm300, %v299, %v249
      %vm309 = vcmask 31744
      %v310 = vsel %vm309, %v302, %v243
      %v311 = vsel %vm309, %v304, %v245
      %v312 = vsel %vm309, %v306, %v247
      %v313 = vsel %vm309, %v308, %v249
      %vm314 = vcmask 39936
      %v316 = vsel %vm314, %v310, %v251
      %v318 = vsel %vm314, %v311, %v253
      %v320 = vsel %vm314, %v312, %v255
      %v322 = vsel %vm314, %v313, %v257
      %vm323 = vcmask 48128
      %v325 = vsel %vm323, %v316, %v262
      %v327 = vsel %vm323, %v318, %v264
      %v329 = vsel %vm323, %v320, %v266
      %v331 = vsel %vm323, %v322, %v268
      %vm332 = vcmask 56320
      %v333 = vsel %vm332, %v325, %v262
      %v334 = vsel %vm332, %v327, %v264
      %v335 = vsel %vm332, %v329, %v266
      %v336 = vsel %vm332, %v331, %v268
      %vm337 = vcmask 64512
      %v339 = vsel %vm337, %v333, %v280
      %v341 = vsel %vm337, %v334, %v282
      %v343 = vsel %vm337, %v335, %v284
      %v345 = vsel %vm337, %v336, %v286
      %v346 = vld [vmem:[%s1] sm:$0xf]
      %v347 = vld [vmem:[%s1 + $0x4] sm:$0x1]
      %v348 = vld [vmem:[%s2] sm:$0x7]
      %v349 = vperm.slane %v348, 0
      %v354 = vunpack.c.l.b16 %v339
      %v355 = vunpack.c.l.b16 %v341
      %v356 = vunpack.c.l.b16 %v343
      %v357 = vunpack.c.l.b16 %v345
      %v358 = vpack.c.b16 %v355, %v354
      %v359 = vpack.c.b16 %v357, %v356
      %v362 = vunpack.c.l.b16 %v346
      %v363 = vunpack.c.l.b16 %v347
      %v364 = vpack.c.b16 %v363, %v362
      %vm365 = vcmask 72704
      %v367 = vsel %vm365, %v358, 0
      %v370 = vsel %vm365, %v359, 0
      %vm372 = vcmask 1043456
      %vm373 = vcmask 1044480
      %v374 = vsel %vm372, 4294967295, 65535
      %v375 = vsel %vm373, %v374, 0
      %v377 = vand.u32 %v364, %v375
      %379 = vmatpush.bf16.msra.mxu0 0
      %380 = vmatpush.bf16.msra.mxu0 0
      %381 = vmatpush.bf16.msra.mxu0 0
      %382 = vmatpush.bf16.msra.mxu0 0
      %383 = vmatpush.bf16.msra.mxu0 0
      %384 = vmatpush.bf16.msra.mxu0 0
      %385 = vmatpush.bf16.msra.mxu0 0
      %386 = vmatpush.bf16.msra.mxu0 %v377
      %387 = vmatmul.bf16.gmra.mxu0 %v367
      %v388 = vpop.f32.mrf.mxu0
      %v389 = vadd.f32 %v349, %v388
      %v390 = vpop.f32.mrf.mxu0
      %v391 = vadd.f32 %v349, %v390
      %392 = vmatmul.bf16.gmra.mxu0 %v370
      %v393 = vpop.f32.mrf.mxu0
      %v394 = vadd.f32 %v349, %v393
      %v395 = vpop.f32.mrf.mxu0
      %v396 = vadd.f32 %v349, %v395
      %397 = vdwg.mxu0
      %vm398 = vcmp.ge.f32.partialorder %v389, 0.0
      %vm399 = vcmp.ge.f32.partialorder %v391, 0.0
      %vm400 = vcmp.ge.f32.partialorder %v394, 0.0
      %vm401 = vcmp.ge.f32.partialorder %v396, 0.0
      %v402 = vmul.f32 %v389, 0.2
      %v403 = vmul.f32 %v391, 0.2
      %v404 = vmul.f32 %v394, 0.2
      %v405 = vmul.f32 %v396, 0.2
      %v406 = vsel %vm398, %v389, %v402
      %v407 = vsel %vm399, %v391, %v403
      %v408 = vsel %vm400, %v394, %v404
      %v409 = vsel %vm401, %v396, %v405
      %v410 = vperm.slane %v348, 1
      %v411 = vmul.f32 %v406, %v410
      %v412 = vmul.f32 %v407, %v410
      %v413 = vmul.f32 %v408, %v410
      %v414 = vmul.f32 %v409, %v410
      %v415 = vperm.slane %v348, 2
      %v416 = vadd.f32 %v411, %v415
      %v417 = vadd.f32 %v412, %v415
      %v418 = vadd.f32 %v413, %v415
      %v419 = vadd.f32 %v414, %v415
      %v420 = vpack.c.bf16 %v416, %v416
      %v421 = vpack.c.bf16 %v417, %v417
      %v422 = vpack.c.bf16 %v418, %v418
      %v423 = vpack.c.bf16 %v419, %v419
      %vm424 = vcmask 257024
      %425 = vst.msk [vmem:[%s170] sm:$0xf] %vm424, %v420
      %426 = vst.msk [vmem:[%s170 + $0x4] sm:$0xf] %vm424, %v421
      %427 = vst.msk [vmem:[%s170 + $0x8] sm:$0xf] %vm424, %v422
      %428 = vst.msk [vmem:[%s170 + $0xc] sm:$0xf] %vm424, %v423
      %p429 = scmp.lt.s32.totalorder %s14, 1
      %s430 = scalar_select %p429, %s14, 1
      %s431 = smul.addr %s430, 4
      %s432 = smul.addr %s431, 4
      %s433 = scalar_lea.vmem %s3, %s432
      // Predicated region
      $region33: #{single_window_forward.6} parent=31 // pred_check
        %p434 = pneg %p100
      $region34: #{single_window_forward.6} parent=31 // pred_check_branch
        %436 = sbr.rel (%p434) target = $region36
      $region35: #{single_window_forward.6} parent=31 // pred_region
        _
      $region36: #{single_window_forward.6} parent=31 // pred_fallthru
        _
    $region32: #{single_window_forward.6} parent=5 // pred_fallthru
      _
    %p437 = scmp.le.s32.totalorder 2, %s9
    // Predicated region
    $region37: #{single_window_forward.6} parent=5 // pred_check
      %p438 = pneg %p437
    $region38: #{single_window_forward.6} parent=5 // pred_check_branch
      %440 = sbr.rel (%p438) target = $region40
    $region39: #{single_window_forward.6} parent=5 // pred_region
      %s441 = ssub.s32 %s9, 2
      // Predicated region
      $region41: #{single_window_forward.6} parent=39 // pred_check
        %p442 = pneg %p106
      $region42: #{single_window_forward.6} parent=39 // pred_check_branch
        %444 = sbr.rel (%p442) target = $region44
      $region43: #{single_window_forward.6} parent=39 // pred_region
        %p445 = scmp.lt.s32.totalorder %s15, 1
        %s446 = scalar_select %p445, %s15, 1
        %s447 = smul.addr %s446, 4
        %s448 = smul.addr %s447, 4
        %s449 = scalar_lea.vmem %s3, %s448
      $region44: #{single_window_forward.6} parent=39 // pred_fallthru
        _
    $region40: #{single_window_forward.6} parent=5 // pred_fallthru
      _
  $region6: #{single_window_forward.6} parent=0 // loop_footer
    %s13 = sadd.s32 1, %s9
  $region7: #{single_window_forward.6} parent=0 // loop_footer_branch
    %8 = sbr.rel target = $region3
  $region8: #{single_window_forward.6} parent=0 // loop_exit
    _

// kernel: single_window_forward.7
$region0: #{single_window_forward.7}
  #allocation0 [shape = 'u32[]', space=smem, size = 0x4, offset = 0x4, fixed_abs, tag = 'smem constant byte address 0x4 - core index']
  #allocation1 [shape = 'u32[72,128]{1,0:T(1,128)}', space=vmem, size = 0x9000, scoped, tag = 'internal scratch']
  %s0 = inlined_call_operand.vmem [shape: bf16[2,3,5,128], index: 0, kind: input, shape index: {}]
  %s1 = inlined_call_operand.vmem [shape: bf16[288,32], index: 1, kind: input, shape index: {}]
  %s2 = inlined_call_operand.vmem [shape: f32[3,32], index: 2, kind: input, shape index: {}]
  %s3 = inlined_call_operand.vmem [shape: bf16[2,2,4,32], index: 3, kind: output, shape index: {}]
  %s4 = sld [smem:[#allocation0]]
  $region45: #{single_window_forward.7} parent=0
    _
  %s6 = ssub.s32 1, %s4
  %s7 = scalar_select 0, %s6, %s4
  loop: start=0, step=1, limit=4
  $region2: #{single_window_forward.7} parent=0 // loop_pre_header
    _
  $region3: #{single_window_forward.7} parent=0 // loop_header
    %s9 = sphi 0, %s13
    %p10 = scmp.ge.s32.totalorder %s9, 4
    %s19 = sphi 0, %s21
    %s22 = sphi 0, %s19
    %s23 = sphi 0, %s22
    %s39 = sphi 0, %s23
    %s43 = sphi 0, %s43
    %s45 = sphi 0, %s43
    %s46 = sphi 0, %s45
    %s60 = sphi 0, %s46
    %s64 = sphi 0, %s64
    %s66 = sphi 0, %s64
    %s67 = sphi 0, %s66
    %s81 = sphi 0, %s67
    %s87 = sphi 0, %s89
    %s90 = sphi 0, %s87
    %s91 = sphi 0, %s90
    %s107 = sphi 0, %s91
  $region4: #{single_window_forward.7} parent=0 // loop_header_branch
    %12 = sbr.rel (%p10) target = $region8
  $region5: #{single_window_forward.7} parent=0 // loop_body
    %s14 = ssub.s32 %s9, 1
    %s15 = ssub.s32 %s9, 2
    %s16 = sadd.s32 %s9, 1
    %s17 = ssub.s32 %s9, %s16
    %p18 = scmp.eq.s32.totalorder %s17, 0
    %s20 = sadd.s32 %s19, 1
    %s21 = scalar_select %p18, %s19, %s20
    %p24 = pneg %p18
    %p25 = scmp.eq.s32.totalorder %s9, 1
    %p26 = por %p24, %p25
    %p27 = scmp.ne.s32.totalorder %s19, %s22
    %p28 = scmp.eq.s32.totalorder %s9, 0
    %p29 = por %p27, %p28
    %p30 = scmp.ne.s32.totalorder %s19, %s22
    %p31 = scmp.eq.s32.totalorder %s14, 1
    %p32 = por %p30, %p31
    %p33 = scmp.ne.s32.totalorder %s22, %s23
    %p34 = scmp.eq.s32.totalorder %s14, 0
    %p35 = por %p33, %p34
    %p36 = scmp.ne.s32.totalorder %s22, %s23
    %p37 = scmp.eq.s32.totalorder %s15, 1
    %p38 = por %p36, %p37
    %p40 = scmp.ne.s32.totalorder %s23, %s39
    %p41 = scmp.eq.s32.totalorder %s15, 0
    %p42 = por %p40, %p41
    %s44 = sadd.s32 %s43, 1
    %p47 = scmp.eq.s32.totalorder %s9, 1
    %p48 = scmp.ne.s32.totalorder %s43, %s45
    %p49 = scmp.eq.s32.totalorder %s9, 0
    %p50 = por %p48, %p49
    %p51 = scmp.ne.s32.totalorder %s43, %s45
    %p52 = scmp.eq.s32.totalorder %s14, 1
    %p53 = por %p51, %p52
    %p54 = scmp.ne.s32.totalorder %s45, %s46
    %p55 = scmp.eq.s32.totalorder %s14, 0
    %p56 = por %p54, %p55
    %p57 = scmp.ne.s32.totalorder %s45, %s46
    %p58 = scmp.eq.s32.totalorder %s15, 1
    %p59 = por %p57, %p58
    %p61 = scmp.ne.s32.totalorder %s46, %s60
    %p62 = scmp.eq.s32.totalorder %s15, 0
    %p63 = por %p61, %p62
    %s65 = sadd.s32 %s64, 1
    %p68 = scmp.eq.s32.totalorder %s9, 1
    %p69 = scmp.ne.s32.totalorder %s64, %s66
    %p70 = scmp.eq.s32.totalorder %s9, 0
    %p71 = por %p69, %p70
    %p72 = scmp.ne.s32.totalorder %s64, %s66
    %p73 = scmp.eq.s32.totalorder %s14, 1
    %p74 = por %p72, %p73
    %p75 = scmp.ne.s32.totalorder %s66, %s67
    %p76 = scmp.eq.s32.totalorder %s14, 0
    %p77 = por %p75, %p76
    %p78 = scmp.ne.s32.totalorder %s66, %s67
    %p79 = scmp.eq.s32.totalorder %s15, 1
    %p80 = por %p78, %p79
    %p82 = scmp.ne.s32.totalorder %s67, %s81
    %p83 = scmp.eq.s32.totalorder %s15, 0
    %p84 = por %p82, %p83
    %s85 = ssub.s32 %s9, %s16
    %p86 = scmp.eq.s32.totalorder %s85, 0
    %s88 = sadd.s32 %s87, 1
    %s89 = scalar_select %p86, %s87, %s88
    %p92 = pneg %p86
    %p93 = scmp.eq.s32.totalorder %s9, 1
    %p94 = por %p92, %p93
    %p95 = scmp.ne.s32.totalorder %s87, %s90
    %p96 = scmp.eq.s32.totalorder %s9, 0
    %p97 = por %p95, %p96
    %p98 = scmp.ne.s32.totalorder %s87, %s90
    %p99 = scmp.eq.s32.totalorder %s14, 1
    %p100 = por %p98, %p99
    %p101 = scmp.ne.s32.totalorder %s90, %s91
    %p102 = scmp.eq.s32.totalorder %s14, 0
    %p103 = por %p101, %p102
    %p104 = scmp.ne.s32.totalorder %s90, %s91
    %p105 = scmp.eq.s32.totalorder %s15, 1
    %p106 = por %p104, %p105
    %p108 = scmp.ne.s32.totalorder %s91, %s107
    %p109 = scmp.eq.s32.totalorder %s15, 0
    %p110 = por %p108, %p109
    %p111 = scmp.le.s32.totalorder 1, %s9
    %p112 = scmp.lt.s32.totalorder %s9, 3
    %p113 = pnand %p111, %p112
    %p114 = pneg %p113
    // Predicated region
    $region9: #{single_window_forward.7} parent=5 // pred_check
      _
    $region10: #{single_window_forward.7} parent=5 // pred_check_branch
      %116 = sbr.rel (%p113) target = $region12
    $region11: #{single_window_forward.7} parent=5 // pred_region
      %s117 = ssub.s32 %s9, 1
      // Predicated region
      $region13: #{single_window_forward.7} parent=11 // pred_check
        %p118 = pneg %p56
      $region14: #{single_window_forward.7} parent=11 // pred_check_branch
        %120 = sbr.rel (%p118) target = $region16
      $region15: #{single_window_forward.7} parent=11 // pred_region
        _
      $region16: #{single_window_forward.7} parent=11 // pred_fallthru
        _
      // Predicated region
      $region17: #{single_window_forward.7} parent=11 // pred_check
        %p121 = pneg %p77
      $region18: #{single_window_forward.7} parent=11 // pred_check_branch
        %123 = sbr.rel (%p121) target = $region20
      $region19: #{single_window_forward.7} parent=11 // pred_region
        _
      $region20: #{single_window_forward.7} parent=11 // pred_fallthru
        _
    $region12: #{single_window_forward.7} parent=5 // pred_fallthru
      _
    %p124 = scmp.lt.s32.totalorder %s9, 2
    // Predicated region
    $region21: #{single_window_forward.7} parent=5 // pred_check
      %p125 = pneg %p124
    $region22: #{single_window_forward.7} parent=5 // pred_check_branch
      %127 = sbr.rel (%p125) target = $region24
    $region23: #{single_window_forward.7} parent=5 // pred_region
      // Predicated region
      $region25: #{single_window_forward.7} parent=23 // pred_check
        %p128 = pneg %p29
      $region26: #{single_window_forward.7} parent=23 // pred_check_branch
        %130 = sbr.rel (%p128) target = $region28
      $region27: #{single_window_forward.7} parent=23 // pred_region
        %p131 = scmp.lt.s32.totalorder %s9, 1
        %s132 = scalar_select %p131, %s9, 1
        %s133 = smul.addr %s132, 3
        %s134 = smul.addr %s133, 4
        %s135 = scalar_lea.vmem %s0, %s134
      $region28: #{single_window_forward.7} parent=23 // pred_fallthru
        _
    $region24: #{single_window_forward.7} parent=5 // pred_fallthru
      _
    %p136 = scmp.le.s32.totalorder 1, %s9
    %p137 = scmp.lt.s32.totalorder %s9, 3
    %p138 = pnand %p136, %p137
    %p139 = pneg %p138
    // Predicated region
    $region29: #{single_window_forward.7} parent=5 // pred_check
      _
    $region30: #{single_window_forward.7} parent=5 // pred_check_branch
      %141 = sbr.rel (%p138) target = $region32
    $region31: #{single_window_forward.7} parent=5 // pred_region
      %s142 = ssub.s32 %s9, 1
      %p143 = scmp.lt.s32.totalorder %s14, 1
      %s144 = scalar_select %p143, %s14, 1
      %s145 = smul.addr %s144, 3
      %s146 = smul.addr %s145, 4
      %s147 = scalar_lea.vmem %s0, %s146
      %p148 = pneg %p35
      %p149 = pneg %p32
      %p150 = pneg %p56
      %p151 = pneg %p53
      %p152 = pneg %p77
      %p153 = pneg %p74
      %p154 = pneg %p103
      %p155 = pneg %p100
      %p156 = scmp.lt.s32.totalorder %s14, 1
      %s157 = scalar_select %p156, %s14, 1
      %s158 = smul.addr %s157, 2
      %s159 = smul.addr %s158, 2
      %s160 = scalar_lea.vmem %s3, %s159
      %p161 = scmp.lt.s32.totalorder %s14, 1
      %s162 = scalar_select %p161, %s14, 1
      %s163 = smul.addr %s162, 3
      %s164 = smul.addr %s163, 4
      %s165 = scalar_lea.vmem %s0, %s164
      %p166 = scmp.lt.s32.totalorder %s14, 1
      %s167 = scalar_select %p166, %s14, 1
      %s168 = smul.addr %s167, 2
      %s169 = smul.addr %s168, 2
      %s170 = scalar_lea.vmem %s3, %s169
      %v172 = vld [vmem:[%s165] sm:$0x7]
      %v173 = vld [vmem:[%s165 + $0x4] sm:$0x7]
      %v174 = vld [vmem:[%s165 + $0x8] sm:$0x7]
      %v177 = vunpack.c.l.b16 %v172
      %v178 = vunpack.c.l.b16 %v173
      %v179 = vpack.c.b16 %v177, %v177
      %v180 = vpack.c.b16 %v178, %v178
      %v182 = vshrl.u32 %v179, 16
      %v184 = vshll.u32 %v179, 16
      %v186 = vrot.slane %v184, 1
      %v187 = vor.u32 %v182, %v186
      %v189 = vshrl.u32 %v180, 16
      %v191 = vshll.u32 %v180, 16
      %v193 = vrot.slane %v191, 1
      %v194 = vor.u32 %v189, %v193
      %195 = vrot.lane.b32.xlu0 %v187, 64
      %v196 = vpop.permute.xlu0 %195
      %197 = vrot.lane.b32.xlu0 %v194, 64
      %v198 = vpop.permute.xlu0 %197
      %199 = vrot.lane.b32.xlu0 %v179, 32
      %v200 = vpop.permute.xlu0 %199
      %201 = vrot.lane.b32.xlu0 %v180, 32
      %v202 = vpop.permute.xlu0 %201
      %203 = vrot.lane.b32.xlu0 %v187, 96
      %v204 = vpop.permute.xlu0 %203
      %205 = vrot.lane.b32.xlu0 %v194, 96
      %v206 = vpop.permute.xlu0 %205
      %v208 = vunpack.c.l.b16 %v174
      %v209 = vpack.c.b16 %v208, %v208
      %210 = vrot.lane.b32.xlu0 %v180, 64
      %v211 = vpop.permute.xlu0 %210
      %212 = vrot.lane.b32.xlu0 %v209, 64
      %v213 = vpop.permute.xlu0 %212
      %v215 = vshrl.u32 %v209, 16
      %v217 = vshll.u32 %v209, 16
      %v219 = vrot.slane %v217, 1
      %v220 = vor.u32 %v215, %v219
      %vm221 = vcmask 261120
      %vm224 = vcmask 523264
      %v226 = vsel %vm224, %v172, %v196
      %v228 = vsel %vm224, %v173, %v198
      %vm229 = vcmask 785408
      %v231 = vsel %vm229, %v226, %v200
      %v233 = vsel %vm229, %v228, %v202
      %v235 = vsel %vm221, %v200, %v204
      %v237 = vsel %vm221, %v202, %v206
      %v239 = vsel %vm224, %v235, %v211
      %v241 = vsel %vm224, %v237, %v213
      %v242 = vsel %vm229, %v239, %v211
      %v243 = vsel %vm229, %v241, %v213
      %v246 = vrot.slane %v242, 6
      %v247 = vrot.slane %v194, 4
      %v248 = vrot.slane %v243, 6
      %v249 = vrot.slane %v220, 4
      %vm250 = vcmask 1041408
      %v252 = vsel %vm250, %v231, %v246
      %vm253 = vcmask 1043456
      %v255 = vsel %vm253, %v252, %v247
      %v257 = vsel %vm250, %v233, %v248
      %v259 = vsel %vm253, %v257, %v249
      %v260 = vld [vmem:[%s1] sm:$0xf]
      %v261 = vld [vmem:[%s1 + $0x4] sm:$0xf]
      %v262 = vld [vmem:[%s1 + $0x8] sm:$0xf]
      %v263 = vld [vmem:[%s1 + $0xc] sm:$0xf]
      %v264 = vld [vmem:[%s1 + $0x10] sm:$0xf]
      %v265 = vld [vmem:[%s1 + $0x14] sm:$0xf]
      %v266 = vld [vmem:[%s1 + $0x18] sm:$0xf]
      %v267 = vld [vmem:[%s1 + $0x1c] sm:$0xf]
      %v268 = vld [vmem:[%s1 + $0x20] sm:$0xf]
      %v269 = vld [vmem:[%s1 + $0x24] sm:$0xf]
      %v270 = vld [vmem:[%s1 + $0x28] sm:$0xf]
      %v271 = vld [vmem:[%s1 + $0x2c] sm:$0xf]
      %v272 = vld [vmem:[%s1 + $0x30] sm:$0xf]
      %v273 = vld [vmem:[%s1 + $0x34] sm:$0xf]
      %v274 = vld [vmem:[%s1 + $0x38] sm:$0xf]
      %v275 = vld [vmem:[%s1 + $0x3c] sm:$0xf]
      %v276 = vld [vmem:[%s1 + $0x40] sm:$0xf]
      %v277 = vld [vmem:[%s1 + $0x44] sm:$0xf]
      %v278 = vld [vmem:[%s1 + $0x48] sm:$0xf]
      %v279 = vld [vmem:[%s1 + $0x4c] sm:$0xf]
      %v280 = vld [vmem:[%s1 + $0x50] sm:$0xf]
      %v281 = vld [vmem:[%s1 + $0x54] sm:$0xf]
      %v282 = vld [vmem:[%s1 + $0x58] sm:$0xf]
      %v283 = vld [vmem:[%s1 + $0x5c] sm:$0xf]
      %v284 = vld [vmem:[%s1 + $0x60] sm:$0xf]
      %v285 = vld [vmem:[%s1 + $0x64] sm:$0xf]
      %v286 = vld [vmem:[%s1 + $0x68] sm:$0xf]
      %v287 = vld [vmem:[%s1 + $0x6c] sm:$0xf]
      %v288 = vld [vmem:[%s1 + $0x70] sm:$0xf]
      %v289 = vld [vmem:[%s1 + $0x74] sm:$0xf]
      %v290 = vld [vmem:[%s1 + $0x78] sm:$0xf]
      %v291 = vld [vmem:[%s1 + $0x7c] sm:$0xf]
      %v292 = vld [vmem:[%s1 + $0x80] sm:$0xf]
      %v293 = vld [vmem:[%s1 + $0x84] sm:$0xf]
      %v294 = vld [vmem:[%s1 + $0x88] sm:$0xf]
      %v295 = vld [vmem:[%s1 + $0x8c] sm:$0xf]
      %v296 = vld [vmem:[%s2] sm:$0x7]
      %v297 = vperm.slane %v296, 0
      %298 = vst [vmem:[#allocation1] ss:$4 sm:$0xff] %v255
      %s299 = scalar_lea.vmem [#allocation1], 1
      %300 = vst [vmem:[%s299] ss:$4 sm:$0xff] %v259
      %v301 = vld.sshfl [vmem:[#allocation1] sm:$0xff pattern:$0x73625140]
      %v302 = vld.sshfl [vmem:[#allocation1 + $0x8] sm:$0xff pattern:$0x73625140]
      %v303 = vld.sshfl [vmem:[#allocation1 + $0x10] sm:$0xff pattern:$0x73625140]
      %v342 = vunpack.c.l.b16 %v260
      %v343 = vunpack.c.l.b16 %v261
      %v344 = vunpack.c.l.b16 %v262
      %v345 = vunpack.c.l.b16 %v263
      %v346 = vunpack.c.l.b16 %v264
      %v347 = vunpack.c.l.b16 %v265
      %v348 = vunpack.c.l.b16 %v266
      %v349 = vunpack.c.l.b16 %v267
      %v350 = vunpack.c.l.b16 %v268
      %v351 = vunpack.c.l.b16 %v269
      %v352 = vunpack.c.l.b16 %v270
      %v353 = vunpack.c.l.b16 %v271
      %v354 = vunpack.c.l.b16 %v272
      %v355 = vunpack.c.l.b16 %v273
      %v356 = vunpack.c.l.b16 %v274
      %v357 = vunpack.c.l.b16 %v275
      %v358 = vunpack.c.l.b16 %v276
      %v359 = vunpack.c.l.b16 %v277
      %v360 = vunpack.c.l.b16 %v278
      %v361 = vunpack.c.l.b16 %v279
      %v362 = vunpack.c.l.b16 %v280
      %v363 = vunpack.c.l.b16 %v281
      %v364 = vunpack.c.l.b16 %v282
      %v365 = vunpack.c.l.b16 %v283
      %v366 = vunpack.c.l.b16 %v284
      %v367 = vunpack.c.l.b16 %v285
      %v368 = vunpack.c.l.b16 %v286
      %v369 = vunpack.c.l.b16 %v287
      %v370 = vunpack.c.l.b16 %v288
      %v371 = vunpack.c.l.b16 %v289
      %v372 = vunpack.c.l.b16 %v290
      %v373 = vunpack.c.l.b16 %v291
      %v374 = vunpack.c.l.b16 %v292
      %v375 = vunpack.c.l.b16 %v293
      %v376 = vunpack.c.l.b16 %v294
      %v377 = vunpack.c.l.b16 %v295
      %v378 = vpack.c.b16 %v343, %v342
      %v379 = vpack.c.b16 %v345, %v344
      %v380 = vpack.c.b16 %v347, %v346
      %v381 = vpack.c.b16 %v349, %v348
      %v382 = vpack.c.b16 %v351, %v350
      %v383 = vpack.c.b16 %v353, %v352
      %v384 = vpack.c.b16 %v355, %v354
      %v385 = vpack.c.b16 %v357, %v356
      %v386 = vpack.c.b16 %v359, %v358
      %v387 = vpack.c.b16 %v361, %v360
      %v388 = vpack.c.b16 %v363, %v362
      %v389 = vpack.c.b16 %v365, %v364
      %v390 = vpack.c.b16 %v367, %v366
      %v391 = vpack.c.b16 %v369, %v368
      %v392 = vpack.c.b16 %v371, %v370
      %v393 = vpack.c.b16 %v373, %v372
      %v394 = vpack.c.b16 %v375, %v374
      %v395 = vpack.c.b16 %v377, %v376
      %v414 = vsel %vm221, %v303, 0
      %416 = vmatpush.bf16.msra.mxu0 %v385
      %417 = vmatpush.bf16.msra.mxu0 %v384
      %418 = vmatpush.bf16.msra.mxu0 %v383
      %419 = vmatpush.bf16.msra.mxu0 %v382
      %420 = vmatpush.bf16.msra.mxu0 %v381
      %421 = vmatpush.bf16.msra.mxu0 %v380
      %422 = vmatpush.bf16.msra.mxu0 %v379
      %423 = vmatpush.bf16.msra.mxu0 %v378
      %424 = vmatmul.bf16.gmra.mxu0 %v301
      %v425 = vpop.f32.mrf.mxu0
      %v426 = vadd.f32 %v297, %v425
      %v427 = vpop.f32.mrf.mxu0
      %428 = vdwg.mxu0
      %429 = vmatpush.bf16.msra.mxu0 %v393
      %430 = vmatpush.bf16.msra.mxu0 %v392
      %431 = vmatpush.bf16.msra.mxu0 %v391
      %432 = vmatpush.bf16.msra.mxu0 %v390
      %433 = vmatpush.bf16.msra.mxu0 %v389
      %434 = vmatpush.bf16.msra.mxu0 %v388
      %435 = vmatpush.bf16.msra.mxu0 %v387
      %436 = vmatpush.bf16.msra.mxu0 %v386
      %437 = vmatmul.bf16.gmra.mxu0 %v302
      %v438 = vpop.f32.mrf.mxu0
      %v439 = vadd.f32 %v426, %v438
      %v440 = vpop.f32.mrf.mxu0
      %441 = vdwg.mxu0
      %442 = vmatpush.bf16.msra.mxu0 0
      %443 = vmatpush.bf16.msra.mxu0 0
      %444 = vmatpush.bf16.msra.mxu0 0
      %445 = vmatpush.bf16.msra.mxu0 0
      %446 = vmatpush.bf16.msra.mxu0 0
      %447 = vmatpush.bf16.msra.mxu0 0
      %448 = vmatpush.bf16.msra.mxu0 %v395
      %449 = vmatpush.bf16.msra.mxu0 %v394
      %450 = vmatmul.bf16.gmra.mxu0 %v414
      %v451 = vpop.f32.mrf.mxu0
      %v452 = vadd.f32 %v439, %v451
      %v453 = vpop.f32.mrf.mxu0
      %454 = vdwg.mxu0
      %vm455 = vcmp.ge.f32.partialorder %v452, 0.0
      %v456 = vmul.f32 %v452, 0.2
      %v457 = vsel %vm455, %v452, %v456
      %v458 = vperm.slane %v296, 1
      %v459 = vmul.f32 %v457, %v458
      %v460 = vperm.slane %v296, 2
      %v461 = vadd.f32 %v459, %v460
      %v463 = vrot.slane %v461, 4
      %v465 = vpack.c.bf16 %v461, %v461
      %v466 = vpack.c.bf16 %v463, %v463
      %vm467 = vcmask 254976
      %468 = vst.msk [vmem:[%s170] sm:$0x3] %vm467, %v465
      %469 = vst.msk [vmem:[%s170 + $0x2] sm:$0x3] %vm467, %v466
      %p470 = scmp.lt.s32.totalorder %s14, 1
      %s471 = scalar_select %p470, %s14, 1
      %s472 = smul.addr %s471, 2
      %s473 = smul.addr %s472, 2
      %s474 = scalar_lea.vmem %s3, %s473
      // Predicated region
      $region33: #{single_window_forward.7} parent=31 // pred_check
        %p475 = pneg %p100
      $region34: #{single_window_forward.7} parent=31 // pred_check_branch
        %477 = sbr.rel (%p475) target = $region36
      $region35: #{single_window_forward.7} parent=31 // pred_region
        _
      $region36: #{single_window_forward.7} parent=31 // pred_fallthru
        _
    $region32: #{single_window_forward.7} parent=5 // pred_fallthru
      _
    %p478 = scmp.le.s32.totalorder 2, %s9
    // Predicated region
    $region37: #{single_window_forward.7} parent=5 // pred_check
      %p479 = pneg %p478
    $region38: #{single_window_forward.7} parent=5 // pred_check_branch
      %481 = sbr.rel (%p479) target = $region40
    $region39: #{single_window_forward.7} parent=5 // pred_region
      %s482 = ssub.s32 %s9, 2
      // Predicated region
      $region41: #{single_window_forward.7} parent=39 // pred_check
        %p483 = pneg %p106
      $region42: #{single_window_forward.7} parent=39 // pred_check_branch
        %485 = sbr.rel (%p483) target = $region44
      $region43: #{single_window_forward.7} parent=39 // pred_region
        %p486 = scmp.lt.s32.totalorder %s15, 1
        %s487 = scalar_select %p486, %s15, 1
        %s488 = smul.addr %s487, 2
        %s489 = smul.addr %s488, 2
        %s490 = scalar_lea.vmem %s3, %s489
      $region44: #{single_window_forward.7} parent=39 // pred_fallthru
        _
    $region40: #{single_window_forward.7} parent=5 // pred_fallthru
      _
  $region6: #{single_window_forward.7} parent=0 // loop_footer
    %s13 = sadd.s32 1, %s9
  $region7: #{single_window_forward.7} parent=0 // loop_footer_branch
    %8 = sbr.rel target = $region3
  $region8: #{single_window_forward.7} parent=0 // loop_exit
    _

// kernel: single_window_forward.10
$region0: #{single_window_forward.10}
  #allocation0 [shape = 'u32[]', space=smem, size = 0x4, offset = 0x4, fixed_abs, tag = 'smem constant byte address 0x4 - core index']
  #allocation1 [shape = 'u32[72,128]{1,0:T(1,128)}', space=vmem, size = 0x9000, scoped, tag = 'internal scratch']
  %s0 = inlined_call_operand.vmem [shape: bf16[2,2,3,128], index: 0, kind: input, shape index: {}]
  %s1 = inlined_call_operand.vmem [shape: bf16[288,32], index: 1, kind: input, shape index: {}]
  %s2 = inlined_call_operand.vmem [shape: f32[1,32], index: 2, kind: input, shape index: {}]
  %s3 = inlined_call_operand.vmem [shape: f32[2,2,32], index: 3, kind: input, shape index: {}]
  %s4 = inlined_call_operand.vmem [shape: f32[2,1,2], index: 4, kind: output, shape index: {}]
  %s5 = sld [smem:[#allocation0]]
  $region49: #{single_window_forward.10} parent=0
    _
  %s7 = ssub.s32 1, %s5
  %s8 = scalar_select 0, %s7, %s5
  loop: start=0, step=1, limit=4
  $region2: #{single_window_forward.10} parent=0 // loop_pre_header
    _
  $region3: #{single_window_forward.10} parent=0 // loop_header
    %s10 = sphi 0, %s14
    %p11 = scmp.ge.s32.totalorder %s10, 4
    %s20 = sphi 0, %s22
    %s23 = sphi 0, %s20
    %s24 = sphi 0, %s23
    %s40 = sphi 0, %s24
    %s44 = sphi 0, %s44
    %s46 = sphi 0, %s44
    %s47 = sphi 0, %s46
    %s61 = sphi 0, %s47
    %s65 = sphi 0, %s65
    %s67 = sphi 0, %s65
    %s68 = sphi 0, %s67
    %s82 = sphi 0, %s68
    %s86 = sphi 0, %s86
    %s88 = sphi 0, %s86
    %s89 = sphi 0, %s88
    %s103 = sphi 0, %s89
    %s109 = sphi 0, %s111
    %s112 = sphi 0, %s109
    %s113 = sphi 0, %s112
    %s129 = sphi 0, %s113
  $region4: #{single_window_forward.10} parent=0 // loop_header_branch
    %13 = sbr.rel (%p11) target = $region8
  $region5: #{single_window_forward.10} parent=0 // loop_body
    %s15 = ssub.s32 %s10, 1
    %s16 = ssub.s32 %s10, 2
    %s17 = sadd.s32 %s10, 1
    %s18 = ssub.s32 %s10, %s17
    %p19 = scmp.eq.s32.totalorder %s18, 0
    %s21 = sadd.s32 %s20, 1
    %s22 = scalar_select %p19, %s20, %s21
    %p25 = pneg %p19
    %p26 = scmp.eq.s32.totalorder %s10, 1
    %p27 = por %p25, %p26
    %p28 = scmp.ne.s32.totalorder %s20, %s23
    %p29 = scmp.eq.s32.totalorder %s10, 0
    %p30 = por %p28, %p29
    %p31 = scmp.ne.s32.totalorder %s20, %s23
    %p32 = scmp.eq.s32.totalorder %s15, 1
    %p33 = por %p31, %p32
    %p34 = scmp.ne.s32.totalorder %s23, %s24
    %p35 = scmp.eq.s32.totalorder %s15, 0
    %p36 = por %p34, %p35
    %p37 = scmp.ne.s32.totalorder %s23, %s24
    %p38 = scmp.eq.s32.totalorder %s16, 1
    %p39 = por %p37, %p38
    %p41 = scmp.ne.s32.totalorder %s24, %s40
    %p42 = scmp.eq.s32.totalorder %s16, 0
    %p43 = por %p41, %p42
    %s45 = sadd.s32 %s44, 1
    %p48 = scmp.eq.s32.totalorder %s10, 1
    %p49 = scmp.ne.s32.totalorder %s44, %s46
    %p50 = scmp.eq.s32.totalorder %s10, 0
    %p51 = por %p49, %p50
    %p52 = scmp.ne.s32.totalorder %s44, %s46
    %p53 = scmp.eq.s32.totalorder %s15, 1
    %p54 = por %p52, %p53
    %p55 = scmp.ne.s32.totalorder %s46, %s47
    %p56 = scmp.eq.s32.totalorder %s15, 0
    %p57 = por %p55, %p56
    %p58 = scmp.ne.s32.totalorder %s46, %s47
    %p59 = scmp.eq.s32.totalorder %s16, 1
    %p60 = por %p58, %p59
    %p62 = scmp.ne.s32.totalorder %s47, %s61
    %p63 = scmp.eq.s32.totalorder %s16, 0
    %p64 = por %p62, %p63
    %s66 = sadd.s32 %s65, 1
    %p69 = scmp.eq.s32.totalorder %s10, 1
    %p70 = scmp.ne.s32.totalorder %s65, %s67
    %p71 = scmp.eq.s32.totalorder %s10, 0
    %p72 = por %p70, %p71
    %p73 = scmp.ne.s32.totalorder %s65, %s67
    %p74 = scmp.eq.s32.totalorder %s15, 1
    %p75 = por %p73, %p74
    %p76 = scmp.ne.s32.totalorder %s67, %s68
    %p77 = scmp.eq.s32.totalorder %s15, 0
    %p78 = por %p76, %p77
    %p79 = scmp.ne.s32.totalorder %s67, %s68
    %p80 = scmp.eq.s32.totalorder %s16, 1
    %p81 = por %p79, %p80
    %p83 = scmp.ne.s32.totalorder %s68, %s82
    %p84 = scmp.eq.s32.totalorder %s16, 0
    %p85 = por %p83, %p84
    %s87 = sadd.s32 %s86, 1
    %p90 = scmp.eq.s32.totalorder %s10, 1
    %p91 = scmp.ne.s32.totalorder %s86, %s88
    %p92 = scmp.eq.s32.totalorder %s10, 0
    %p93 = por %p91, %p92
    %p94 = scmp.ne.s32.totalorder %s86, %s88
    %p95 = scmp.eq.s32.totalorder %s15, 1
    %p96 = por %p94, %p95
    %p97 = scmp.ne.s32.totalorder %s88, %s89
    %p98 = scmp.eq.s32.totalorder %s15, 0
    %p99 = por %p97, %p98
    %p100 = scmp.ne.s32.totalorder %s88, %s89
    %p101 = scmp.eq.s32.totalorder %s16, 1
    %p102 = por %p100, %p101
    %p104 = scmp.ne.s32.totalorder %s89, %s103
    %p105 = scmp.eq.s32.totalorder %s16, 0
    %p106 = por %p104, %p105
    %s107 = ssub.s32 %s10, %s17
    %p108 = scmp.eq.s32.totalorder %s107, 0
    %s110 = sadd.s32 %s109, 1
    %s111 = scalar_select %p108, %s109, %s110
    %p114 = pneg %p108
    %p115 = scmp.eq.s32.totalorder %s10, 1
    %p116 = por %p114, %p115
    %p117 = scmp.ne.s32.totalorder %s109, %s112
    %p118 = scmp.eq.s32.totalorder %s10, 0
    %p119 = por %p117, %p118
    %p120 = scmp.ne.s32.totalorder %s109, %s112
    %p121 = scmp.eq.s32.totalorder %s15, 1
    %p122 = por %p120, %p121
    %p123 = scmp.ne.s32.totalorder %s112, %s113
    %p124 = scmp.eq.s32.totalorder %s15, 0
    %p125 = por %p123, %p124
    %p126 = scmp.ne.s32.totalorder %s112, %s113
    %p127 = scmp.eq.s32.totalorder %s16, 1
    %p128 = por %p126, %p127
    %p130 = scmp.ne.s32.totalorder %s113, %s129
    %p131 = scmp.eq.s32.totalorder %s16, 0
    %p132 = por %p130, %p131
    %p133 = scmp.le.s32.totalorder 1, %s10
    %p134 = scmp.lt.s32.totalorder %s10, 3
    %p135 = pnand %p133, %p134
    %p136 = pneg %p135
    // Predicated region
    $region9: #{single_window_forward.10} parent=5 // pred_check
      _
    $region10: #{single_window_forward.10} parent=5 // pred_check_branch
      %138 = sbr.rel (%p135) target = $region12
    $region11: #{single_window_forward.10} parent=5 // pred_region
      %s139 = ssub.s32 %s10, 1
      // Predicated region
      $region13: #{single_window_forward.10} parent=11 // pred_check
        %p140 = pneg %p57
      $region14: #{single_window_forward.10} parent=11 // pred_check_branch
        %142 = sbr.rel (%p140) target = $region16
      $region15: #{single_window_forward.10} parent=11 // pred_region
        _
      $region16: #{single_window_forward.10} parent=11 // pred_fallthru
        _
      // Predicated region
      $region17: #{single_window_forward.10} parent=11 // pred_check
        %p143 = pneg %p78
      $region18: #{single_window_forward.10} parent=11 // pred_check_branch
        %145 = sbr.rel (%p143) target = $region20
      $region19: #{single_window_forward.10} parent=11 // pred_region
        _
      $region20: #{single_window_forward.10} parent=11 // pred_fallthru
        _
      // Predicated region
      $region21: #{single_window_forward.10} parent=11 // pred_check
        %p146 = pneg %p99
      $region22: #{single_window_forward.10} parent=11 // pred_check_branch
        %148 = sbr.rel (%p146) target = $region24
      $region23: #{single_window_forward.10} parent=11 // pred_region
        _
      $region24: #{single_window_forward.10} parent=11 // pred_fallthru
        _
    $region12: #{single_window_forward.10} parent=5 // pred_fallthru
      _
    %p149 = scmp.lt.s32.totalorder %s10, 2
    // Predicated region
    $region25: #{single_window_forward.10} parent=5 // pred_check
      %p150 = pneg %p149
    $region26: #{single_window_forward.10} parent=5 // pred_check_branch
      %152 = sbr.rel (%p150) target = $region28
    $region27: #{single_window_forward.10} parent=5 // pred_region
      // Predicated region
      $region29: #{single_window_forward.10} parent=27 // pred_check
        %p153 = pneg %p30
      $region30: #{single_window_forward.10} parent=27 // pred_check_branch
        %155 = sbr.rel (%p153) target = $region32
      $region31: #{single_window_forward.10} parent=27 // pred_region
        %p156 = scmp.lt.s32.totalorder %s10, 1
        %s157 = scalar_select %p156, %s10, 1
        %s158 = smul.addr %s157, 2
        %s159 = smul.addr %s158, 2
        %s160 = scalar_lea.vmem %s0, %s159
      $region32: #{single_window_forward.10} parent=27 // pred_fallthru
        _
    $region28: #{single_window_forward.10} parent=5 // pred_fallthru
      _
    %p161 = scmp.le.s32.totalorder 1, %s10
    %p162 = scmp.lt.s32.totalorder %s10, 3
    %p163 = pnand %p161, %p162
    %p164 = pneg %p163
    // Predicated region
    $region33: #{single_window_forward.10} parent=5 // pred_check
      _
    $region34: #{single_window_forward.10} parent=5 // pred_check_branch
      %166 = sbr.rel (%p163) target = $region36
    $region35: #{single_window_forward.10} parent=5 // pred_region
      %s167 = ssub.s32 %s10, 1
      %p168 = scmp.lt.s32.totalorder %s15, 1
      %s169 = scalar_select %p168, %s15, 1
      %s170 = smul.addr %s169, 2
      %s171 = smul.addr %s170, 2
      %s172 = scalar_lea.vmem %s0, %s171
      %p173 = pneg %p36
      %p174 = pneg %p33
      %p175 = pneg %p57
      %p176 = pneg %p54
      %p177 = pneg %p78
      %p178 = pneg %p75
      %p179 = pneg %p99
      %p180 = pneg %p96
      %p181 = pneg %p125
      %p182 = pneg %p122
      %p183 = scmp.lt.s32.totalorder %s15, 1
      %s184 = scalar_select %p183, %s15, 1
      %s185 = scalar_lea.vmem %s4, %s184
      %p186 = scmp.lt.s32.totalorder %s15, 1
      %s187 = scalar_select %p186, %s15, 1
      %s188 = smul.addr %s187, 2
      %s189 = smul.addr %s188, 2
      %s190 = scalar_lea.vmem %s0, %s189
      %p191 = scmp.lt.s32.totalorder %s15, 1
      %s192 = scalar_select %p191, %s15, 1
      %s193 = scalar_lea.vmem %s4, %s192
      %v195 = vld [vmem:[%s190] sm:$0x3]
      %v196 = vld [vmem:[%s190 + $0x2] sm:$0x3]
      %198 = vst [vmem:[#allocation1] ss:$4 sm:$0xff] %v195
      %v199 = vld.sshfl [vmem:[#allocation1] sm:$0xff pattern:$0x73625140]
      %v200 = vshrl.u32 %v199, 16
      %v202 = vshll.u32 %v199, 16
      %v204 = vrot.slane %v202, 1
      %v205 = vor.u32 %v200, %v204
      %206 = vrot.lane.b32.xlu0 %v205, 64
      %v207 = vpop.permute.xlu0 %206
      %208 = vst [vmem:[#allocation1] ss:$4 sm:$0xff] %v195
      %v209 = vld.sshfl [vmem:[#allocation1] sm:$0xff pattern:$0x73625140]
      %211 = vrot.lane.b32.xlu0 %v209, 32
      %v212 = vpop.permute.xlu0 %211
      %213 = vst [vmem:[#allocation1] ss:$4 sm:$0xff] %v195
      %v214 = vld.sshfl [vmem:[#allocation1] sm:$0xff pattern:$0x73625140]
      %216 = vrot.lane.b32.xlu0 %v214, 32
      %v217 = vpop.permute.xlu0 %216
      %218 = vst [vmem:[#allocation1] ss:$4 sm:$0xff] %v195
      %v219 = vld.sshfl [vmem:[#allocation1] sm:$0xff pattern:$0x73625140]
      %v220 = vshrl.u32 %v219, 16
      %v222 = vshll.u32 %v219, 16
      %v224 = vrot.slane %v222, 1
      %v225 = vor.u32 %v220, %v224
      %226 = vrot.lane.b32.xlu0 %v225, 96
      %v227 = vpop.permute.xlu0 %226
      %229 = vst [vmem:[#allocation1] ss:$4 sm:$0xff] %v196
      %v230 = vld.sshfl [vmem:[#allocation1] sm:$0xff pattern:$0x73625140]
      %232 = vrot.lane.b32.xlu0 %v230, 64
      %v233 = vpop.permute.xlu0 %232
      %234 = vst [vmem:[#allocation1] ss:$4 sm:$0xff] %v196
      %v235 = vld.sshfl [vmem:[#allocation1] sm:$0xff pattern:$0x73625140]
      %237 = vrot.lane.b32.xlu0 %v235, 64
      %v238 = vpop.permute.xlu0 %237
      %239 = vst [vmem:[#allocation1] ss:$4 sm:$0xff] %v196
      %v240 = vld.sshfl [vmem:[#allocation1] sm:$0xff pattern:$0x73625140]
      %v241 = vshrl.u32 %v240, 16
      %v243 = vshll.u32 %v240, 16
      %v245 = vrot.slane %v243, 1
      %v246 = vor.u32 %v241, %v245
      %vm247 = vcmask 261120
      %vm248 = vcmask 523264
      %v250 = vsel %vm248, %v195, %v207
      %vm251 = vcmask 785408
      %v253 = vsel %vm251, %v250, %v212
      %v257 = vsel %vm247, %v217, %v227
      %v259 = vsel %vm248, %v257, %v233
      %v261 = vsel %vm251, %v259, %v238
      %v263 = vld [vmem:[%s1] sm:$0xf]
      %v264 = vld [vmem:[%s1 + $0x4] sm:$0xf]
      %v265 = vld [vmem:[%s1 + $0x8] sm:$0xf]
      %v266 = vld [vmem:[%s1 + $0xc] sm:$0xf]
      %v267 = vld [vmem:[%s1 + $0x10] sm:$0xf]
      %v268 = vld [vmem:[%s1 + $0x14] sm:$0xf]
      %v269 = vld [vmem:[%s1 + $0x18] sm:$0xf]
      %v270 = vld [vmem:[%s1 + $0x1c] sm:$0xf]
      %v271 = vld [vmem:[%s1 + $0x20] sm:$0xf]
      %v272 = vld [vmem:[%s1 + $0x24] sm:$0xf]
      %v273 = vld [vmem:[%s1 + $0x28] sm:$0xf]
      %v274 = vld [vmem:[%s1 + $0x2c] sm:$0xf]
      %v275 = vld [vmem:[%s1 + $0x30] sm:$0xf]
      %v276 = vld [vmem:[%s1 + $0x34] sm:$0xf]
      %v277 = vld [vmem:[%s1 + $0x38] sm:$0xf]
      %v278 = vld [vmem:[%s1 + $0x3c] sm:$0xf]
      %v279 = vld [vmem:[%s1 + $0x40] sm:$0xf]
      %v280 = vld [vmem:[%s1 + $0x44] sm:$0xf]
      %v281 = vld [vmem:[%s1 + $0x48] sm:$0xf]
      %v282 = vld [vmem:[%s1 + $0x4c] sm:$0xf]
      %v283 = vld [vmem:[%s1 + $0x50] sm:$0xf]
      %v284 = vld [vmem:[%s1 + $0x54] sm:$0xf]
      %v285 = vld [vmem:[%s1 + $0x58] sm:$0xf]
      %v286 = vld [vmem:[%s1 + $0x5c] sm:$0xf]
      %v287 = vld [vmem:[%s1 + $0x60] sm:$0xf]
      %v288 = vld [vmem:[%s1 + $0x64] sm:$0xf]
      %v289 = vld [vmem:[%s1 + $0x68] sm:$0xf]
      %v290 = vld [vmem:[%s1 + $0x6c] sm:$0xf]
      %v291 = vld [vmem:[%s1 + $0x70] sm:$0xf]
      %v292 = vld [vmem:[%s1 + $0x74] sm:$0xf]
      %v293 = vld [vmem:[%s1 + $0x78] sm:$0xf]
      %v294 = vld [vmem:[%s1 + $0x7c] sm:$0xf]
      %v295 = vld [vmem:[%s1 + $0x80] sm:$0xf]
      %v296 = vld [vmem:[%s1 + $0x84] sm:$0xf]
      %v297 = vld [vmem:[%s1 + $0x88] sm:$0xf]
      %v298 = vld [vmem:[%s1 + $0x8c] sm:$0xf]
      %v299 = vld [vmem:[%s2] sm:$0x1]
      %v301 = vperm.slane %v299, 0
      %v339 = vunpack.c.l.b16 %v263
      %v340 = vunpack.c.l.b16 %v264
      %v341 = vunpack.c.l.b16 %v265
      %v342 = vunpack.c.l.b16 %v266
      %v343 = vunpack.c.l.b16 %v267
      %v344 = vunpack.c.l.b16 %v268
      %v345 = vunpack.c.l.b16 %v269
      %v346 = vunpack.c.l.b16 %v270
      %v347 = vunpack.c.l.b16 %v271
      %v348 = vunpack.c.l.b16 %v272
      %v349 = vunpack.c.l.b16 %v273
      %v350 = vunpack.c.l.b16 %v274
      %v351 = vunpack.c.l.b16 %v275
      %v352 = vunpack.c.l.b16 %v276
      %v353 = vunpack.c.l.b16 %v277
      %v354 = vunpack.c.l.b16 %v278
      %v355 = vunpack.c.l.b16 %v279
      %v356 = vunpack.c.l.b16 %v280
      %v357 = vunpack.c.l.b16 %v281
      %v358 = vunpack.c.l.b16 %v282
      %v359 = vunpack.c.l.b16 %v283
      %v360 = vunpack.c.l.b16 %v284
      %v361 = vunpack.c.l.b16 %v285
      %v362 = vunpack.c.l.b16 %v286
      %v363 = vunpack.c.l.b16 %v287
      %v364 = vunpack.c.l.b16 %v288
      %v365 = vunpack.c.l.b16 %v289
      %v366 = vunpack.c.l.b16 %v290
      %v367 = vunpack.c.l.b16 %v291
      %v368 = vunpack.c.l.b16 %v292
      %v369 = vunpack.c.l.b16 %v293
      %v370 = vunpack.c.l.b16 %v294
      %v371 = vunpack.c.l.b16 %v295
      %v372 = vunpack.c.l.b16 %v296
      %v373 = vunpack.c.l.b16 %v297
      %v374 = vunpack.c.l.b16 %v298
      %v375 = vpack.c.b16 %v340, %v339
      %v376 = vpack.c.b16 %v342, %v341
      %v377 = vpack.c.b16 %v344, %v343
      %v378 = vpack.c.b16 %v346, %v345
      %v379 = vpack.c.b16 %v348, %v347
      %v380 = vpack.c.b16 %v350, %v349
      %v381 = vpack.c.b16 %v352, %v351
      %v382 = vpack.c.b16 %v354, %v353
      %v383 = vpack.c.b16 %v356, %v355
      %v384 = vpack.c.b16 %v358, %v357
      %v385 = vpack.c.b16 %v360, %v359
      %v386 = vpack.c.b16 %v362, %v361
      %v387 = vpack.c.b16 %v364, %v363
      %v388 = vpack.c.b16 %v366, %v365
      %v389 = vpack.c.b16 %v368, %v367
      %v390 = vpack.c.b16 %v370, %v369
      %v391 = vpack.c.b16 %v372, %v371
      %v392 = vpack.c.b16 %v374, %v373
      %v412 = vsel %vm247, %v246, 0
      %414 = vmatpush.bf16.msra.mxu0 %v382
      %415 = vmatpush.bf16.msra.mxu0 %v381
      %416 = vmatpush.bf16.msra.mxu0 %v380
      %417 = vmatpush.bf16.msra.mxu0 %v379
      %418 = vmatpush.bf16.msra.mxu0 %v378
      %419 = vmatpush.bf16.msra.mxu0 %v377
      %420 = vmatpush.bf16.msra.mxu0 %v376
      %421 = vmatpush.bf16.msra.mxu0 %v375
      %422 = vmatmul.bf16.gmra.mxu0 %v253
      %v423 = vpop.f32.mrf.mxu0
      %v424 = vadd.f32 %v301, %v423
      %v425 = vpop.f32.mrf.mxu0
      %426 = vdwg.mxu0
      %427 = vmatpush.bf16.msra.mxu0 %v390
      %428 = vmatpush.bf16.msra.mxu0 %v389
      %429 = vmatpush.bf16.msra.mxu0 %v388
      %430 = vmatpush.bf16.msra.mxu0 %v387
      %431 = vmatpush.bf16.msra.mxu0 %v386
      %432 = vmatpush.bf16.msra.mxu0 %v385
      %433 = vmatpush.bf16.msra.mxu0 %v384
      %434 = vmatpush.bf16.msra.mxu0 %v383
      %435 = vmatmul.bf16.gmra.mxu0 %v261
      %v436 = vpop.f32.mrf.mxu0
      %v437 = vadd.f32 %v424, %v436
      %v438 = vpop.f32.mrf.mxu0
      %439 = vdwg.mxu0
      %440 = vmatpush.bf16.msra.mxu0 0
      %441 = vmatpush.bf16.msra.mxu0 0
      %442 = vmatpush.bf16.msra.mxu0 0
      %443 = vmatpush.bf16.msra.mxu0 0
      %444 = vmatpush.bf16.msra.mxu0 0
      %445 = vmatpush.bf16.msra.mxu0 0
      %446 = vmatpush.bf16.msra.mxu0 %v392
      %447 = vmatpush.bf16.msra.mxu0 %v391
      %448 = vmatmul.bf16.gmra.mxu0 %v412
      %v449 = vpop.f32.mrf.mxu0
      %v450 = vadd.f32 %v437, %v449
      %v451 = vpop.f32.mrf.mxu0
      %452 = vdwg.mxu0
      %vm453 = vcmp.ge.f32.partialorder %v450, 0.0
      %v454 = vmul.f32 %v450, 0.2
      %v455 = vsel %vm453, %v450, %v454
      %v456 = vld [vmem:[%s3] sm:$0x3]
      %v457 = vmul.f32 %v455, %v456
      %vm458 = vcmask 254976
      %v459 = vsel %vm458, %v457, 0.0
      %460 = vadd.xlane.f32.xlu0 %v459
      %v461 = vpop.xlane.xlu0 %460
      %vm462 = vcmask 1041408
      %v463 = vsel %vm462, %v461, 0.0
      %v464 = vrot.slane %v463, 4
      %v465 = vadd.f32 %v463, %v464
      %v466 = vrot.slane %v465, 2
      %v467 = vadd.f32 %v465, %v466
      %v468 = vrot.slane %v467, 1
      %v469 = vadd.f32 %v467, %v468
      %s470 = scalar_lea.vmem %s3, 2
      %v471 = vld [vmem:[%s470] sm:$0x3]
      %v472 = vmul.f32 %v455, %v471
      %v473 = vsel %vm458, %v472, 0.0
      %474 = vadd.xlane.f32.xlu0 %v473
      %v475 = vpop.xlane.xlu0 %474
      %v476 = vsel %vm462, %v475, 0.0
      %v477 = vrot.slane %v476, 4
      %v478 = vadd.f32 %v476, %v477
      %v479 = vrot.slane %v478, 2
      %v480 = vadd.f32 %v478, %v479
      %v481 = vrot.slane %v480, 1
      %v482 = vadd.f32 %v480, %v481
      %vm483 = vcmask 7168
      %v484 = vsel %vm483, %v469, %v482
      %vm485 = vcmask 8192
      %486 = vst.msk [vmem:[%s193] sm:$0x1] %vm485, %v484
      %p487 = scmp.lt.s32.totalorder %s15, 1
      %s488 = scalar_select %p487, %s15, 1
      %s489 = scalar_lea.vmem %s4, %s488
      // Predicated region
      $region37: #{single_window_forward.10} parent=35 // pred_check
        %p490 = pneg %p122
      $region38: #{single_window_forward.10} parent=35 // pred_check_branch
        %492 = sbr.rel (%p490) target = $region40
      $region39: #{single_window_forward.10} parent=35 // pred_region
        _
      $region40: #{single_window_forward.10} parent=35 // pred_fallthru
        _
    $region36: #{single_window_forward.10} parent=5 // pred_fallthru
      _
    %p493 = scmp.le.s32.totalorder 2, %s10
    // Predicated region
    $region41: #{single_window_forward.10} parent=5 // pred_check
      %p494 = pneg %p493
    $region42: #{single_window_forward.10} parent=5 // pred_check_branch
      %496 = sbr.rel (%p494) target = $region44
    $region43: #{single_window_forward.10} parent=5 // pred_region
      %s497 = ssub.s32 %s10, 2
      // Predicated region
      $region45: #{single_window_forward.10} parent=43 // pred_check
        %p498 = pneg %p128
      $region46: #{single_window_forward.10} parent=43 // pred_check_branch
        %500 = sbr.rel (%p498) target = $region48
      $region47: #{single_window_forward.10} parent=43 // pred_region
        %p501 = scmp.lt.s32.totalorder %s16, 1
        %s502 = scalar_select %p501, %s16, 1
        %s503 = scalar_lea.vmem %s4, %s502
      $region48: #{single_window_forward.10} parent=43 // pred_fallthru
        _
    $region44: #{single_window_forward.10} parent=5 // pred_fallthru
      _
  $region6: #{single_window_forward.10} parent=0 // loop_footer
    %s14 = sadd.s32 1, %s10
  $region7: #{single_window_forward.10} parent=0 // loop_footer_branch
    %9 = sbr.rel target = $region3
  $region8: #{single_window_forward.10} parent=0 // loop_exit
    _

</llo_original>
